<compile_context>
chip_gen: v6e
topology: v6e:2x2x1
jax: 0.10.0
libtpu: 0.0.40
codegen_flags: <defaults>
</compile_context>

<pallas_src>
import functools
import math

import jax
import jax.numpy as jnp
from jax.experimental import pallas as pl
from jax.experimental.pallas import tpu as pltpu

LEAKY_SLOPE = 0.01  # F.leaky_relu default


# ---------------------------------------------------------------------------
# Static copy-list generation (pure Python ints, computed at trace time).
# A copy is (dst_row, src_row, n_rows, dst_lane, src_lane, n_lanes) and is
# emitted in-kernel as dst[dr:dr+n, dl:dl+nl] = src[sr:sr+n, sl:sl+nl].
# ---------------------------------------------------------------------------
def _merge(entries):
    out = []
    for dr, sr, dl, sl, nl in entries:
        if out:
            pdr, psr, pn, pdl, psl, pnl = out[-1]
            if (pdl, psl, pnl) == (dl, sl, nl) and pdr + pn == dr and psr + pn == sr:
                out[-1] = (pdr, psr, pn + 1, pdl, psl, pnl)
                continue
        out.append((dr, sr, 1, dl, sl, nl))
    return tuple(out)


def _copies_conv2_im2col(H1, W1, H2, W2, C1):
    # conv2 patch build from conv1's quadrant-ordered output x1q.
    # x1q[(2a+c)*H2*W2 + ii*W2 + jj, :] = x1[2*ii+1-a, 2*jj+1-c, :]
    e = []
    for kh in range(3):
        for kw in range(3):
            dl = (kh * 3 + kw) * C1
            for h2 in range(H2):
                h1 = 2 * h2 + kh - 1
                if not 0 <= h1 < H1:
                    continue
                a, ii = 1 - (h1 % 2), h1 // 2
                for w2 in range(W2):
                    w1 = 2 * w2 + kw - 1
                    if not 0 <= w1 < W1:
                        continue
                    c, jj = 1 - (w1 % 2), w1 // 2
                    e.append((h2 * W2 + w2,
                              (2 * a + c) * (H2 * W2) + ii * W2 + jj, dl, 0, C1))
    return _merge(e)


def _copies_deconv1_im2col(H2, W2, C2):
    # 3x3-tap patches of pad(x2, 1), x2 stored row-major (H2*W2, C2).
    e = []
    for ta in range(3):
        for tb in range(3):
            dl = (ta * 3 + tb) * C2
            for i in range(H2):
                iy = i + ta - 1
                if not 0 <= iy < H2:
                    continue
                for j in range(W2):
                    ix = j + tb - 1
                    if not 0 <= ix < W2:
                        continue
                    e.append((i * W2 + j, iy * W2 + ix, dl, 0, C2))
    return _merge(e)


def _copies_unshuffle(H2, W2, C1):
    # deconv1 phase-packed output (16, 4*C1) -> (h, s, j) row layout (64, C1)
    # y1s[h*W1 + s*(W1//2) + j, :] = y1[h, 2*j+s, :]
    W1 = 2 * W2
    e = []
    for p in range(2):
        for s in range(2):
            sl = (p * 2 + s) * C1
            for i in range(H2):
                for j in range(W2):
                    e.append(((2 * i + p) * W1 + s * W2 + j, i * W2 + j, 0, sl, C1))
    return _merge(e)


def _copies_deconv2_im2col(H1, W1, C1):
    # 3x3-tap patches of pad(y1, 1) read from the (h, s, j) layout; patch rows
    # are ordered (I, sigma, J') with J = 2*J'+sigma so all copies are contiguous.
    Wh = W1 // 2
    e = []
    for ta in range(3):
        for tb in range(3):
            dl = (ta * 3 + tb) * C1
            for i in range(H1):
                h = i + ta - 1
                if not 0 <= h < H1:
                    continue
                for sig in range(2):
                    for jp in range(Wh):
                        w = 2 * jp + sig + tb - 1
                        if not 0 <= w < W1:
                            continue
                        e.append((i * W1 + sig * Wh + jp,
                                  h * W1 + (w % 2) * Wh + (w // 2), dl, 0, C1))
    return _merge(e)


# ---------------------------------------------------------------------------
# The fused Pallas kernel
# ---------------------------------------------------------------------------
def _emit_copies(dst, src, copies):
    for dr, sr, n, dl, sl, nl in copies:
        dst[dr:dr + n, dl:dl + nl] = src[sr:sr + n, sl:sl + nl]


def _fused_kernel(im0_ref, w1_ref, b1_ref, w2_ref, b2_ref, wd1_ref, bd1_ref,
                  wd2_ref, bd2_ref, o_ref,
                  x1q, im1, x2, im2, y1p, y1s, im3, *,
                  copies1, copies2, copies_u, copies3):
    def mm(a, w_ref, b_ref):
        return jnp.dot(a.astype(jnp.bfloat16), w_ref[...],
                       preferred_element_type=jnp.float32) + b_ref[...]

    def lrelu(v):
        return jnp.where(v >= 0.0, v, LEAKY_SLOPE * v)

    # conv1 + BN1 + LeakyReLU (input patches prepared XLA-side, quadrant order)
    x1q[...] = lrelu(mm(im0_ref[...], w1_ref, b1_ref))

    # conv2 + BN2 + LeakyReLU
    im1[...] = jnp.zeros(im1.shape, im1.dtype)
    _emit_copies(im1, x1q, copies1)
    x2[...] = lrelu(mm(im1[...], w2_ref, b2_ref))

    # deconv1 + BN3 + LeakyReLU (4 output phases packed along N)
    im2[...] = jnp.zeros(im2.shape, im2.dtype)
    _emit_copies(im2, x2, copies2)
    y1p[...] = lrelu(mm(im2[...], wd1_ref, bd1_ref))

    # in-VMEM pixel shuffle of the deconv1 phases -> (h, s, j) row layout
    _emit_copies(y1s, y1p, copies_u)

    # deconv2 + BN4 (no activation); output stays phase-packed, tiny (4 KB)
    im3[...] = jnp.zeros(im3.shape, im3.dtype)
    _emit_copies(im3, y1s, copies3)
    o_ref[...] = mm(im3[...], wd2_ref, bd2_ref)


# ---------------------------------------------------------------------------
# XLA-side (one-shot, tiny) preparation: input patches + BN-folded weights
# ---------------------------------------------------------------------------
def _build_conv1_im2col(x_nhwc, H1, W1):
    B, C0 = x_nhwc.shape[0], x_nhwc.shape[-1]
    xp = jnp.pad(x_nhwc, ((0, 0), (1, 1), (1, 1), (0, 0)))
    taps = []
    for kh in range(3):
        for kw in range(3):
            taps.append(xp[:, kh:kh + 2 * H1:2, kw:kw + 2 * W1:2, :])
    patches = jnp.concatenate(taps, axis=-1)            # (B, H1, W1, 9*C0)
    quads = []
    for a in range(2):
        for c in range(2):
            quads.append(patches[:, (1 - a)::2, (1 - c)::2, :])
    q = jnp.stack(quads, axis=1)                        # (B, 4, H1//2, W1//2, 9*C0)
    return q.reshape(B, H1 * W1, 9 * C0).astype(jnp.bfloat16)


def _bn_scale(bn):
    return bn["gamma"] * jax.lax.rsqrt(bn["var"] + bn["eps"])


def _fold_conv(w, b, bn):
    # w: (Cout, Cin, 3, 3) OIHW  ->  (9*Cin, Cout) matmul weight, BN folded.
    s = _bn_scale(bn)
    Cout, Cin = w.shape[0], w.shape[1]
    wm = jnp.transpose(w, (2, 3, 1, 0)).reshape(9 * Cin, Cout) * s[None, :]
    bf = (b - bn["mean"]) * s + bn["beta"]
    return wm.astype(jnp.bfloat16), bf.reshape(1, Cout).astype(jnp.float32)


def _fold_deconv(w, b, bn):
    # w: (Cin, Cout, 4, 4) ConvTranspose layout -> (9*Cin, 4*Cout) packed-phase
    # weight (phase (p,q) output at coarse (I,J) = sum over 3x3 pad(x,1) taps).
    s = _bn_scale(bn)
    Cin, Cout = w.shape[0], w.shape[1]
    wf = w * s[None, :, None, None]
    rows = []
    for ta in range(3):
        for tb in range(3):
            cols = []
            for p in range(2):
                for q in range(2):
                    ky, kx = 3 - 2 * ta + p, 3 - 2 * tb + q
                    if 0 <= ky < 4 and 0 <= kx < 4:
                        cols.append(wf[:, :, ky, kx])
                    else:
                        cols.append(jnp.zeros((Cin, Cout), wf.dtype))
            rows.append(jnp.concatenate(cols, axis=1))
    wm = jnp.concatenate(rows, axis=0)
    bf = (b - bn["mean"]) * s + bn["beta"]
    return (wm.astype(jnp.bfloat16),
            jnp.tile(bf, 4).reshape(1, 4 * Cout).astype(jnp.float32))


# ---------------------------------------------------------------------------
# Forward pass (matches CenterSpeedDense.forward, eval mode)
# ---------------------------------------------------------------------------
def center_speed_dense_forward(params, x_nchw):
    B, C0, H0, W0 = x_nchw.shape
    assert H0 % 4 == 0 and W0 % 4 == 0, "spatial dims must be divisible by 4"
    C1 = params["conv1_w"].shape[0]
    C2 = params["conv2_w"].shape[0]
    C3 = params["deconv2_w"].shape[1]
    H1, W1 = H0 // 2, W0 // 2
    H2, W2 = H0 // 4, W0 // 4

    x = jnp.transpose(x_nchw, (0, 2, 3, 1)).astype(jnp.float32)      # NCHW->NHWC
    im0 = _build_conv1_im2col(x, H1, W1)                             # (B, H1*W1, 9*C0)

    w1m, b1f = _fold_conv(params["conv1_w"], params["conv1_b"], params["bn1"])
    w2m, b2f = _fold_conv(params["conv2_w"], params["conv2_b"], params["bn2"])
    wd1, bd1 = _fold_deconv(params["deconv1_w"], params["deconv1_b"], params["bn3"])
    wd2, bd2 = _fold_deconv(params["deconv2_w"], params["deconv2_b"], params["bn4"])

    kernel = functools.partial(
        _fused_kernel,
        copies1=_copies_conv2_im2col(H1, W1, H2, W2, C1),
        copies2=_copies_deconv1_im2col(H2, W2, C2),
        copies_u=_copies_unshuffle(H2, W2, C1),
        copies3=_copies_deconv2_im2col(H1, W1, C1),
    )

    flops = 2 * B * (H1 * W1 * 9 * C0 * C1 + H2 * W2 * 9 * C1 * C2
                     + H2 * W2 * 9 * C2 * 4 * C1 + H1 * W1 * 9 * C1 * 4 * C3)
    bytes_accessed = int(im0.size * 2 + w1m.size * 2 + w2m.size * 2
                         + wd1.size * 2 + wd2.size * 2
                         + B * H1 * W1 * 4 * C3 * 4)

    out = pl.pallas_call(
        kernel,
        out_shape=jax.ShapeDtypeStruct((B, H1 * W1, 4 * C3), jnp.float32),
        grid=(B,),
        in_specs=[
            pl.BlockSpec((None, H1 * W1, 9 * C0), lambda b: (b, 0, 0)),
            pl.BlockSpec((9 * C0, C1), lambda b: (0, 0)),
            pl.BlockSpec((1, C1), lambda b: (0, 0)),
            pl.BlockSpec((9 * C1, C2), lambda b: (0, 0)),
            pl.BlockSpec((1, C2), lambda b: (0, 0)),
            pl.BlockSpec((9 * C2, 4 * C1), lambda b: (0, 0)),
            pl.BlockSpec((1, 4 * C1), lambda b: (0, 0)),
            pl.BlockSpec((9 * C1, 4 * C3), lambda b: (0, 0)),
            pl.BlockSpec((1, 4 * C3), lambda b: (0, 0)),
        ],
        out_specs=pl.BlockSpec((None, H1 * W1, 4 * C3), lambda b: (b, 0, 0)),
        scratch_shapes=[
            pltpu.VMEM((H1 * W1, C1), jnp.float32),       # x1q (quadrant order)
            pltpu.VMEM((H2 * W2, 9 * C1), jnp.float32),   # conv2 patch matrix
            pltpu.VMEM((H2 * W2, C2), jnp.float32),       # x2
            pltpu.VMEM((H2 * W2, 9 * C2), jnp.float32),   # deconv1 patch matrix
            pltpu.VMEM((H2 * W2, 4 * C1), jnp.float32),   # deconv1 out (phase packed)
            pltpu.VMEM((H1 * W1, C1), jnp.float32),       # deconv1 out (shuffled)
            pltpu.VMEM((H1 * W1, 9 * C1), jnp.float32),   # deconv2 patch matrix
        ],
        compiler_params=pltpu.CompilerParams(
            dimension_semantics=("parallel",)),
        cost_estimate=pl.CostEstimate(flops=flops, transcendentals=0,
                                      bytes_accessed=bytes_accessed),
    )(im0, w1m, b1f, w2m, b2f, wd1, bd1, wd2, bd2)

    # Unscramble the phase-packed kernel output to NCHW (tiny: 4 KB / batch).
    Wh = W1 // 2
    o = out.reshape(B, H1, 2, Wh, 2, 2, C3)               # (I, sig, J', p, q, co)
    o = jnp.transpose(o, (0, 6, 1, 4, 3, 2, 5))           # (b, co, I, p, J', sig, q)
    return o.reshape(B, C3, H0, W0)


# ---------------------------------------------------------------------------
# Parameters (PyTorch-style uniform init; BatchNorm at eval-mode defaults)
# ---------------------------------------------------------------------------
def _uniform(key, shape, bound):
    return jax.random.uniform(key, shape, jnp.float32, -bound, bound)


def _bn_params(c):
    return dict(gamma=jnp.ones((c,), jnp.float32), beta=jnp.zeros((c,), jnp.float32),
                mean=jnp.zeros((c,), jnp.float32), var=jnp.ones((c,), jnp.float32),
                eps=1e-5)


def init_params(key, input_channels=6, c1=64, c2=128):
    ks = jax.random.split(key, 8)
    p = {}
    bd = 1.0 / math.sqrt(input_channels * 9)
    p["conv1_w"] = _uniform(ks[0], (c1, input_channels, 3, 3), bd)
    p["conv1_b"] = _uniform(ks[1], (c1,), bd)
    bd = 1.0 / math.sqrt(c1 * 9)
    p["conv2_w"] = _uniform(ks[2], (c2, c1, 3, 3), bd)
    p["conv2_b"] = _uniform(ks[3], (c2,), bd)
    bd = 1.0 / math.sqrt(c2 * 16)
    p["deconv1_w"] = _uniform(ks[4], (c2, c1, 4, 4), bd)
    p["deconv1_b"] = _uniform(ks[5], (c1,), bd)
    bd = 1.0 / math.sqrt(c1 * 16)
    p["deconv2_w"] = _uniform(ks[6], (c1, 4, 4, 4), bd)
    p["deconv2_b"] = _uniform(ks[7], (4,), bd)
    p["bn1"], p["bn2"], p["bn3"], p["bn4"] = (_bn_params(c1), _bn_params(c2),
                                              _bn_params(c1), _bn_params(4))
    return p


# ---------------------------------------------------------------------------
# Pure-JAX f32 reference (precision contract: bf16 MXU inputs in the kernel)
# ---------------------------------------------------------------------------
def _reference_forward(params, x_nchw):
    def bn(v, p):
        s = p["gamma"] * jax.lax.rsqrt(p["var"] + p["eps"])
        return (v - p["mean"]) * s + p["beta"]

    def conv(v, w, b):
        y = jax.lax.conv_general_dilated(
            v, jnp.transpose(w, (2, 3, 1, 0)), (2, 2), ((1, 1), (1, 1)),
            dimension_numbers=("NHWC", "HWIO", "NHWC"))
        return y + b

    def deconv(v, w, b):
        wt = jnp.transpose(w, (2, 3, 0, 1))[::-1, ::-1, :, :]
        y = jax.lax.conv_general_dilated(
            v, wt, (1, 1), ((2, 2), (2, 2)), lhs_dilation=(2, 2),
            dimension_numbers=("NHWC", "HWIO", "NHWC"))
        return y + b

    lrelu = lambda v: jnp.where(v >= 0, v, LEAKY_SLOPE * v)
    x = jnp.transpose(x_nchw, (0, 2, 3, 1)).astype(jnp.float32)
    x = lrelu(bn(conv(x, params["conv1_w"], params["conv1_b"]), params["bn1"]))
    x = lrelu(bn(conv(x, params["conv2_w"], params["conv2_b"]), params["bn2"]))
    x = lrelu(bn(deconv(x, params["deconv1_w"], params["deconv1_b"]), params["bn3"]))
    x = bn(deconv(x, params["deconv2_w"], params["deconv2_b"]), params["bn4"])
    return jnp.transpose(x, (0, 3, 1, 2))


if __name__ == "__main__":
    key = jax.random.PRNGKey(0)
    pkey, xkey = jax.random.split(key)
    params = init_params(pkey)

    B, C, H, W = 2, 6, 16, 16
    x = jax.random.normal(xkey, (B, C, H, W), jnp.float32)

    fwd = jax.jit(center_speed_dense_forward)
    out = fwd(params, x)
    jax.block_until_ready(out)

    assert out.shape == (B, 4, H, W), out.shape
    assert bool(jnp.all(jnp.isfinite(out)))

    ref = _reference_forward(params, x)
    max_err = float(jnp.max(jnp.abs(out - ref)))
    assert max_err < 5e-2, f"max abs error vs reference: {max_err}"

    print("KERNEL_OK")
</pallas_src>

<mosaic_0001>
module attributes {stable_mosaic.version = 11 : i64} {
  func.func @_fused_kernel(%arg0: i32, %arg1: memref<1x64x54xbf16, #tpu.memory_space<vmem>>, %arg2: memref<54x64xbf16, #tpu.memory_space<vmem>>, %arg3: memref<1x64xf32, #tpu.memory_space<vmem>>, %arg4: memref<576x128xbf16, #tpu.memory_space<vmem>>, %arg5: memref<1x128xf32, #tpu.memory_space<vmem>>, %arg6: memref<1152x256xbf16, #tpu.memory_space<vmem>>, %arg7: memref<1x256xf32, #tpu.memory_space<vmem>>, %arg8: memref<576x16xbf16, #tpu.memory_space<vmem>>, %arg9: memref<1x16xf32, #tpu.memory_space<vmem>>, %arg10: memref<1x64x16xf32, #tpu.memory_space<vmem>>, %arg11: memref<64x64xf32, #tpu.memory_space<vmem>>, %arg12: memref<16x576xf32, #tpu.memory_space<vmem>>, %arg13: memref<16x128xf32, #tpu.memory_space<vmem>>, %arg14: memref<16x1152xf32, #tpu.memory_space<vmem>>, %arg15: memref<16x256xf32, #tpu.memory_space<vmem>>, %arg16: memref<64x64xf32, #tpu.memory_space<vmem>>, %arg17: memref<64x576xf32, #tpu.memory_space<vmem>>) attributes {dimension_semantics = [#tpu.dimension_semantics<parallel>], iteration_bounds = array<i64: 2>, scalar_prefetch = 0 : i64, scratch_operands = 7 : i64, tpu.core_type = #tpu.core_type<tc>, window_params = [{transform_indices = @transform_0, window_bounds = array<i64: 1, 64, 54>}, {pipeline_mode = #tpu.pipeline_mode<synchronous>, transform_indices = @transform_1, window_bounds = array<i64: 54, 64>}, {pipeline_mode = #tpu.pipeline_mode<synchronous>, transform_indices = @transform_2, window_bounds = array<i64: 1, 64>}, {pipeline_mode = #tpu.pipeline_mode<synchronous>, transform_indices = @transform_3, window_bounds = array<i64: 576, 128>}, {pipeline_mode = #tpu.pipeline_mode<synchronous>, transform_indices = @transform_4, window_bounds = array<i64: 1, 128>}, {pipeline_mode = #tpu.pipeline_mode<synchronous>, transform_indices = @transform_5, window_bounds = array<i64: 1152, 256>}, {pipeline_mode = #tpu.pipeline_mode<synchronous>, transform_indices = @transform_6, window_bounds = array<i64: 1, 256>}, {pipeline_mode = #tpu.pipeline_mode<synchronous>, transform_indices = @transform_7, window_bounds = array<i64: 576, 16>}, {pipeline_mode = #tpu.pipeline_mode<synchronous>, transform_indices = @transform_8, window_bounds = array<i64: 1, 16>}, {transform_indices = @transform_9, window_bounds = array<i64: 1, 64, 16>}]} {
    %c0 = arith.constant 0 : index
    %c0_0 = arith.constant 0 : index
    %c0_1 = arith.constant 0 : index
    %0 = vector.load %arg1[%c0, %c0_0, %c0_1] : memref<1x64x54xbf16, #tpu.memory_space<vmem>>, vector<1x64x54xbf16>
    %1 = vector.shape_cast %0 : vector<1x64x54xbf16> to vector<64x54xbf16>
    %c0_2 = arith.constant 0 : index
    %c0_3 = arith.constant 0 : index
    %2 = vector.load %arg2[%c0_2, %c0_3] : memref<54x64xbf16, #tpu.memory_space<vmem>>, vector<54x64xbf16>
    %cst = arith.constant dense<0.000000e+00> : vector<64x64xf32>
    %3 = tpu.matmul %1, %2, %cst {dimension_numbers = #tpu.dot_dimension_numbers<[1], [0], [0], [1], [0, 0, 1, 1], [], []>} : vector<64x54xbf16>, vector<54x64xbf16>, vector<64x64xf32> -> vector<64x64xf32>
    %c0_4 = arith.constant 0 : index
    %c0_5 = arith.constant 0 : index
    %4 = vector.load %arg3[%c0_4, %c0_5] : memref<1x64xf32, #tpu.memory_space<vmem>>, vector<1x64xf32>
    %5 = vector.broadcast %4 : vector<1x64xf32> to vector<64x64xf32>
    %6 = arith.addf %3, %5 : vector<64x64xf32>
    %cst_6 = arith.constant 0.000000e+00 : f32
    %7 = vector.broadcast %cst_6 : f32 to vector<64x64xf32>
    %8 = arith.cmpf oge, %6, %7 : vector<64x64xf32>
    %cst_7 = arith.constant 0.00999999977 : f32
    %9 = vector.broadcast %cst_7 : f32 to vector<64x64xf32>
    %10 = arith.mulf %9, %6 : vector<64x64xf32>
    %11 = arith.select %8, %6, %10 : vector<64x64xi1>, vector<64x64xf32>
    %c0_8 = arith.constant 0 : index
    %c0_9 = arith.constant 0 : index
    %12 = vector.load %arg11[%c0_8, %c0_9] : memref<64x64xf32, #tpu.memory_space<vmem>>, vector<64x64xf32>
    tpu.vector_store %arg11[%c0_8, %c0_9], %11 {strides = array<i32>} : memref<64x64xf32, #tpu.memory_space<vmem>>, vector<64x64xf32>,
    %cst_10 = arith.constant 0.000000e+00 : f32
    %13 = vector.broadcast %cst_10 : f32 to vector<16x576xf32>
    %c0_11 = arith.constant 0 : index
    %c0_12 = arith.constant 0 : index
    %14 = vector.load %arg12[%c0_11, %c0_12] : memref<16x576xf32, #tpu.memory_space<vmem>>, vector<16x576xf32>
    tpu.vector_store %arg12[%c0_11, %c0_12], %13 {strides = array<i32>} : memref<16x576xf32, #tpu.memory_space<vmem>>, vector<16x576xf32>,
    %c0_13 = arith.constant 0 : index
    %c0_14 = arith.constant 0 : index
    %15 = vector.load %arg11[%c0_13, %c0_14] : memref<64x64xf32, #tpu.memory_space<vmem>>, vector<3x64xf32>
    %c5 = arith.constant 5 : index
    %c0_15 = arith.constant 0 : index
    %16 = vector.load %arg12[%c5, %c0_15] : memref<16x576xf32, #tpu.memory_space<vmem>>, vector<3x64xf32>
    tpu.vector_store %arg12[%c5, %c0_15], %15 {strides = array<i32>} : memref<16x576xf32, #tpu.memory_space<vmem>>, vector<3x64xf32>,
    %c4 = arith.constant 4 : index
    %c0_16 = arith.constant 0 : index
    %17 = vector.load %arg11[%c4, %c0_16] : memref<64x64xf32, #tpu.memory_space<vmem>>, vector<3x64xf32>
    %c9 = arith.constant 9 : index
    %c0_17 = arith.constant 0 : index
    %18 = vector.load %arg12[%c9, %c0_17] : memref<16x576xf32, #tpu.memory_space<vmem>>, vector<3x64xf32>
    tpu.vector_store %arg12[%c9, %c0_17], %17 {strides = array<i32>} : memref<16x576xf32, #tpu.memory_space<vmem>>, vector<3x64xf32>,
    %c8 = arith.constant 8 : index
    %c0_18 = arith.constant 0 : index
    %19 = vector.load %arg11[%c8, %c0_18] : memref<64x64xf32, #tpu.memory_space<vmem>>, vector<3x64xf32>
    %c13 = arith.constant 13 : index
    %c0_19 = arith.constant 0 : index
    %20 = vector.load %arg12[%c13, %c0_19] : memref<16x576xf32, #tpu.memory_space<vmem>>, vector<3x64xf32>
    tpu.vector_store %arg12[%c13, %c0_19], %19 {strides = array<i32>} : memref<16x576xf32, #tpu.memory_space<vmem>>, vector<3x64xf32>,
    %c16 = arith.constant 16 : index
    %c0_20 = arith.constant 0 : index
    %21 = vector.load %arg11[%c16, %c0_20] : memref<64x64xf32, #tpu.memory_space<vmem>>, vector<12x64xf32>
    %c4_21 = arith.constant 4 : index
    %c64 = arith.constant 64 : index
    %22 = vector.load %arg12[%c4_21, %c64] : memref<16x576xf32, #tpu.memory_space<vmem>>, vector<12x64xf32>
    tpu.vector_store %arg12[%c4_21, %c64], %21 {strides = array<i32>} : memref<16x576xf32, #tpu.memory_space<vmem>>, vector<12x64xf32>,
    %c0_22 = arith.constant 0 : index
    %c0_23 = arith.constant 0 : index
    %23 = vector.load %arg11[%c0_22, %c0_23] : memref<64x64xf32, #tpu.memory_space<vmem>>, vector<12x64xf32>
    %c4_24 = arith.constant 4 : index
    %c128 = arith.constant 128 : index
    %24 = vector.load %arg12[%c4_24, %c128] : memref<16x576xf32, #tpu.memory_space<vmem>>, vector<12x64xf32>
    tpu.vector_store %arg12[%c4_24, %c128], %23 {strides = array<i32>} : memref<16x576xf32, #tpu.memory_space<vmem>>, vector<12x64xf32>,
    %c32 = arith.constant 32 : index
    %c0_25 = arith.constant 0 : index
    %25 = vector.load %arg11[%c32, %c0_25] : memref<64x64xf32, #tpu.memory_space<vmem>>, vector<3x64xf32>
    %c1 = arith.constant 1 : index
    %c192 = arith.constant 192 : index
    %26 = vector.load %arg12[%c1, %c192] : memref<16x576xf32, #tpu.memory_space<vmem>>, vector<3x64xf32>
    tpu.vector_store %arg12[%c1, %c192], %25 {strides = array<i32>} : memref<16x576xf32, #tpu.memory_space<vmem>>, vector<3x64xf32>,
    %c36 = arith.constant 36 : index
    %c0_26 = arith.constant 0 : index
    %27 = vector.load %arg11[%c36, %c0_26] : memref<64x64xf32, #tpu.memory_space<vmem>>, vector<3x64xf32>
    %c5_27 = arith.constant 5 : index
    %c192_28 = arith.constant 192 : index
    %28 = vector.load %arg12[%c5_27, %c192_28] : memref<16x576xf32, #tpu.memory_space<vmem>>, vector<3x64xf32>
    tpu.vector_store %arg12[%c5_27, %c192_28], %27 {strides = array<i32>} : memref<16x576xf32, #tpu.memory_space<vmem>>, vector<3x64xf32>,
    %c40 = arith.constant 40 : index
    %c0_29 = arith.constant 0 : index
    %29 = vector.load %arg11[%c40, %c0_29] : memref<64x64xf32, #tpu.memory_space<vmem>>, vector<3x64xf32>
    %c9_30 = arith.constant 9 : index
    %c192_31 = arith.constant 192 : index
    %30 = vector.load %arg12[%c9_30, %c192_31] : memref<16x576xf32, #tpu.memory_space<vmem>>, vector<3x64xf32>
    tpu.vector_store %arg12[%c9_30, %c192_31], %29 {strides = array<i32>} : memref<16x576xf32, #tpu.memory_space<vmem>>, vector<3x64xf32>,
    %c44 = arith.constant 44 : index
    %c0_32 = arith.constant 0 : index
    %31 = vector.load %arg11[%c44, %c0_32] : memref<64x64xf32, #tpu.memory_space<vmem>>, vector<3x64xf32>
    %c13_33 = arith.constant 13 : index
    %c192_34 = arith.constant 192 : index
    %32 = vector.load %arg12[%c13_33, %c192_34] : memref<16x576xf32, #tpu.memory_space<vmem>>, vector<3x64xf32>
    tpu.vector_store %arg12[%c13_33, %c192_34], %31 {strides = array<i32>} : memref<16x576xf32, #tpu.memory_space<vmem>>, vector<3x64xf32>,
    %c48 = arith.constant 48 : index
    %c0_35 = arith.constant 0 : index
    %33 = vector.load %arg11[%c48, %c0_35] : memref<64x64xf32, #tpu.memory_space<vmem>>, vector<16x64xf32>
    %c0_36 = arith.constant 0 : index
    %c256 = arith.constant 256 : index
    %34 = vector.load %arg12[%c0_36, %c256] : memref<16x576xf32, #tpu.memory_space<vmem>>, vector<16x64xf32>
    tpu.vector_store %arg12[%c0_36, %c256], %33 {strides = array<i32>} : memref<16x576xf32, #tpu.memory_space<vmem>>, vector<16x64xf32>,
    %c32_37 = arith.constant 32 : index
    %c0_38 = arith.constant 0 : index
    %35 = vector.load %arg11[%c32_37, %c0_38] : memref<64x64xf32, #tpu.memory_space<vmem>>, vector<16x64xf32>
    %c0_39 = arith.constant 0 : index
    %c320 = arith.constant 320 : index
    %36 = vector.load %arg12[%c0_39, %c320] : memref<16x576xf32, #tpu.memory_space<vmem>>, vector<16x64xf32>
    tpu.vector_store %arg12[%c0_39, %c320], %35 {strides = array<i32>} : memref<16x576xf32, #tpu.memory_space<vmem>>, vector<16x64xf32>,
    %c0_40 = arith.constant 0 : index
    %c0_41 = arith.constant 0 : index
    %37 = vector.load %arg11[%c0_40, %c0_41] : memref<64x64xf32, #tpu.memory_space<vmem>>, vector<3x64xf32>
    %c1_42 = arith.constant 1 : index
    %c384 = arith.constant 384 : index
    %38 = vector.load %arg12[%c1_42, %c384] : memref<16x576xf32, #tpu.memory_space<vmem>>, vector<3x64xf32>
    tpu.vector_store %arg12[%c1_42, %c384], %37 {strides = array<i32>} : memref<16x576xf32, #tpu.memory_space<vmem>>, vector<3x64xf32>,
    %c4_43 = arith.constant 4 : index
    %c0_44 = arith.constant 0 : index
    %39 = vector.load %arg11[%c4_43, %c0_44] : memref<64x64xf32, #tpu.memory_space<vmem>>, vector<3x64xf32>
    %c5_45 = arith.constant 5 : index
    %c384_46 = arith.constant 384 : index
    %40 = vector.load %arg12[%c5_45, %c384_46] : memref<16x576xf32, #tpu.memory_space<vmem>>, vector<3x64xf32>
    tpu.vector_store %arg12[%c5_45, %c384_46], %39 {strides = array<i32>} : memref<16x576xf32, #tpu.memory_space<vmem>>, vector<3x64xf32>,
    %c8_47 = arith.constant 8 : index
    %c0_48 = arith.constant 0 : index
    %41 = vector.load %arg11[%c8_47, %c0_48] : memref<64x64xf32, #tpu.memory_space<vmem>>, vector<3x64xf32>
    %c9_49 = arith.constant 9 : index
    %c384_50 = arith.constant 384 : index
    %42 = vector.load %arg12[%c9_49, %c384_50] : memref<16x576xf32, #tpu.memory_space<vmem>>, vector<3x64xf32>
    tpu.vector_store %arg12[%c9_49, %c384_50], %41 {strides = array<i32>} : memref<16x576xf32, #tpu.memory_space<vmem>>, vector<3x64xf32>,
    %c12 = arith.constant 12 : index
    %c0_51 = arith.constant 0 : index
    %43 = vector.load %arg11[%c12, %c0_51] : memref<64x64xf32, #tpu.memory_space<vmem>>, vector<3x64xf32>
    %c13_52 = arith.constant 13 : index
    %c384_53 = arith.constant 384 : index
    %44 = vector.load %arg12[%c13_52, %c384_53] : memref<16x576xf32, #tpu.memory_space<vmem>>, vector<3x64xf32>
    tpu.vector_store %arg12[%c13_52, %c384_53], %43 {strides = array<i32>} : memref<16x576xf32, #tpu.memory_space<vmem>>, vector<3x64xf32>,
    %c16_54 = arith.constant 16 : index
    %c0_55 = arith.constant 0 : index
    %45 = vector.load %arg11[%c16_54, %c0_55] : memref<64x64xf32, #tpu.memory_space<vmem>>, vector<16x64xf32>
    %c0_56 = arith.constant 0 : index
    %c448 = arith.constant 448 : index
    %46 = vector.load %arg12[%c0_56, %c448] : memref<16x576xf32, #tpu.memory_space<vmem>>, vector<16x64xf32>
    tpu.vector_store %arg12[%c0_56, %c448], %45 {strides = array<i32>} : memref<16x576xf32, #tpu.memory_space<vmem>>, vector<16x64xf32>,
    %c0_57 = arith.constant 0 : index
    %c0_58 = arith.constant 0 : index
    %47 = vector.load %arg11[%c0_57, %c0_58] : memref<64x64xf32, #tpu.memory_space<vmem>>, vector<16x64xf32>
    %c0_59 = arith.constant 0 : index
    %c512 = arith.constant 512 : index
    %48 = vector.load %arg12[%c0_59, %c512] : memref<16x576xf32, #tpu.memory_space<vmem>>, vector<16x64xf32>
    tpu.vector_store %arg12[%c0_59, %c512], %47 {strides = array<i32>} : memref<16x576xf32, #tpu.memory_space<vmem>>, vector<16x64xf32>,
    %c0_60 = arith.constant 0 : index
    %c0_61 = arith.constant 0 : index
    %49 = vector.load %arg12[%c0_60, %c0_61] : memref<16x576xf32, #tpu.memory_space<vmem>>, vector<16x576xf32>
    %50 = arith.truncf %49 : vector<16x576xf32> to vector<16x576xbf16>
    %c0_62 = arith.constant 0 : index
    %c0_63 = arith.constant 0 : index
    %51 = vector.load %arg4[%c0_62, %c0_63] : memref<576x128xbf16, #tpu.memory_space<vmem>>, vector<576x128xbf16>
    %cst_64 = arith.constant dense<0.000000e+00> : vector<16x128xf32>
    %52 = tpu.matmul %50, %51, %cst_64 {dimension_numbers = #tpu.dot_dimension_numbers<[1], [0], [0], [1], [0, 0, 1, 1], [], []>} : vector<16x576xbf16>, vector<576x128xbf16>, vector<16x128xf32> -> vector<16x128xf32>
    %c0_65 = arith.constant 0 : index
    %c0_66 = arith.constant 0 : index
    %53 = vector.load %arg5[%c0_65, %c0_66] : memref<1x128xf32, #tpu.memory_space<vmem>>, vector<1x128xf32>
    %54 = vector.broadcast %53 : vector<1x128xf32> to vector<16x128xf32>
    %55 = arith.addf %52, %54 : vector<16x128xf32>
    %cst_67 = arith.constant 0.000000e+00 : f32
    %56 = vector.broadcast %cst_67 : f32 to vector<16x128xf32>
    %57 = arith.cmpf oge, %55, %56 : vector<16x128xf32>
    %cst_68 = arith.constant 0.00999999977 : f32
    %58 = vector.broadcast %cst_68 : f32 to vector<16x128xf32>
    %59 = arith.mulf %58, %55 : vector<16x128xf32>
    %60 = arith.select %57, %55, %59 : vector<16x128xi1>, vector<16x128xf32>
    %c0_69 = arith.constant 0 : index
    %c0_70 = arith.constant 0 : index
    %61 = vector.load %arg13[%c0_69, %c0_70] : memref<16x128xf32, #tpu.memory_space<vmem>>, vector<16x128xf32>
    tpu.vector_store %arg13[%c0_69, %c0_70], %60 {strides = array<i32>} : memref<16x128xf32, #tpu.memory_space<vmem>>, vector<16x128xf32>,
    %cst_71 = arith.constant 0.000000e+00 : f32
    %62 = vector.broadcast %cst_71 : f32 to vector<16x1152xf32>
    %c0_72 = arith.constant 0 : index
    %c0_73 = arith.constant 0 : index
    %63 = vector.load %arg14[%c0_72, %c0_73] : memref<16x1152xf32, #tpu.memory_space<vmem>>, vector<16x1152xf32>
    tpu.vector_store %arg14[%c0_72, %c0_73], %62 {strides = array<i32>} : memref<16x1152xf32, #tpu.memory_space<vmem>>, vector<16x1152xf32>,
    %c0_74 = arith.constant 0 : index
    %c0_75 = arith.constant 0 : index
    %64 = vector.load %arg13[%c0_74, %c0_75] : memref<16x128xf32, #tpu.memory_space<vmem>>, vector<3x128xf32>
    %c5_76 = arith.constant 5 : index
    %c0_77 = arith.constant 0 : index
    %65 = vector.load %arg14[%c5_76, %c0_77] : memref<16x1152xf32, #tpu.memory_space<vmem>>, vector<3x128xf32>
    tpu.vector_store %arg14[%c5_76, %c0_77], %64 {strides = array<i32>} : memref<16x1152xf32, #tpu.memory_space<vmem>>, vector<3x128xf32>,
    %c4_78 = arith.constant 4 : index
    %c0_79 = arith.constant 0 : index
    %66 = vector.load %arg13[%c4_78, %c0_79] : memref<16x128xf32, #tpu.memory_space<vmem>>, vector<3x128xf32>
    %c9_80 = arith.constant 9 : index
    %c0_81 = arith.constant 0 : index
    %67 = vector.load %arg14[%c9_80, %c0_81] : memref<16x1152xf32, #tpu.memory_space<vmem>>, vector<3x128xf32>
    tpu.vector_store %arg14[%c9_80, %c0_81], %66 {strides = array<i32>} : memref<16x1152xf32, #tpu.memory_space<vmem>>, vector<3x128xf32>,
    %c8_82 = arith.constant 8 : index
    %c0_83 = arith.constant 0 : index
    %68 = vector.load %arg13[%c8_82, %c0_83] : memref<16x128xf32, #tpu.memory_space<vmem>>, vector<3x128xf32>
    %c13_84 = arith.constant 13 : index
    %c0_85 = arith.constant 0 : index
    %69 = vector.load %arg14[%c13_84, %c0_85] : memref<16x1152xf32, #tpu.memory_space<vmem>>, vector<3x128xf32>
    tpu.vector_store %arg14[%c13_84, %c0_85], %68 {strides = array<i32>} : memref<16x1152xf32, #tpu.memory_space<vmem>>, vector<3x128xf32>,
    %c0_86 = arith.constant 0 : index
    %c0_87 = arith.constant 0 : index
    %70 = vector.load %arg13[%c0_86, %c0_87] : memref<16x128xf32, #tpu.memory_space<vmem>>, vector<12x128xf32>
    %c4_88 = arith.constant 4 : index
    %c128_89 = arith.constant 128 : index
    %71 = vector.load %arg14[%c4_88, %c128_89] : memref<16x1152xf32, #tpu.memory_space<vmem>>, vector<12x128xf32>
    tpu.vector_store %arg14[%c4_88, %c128_89], %70 {strides = array<i32>} : memref<16x1152xf32, #tpu.memory_space<vmem>>, vector<12x128xf32>,
    %c1_90 = arith.constant 1 : index
    %c0_91 = arith.constant 0 : index
    %72 = vector.load %arg13[%c1_90, %c0_91] : memref<16x128xf32, #tpu.memory_space<vmem>>, vector<3x128xf32>
    %c4_92 = arith.constant 4 : index
    %c256_93 = arith.constant 256 : index
    %73 = vector.load %arg14[%c4_92, %c256_93] : memref<16x1152xf32, #tpu.memory_space<vmem>>, vector<3x128xf32>
    tpu.vector_store %arg14[%c4_92, %c256_93], %72 {strides = array<i32>} : memref<16x1152xf32, #tpu.memory_space<vmem>>, vector<3x128xf32>,
    %c5_94 = arith.constant 5 : index
    %c0_95 = arith.constant 0 : index
    %74 = vector.load %arg13[%c5_94, %c0_95] : memref<16x128xf32, #tpu.memory_space<vmem>>, vector<3x128xf32>
    %c8_96 = arith.constant 8 : index
    %c256_97 = arith.constant 256 : index
    %75 = vector.load %arg14[%c8_96, %c256_97] : memref<16x1152xf32, #tpu.memory_space<vmem>>, vector<3x128xf32>
    tpu.vector_store %arg14[%c8_96, %c256_97], %74 {strides = array<i32>} : memref<16x1152xf32, #tpu.memory_space<vmem>>, vector<3x128xf32>,
    %c9_98 = arith.constant 9 : index
    %c0_99 = arith.constant 0 : index
    %76 = vector.load %arg13[%c9_98, %c0_99] : memref<16x128xf32, #tpu.memory_space<vmem>>, vector<3x128xf32>
    %c12_100 = arith.constant 12 : index
    %c256_101 = arith.constant 256 : index
    %77 = vector.load %arg14[%c12_100, %c256_101] : memref<16x1152xf32, #tpu.memory_space<vmem>>, vector<3x128xf32>
    tpu.vector_store %arg14[%c12_100, %c256_101], %76 {strides = array<i32>} : memref<16x1152xf32, #tpu.memory_space<vmem>>, vector<3x128xf32>,
    %c0_102 = arith.constant 0 : index
    %c0_103 = arith.constant 0 : index
    %78 = vector.load %arg13[%c0_102, %c0_103] : memref<16x128xf32, #tpu.memory_space<vmem>>, vector<3x128xf32>
    %c1_104 = arith.constant 1 : index
    %c384_105 = arith.constant 384 : index
    %79 = vector.load %arg14[%c1_104, %c384_105] : memref<16x1152xf32, #tpu.memory_space<vmem>>, vector<3x128xf32>
    tpu.vector_store %arg14[%c1_104, %c384_105], %78 {strides = array<i32>} : memref<16x1152xf32, #tpu.memory_space<vmem>>, vector<3x128xf32>,
    %c4_106 = arith.constant 4 : index
    %c0_107 = arith.constant 0 : index
    %80 = vector.load %arg13[%c4_106, %c0_107] : memref<16x128xf32, #tpu.memory_space<vmem>>, vector<3x128xf32>
    %c5_108 = arith.constant 5 : index
    %c384_109 = arith.constant 384 : index
    %81 = vector.load %arg14[%c5_108, %c384_109] : memref<16x1152xf32, #tpu.memory_space<vmem>>, vector<3x128xf32>
    tpu.vector_store %arg14[%c5_108, %c384_109], %80 {strides = array<i32>} : memref<16x1152xf32, #tpu.memory_space<vmem>>, vector<3x128xf32>,
    %c8_110 = arith.constant 8 : index
    %c0_111 = arith.constant 0 : index
    %82 = vector.load %arg13[%c8_110, %c0_111] : memref<16x128xf32, #tpu.memory_space<vmem>>, vector<3x128xf32>
    %c9_112 = arith.constant 9 : index
    %c384_113 = arith.constant 384 : index
    %83 = vector.load %arg14[%c9_112, %c384_113] : memref<16x1152xf32, #tpu.memory_space<vmem>>, vector<3x128xf32>
    tpu.vector_store %arg14[%c9_112, %c384_113], %82 {strides = array<i32>} : memref<16x1152xf32, #tpu.memory_space<vmem>>, vector<3x128xf32>,
    %c12_114 = arith.constant 12 : index
    %c0_115 = arith.constant 0 : index
    %84 = vector.load %arg13[%c12_114, %c0_115] : memref<16x128xf32, #tpu.memory_space<vmem>>, vector<3x128xf32>
    %c13_116 = arith.constant 13 : index
    %c384_117 = arith.constant 384 : index
    %85 = vector.load %arg14[%c13_116, %c384_117] : memref<16x1152xf32, #tpu.memory_space<vmem>>, vector<3x128xf32>
    tpu.vector_store %arg14[%c13_116, %c384_117], %84 {strides = array<i32>} : memref<16x1152xf32, #tpu.memory_space<vmem>>, vector<3x128xf32>,
    %c0_118 = arith.constant 0 : index
    %c0_119 = arith.constant 0 : index
    %86 = vector.load %arg13[%c0_118, %c0_119] : memref<16x128xf32, #tpu.memory_space<vmem>>, vector<16x128xf32>
    %c0_120 = arith.constant 0 : index
    %c512_121 = arith.constant 512 : index
    %87 = vector.load %arg14[%c0_120, %c512_121] : memref<16x1152xf32, #tpu.memory_space<vmem>>, vector<16x128xf32>
    tpu.vector_store %arg14[%c0_120, %c512_121], %86 {strides = array<i32>} : memref<16x1152xf32, #tpu.memory_space<vmem>>, vector<16x128xf32>,
    %c1_122 = arith.constant 1 : index
    %c0_123 = arith.constant 0 : index
    %88 = vector.load %arg13[%c1_122, %c0_123] : memref<16x128xf32, #tpu.memory_space<vmem>>, vector<3x128xf32>
    %c0_124 = arith.constant 0 : index
    %c640 = arith.constant 640 : index
    %89 = vector.load %arg14[%c0_124, %c640] : memref<16x1152xf32, #tpu.memory_space<vmem>>, vector<3x128xf32>
    tpu.vector_store %arg14[%c0_124, %c640], %88 {strides = array<i32>} : memref<16x1152xf32, #tpu.memory_space<vmem>>, vector<3x128xf32>,
    %c5_125 = arith.constant 5 : index
    %c0_126 = arith.constant 0 : index
    %90 = vector.load %arg13[%c5_125, %c0_126] : memref<16x128xf32, #tpu.memory_space<vmem>>, vector<3x128xf32>
    %c4_127 = arith.constant 4 : index
    %c640_128 = arith.constant 640 : index
    %91 = vector.load %arg14[%c4_127, %c640_128] : memref<16x1152xf32, #tpu.memory_space<vmem>>, vector<3x128xf32>
    tpu.vector_store %arg14[%c4_127, %c640_128], %90 {strides = array<i32>} : memref<16x1152xf32, #tpu.memory_space<vmem>>, vector<3x128xf32>,
    %c9_129 = arith.constant 9 : index
    %c0_130 = arith.constant 0 : index
    %92 = vector.load %arg13[%c9_129, %c0_130] : memref<16x128xf32, #tpu.memory_space<vmem>>, vector<3x128xf32>
    %c8_131 = arith.constant 8 : index
    %c640_132 = arith.constant 640 : index
    %93 = vector.load %arg14[%c8_131, %c640_132] : memref<16x1152xf32, #tpu.memory_space<vmem>>, vector<3x128xf32>
    tpu.vector_store %arg14[%c8_131, %c640_132], %92 {strides = array<i32>} : memref<16x1152xf32, #tpu.memory_space<vmem>>, vector<3x128xf32>,
    %c13_133 = arith.constant 13 : index
    %c0_134 = arith.constant 0 : index
    %94 = vector.load %arg13[%c13_133, %c0_134] : memref<16x128xf32, #tpu.memory_space<vmem>>, vector<3x128xf32>
    %c12_135 = arith.constant 12 : index
    %c640_136 = arith.constant 640 : index
    %95 = vector.load %arg14[%c12_135, %c640_136] : memref<16x1152xf32, #tpu.memory_space<vmem>>, vector<3x128xf32>
    tpu.vector_store %arg14[%c12_135, %c640_136], %94 {strides = array<i32>} : memref<16x1152xf32, #tpu.memory_space<vmem>>, vector<3x128xf32>,
    %c4_137 = arith.constant 4 : index
    %c0_138 = arith.constant 0 : index
    %96 = vector.load %arg13[%c4_137, %c0_138] : memref<16x128xf32, #tpu.memory_space<vmem>>, vector<3x128xf32>
    %c1_139 = arith.constant 1 : index
    %c768 = arith.constant 768 : index
    %97 = vector.load %arg14[%c1_139, %c768] : memref<16x1152xf32, #tpu.memory_space<vmem>>, vector<3x128xf32>
    tpu.vector_store %arg14[%c1_139, %c768], %96 {strides = array<i32>} : memref<16x1152xf32, #tpu.memory_space<vmem>>, vector<3x128xf32>,
    %c8_140 = arith.constant 8 : index
    %c0_141 = arith.constant 0 : index
    %98 = vector.load %arg13[%c8_140, %c0_141] : memref<16x128xf32, #tpu.memory_space<vmem>>, vector<3x128xf32>
    %c5_142 = arith.constant 5 : index
    %c768_143 = arith.constant 768 : index
    %99 = vector.load %arg14[%c5_142, %c768_143] : memref<16x1152xf32, #tpu.memory_space<vmem>>, vector<3x128xf32>
    tpu.vector_store %arg14[%c5_142, %c768_143], %98 {strides = array<i32>} : memref<16x1152xf32, #tpu.memory_space<vmem>>, vector<3x128xf32>,
    %c12_144 = arith.constant 12 : index
    %c0_145 = arith.constant 0 : index
    %100 = vector.load %arg13[%c12_144, %c0_145] : memref<16x128xf32, #tpu.memory_space<vmem>>, vector<3x128xf32>
    %c9_146 = arith.constant 9 : index
    %c768_147 = arith.constant 768 : index
    %101 = vector.load %arg14[%c9_146, %c768_147] : memref<16x1152xf32, #tpu.memory_space<vmem>>, vector<3x128xf32>
    tpu.vector_store %arg14[%c9_146, %c768_147], %100 {strides = array<i32>} : memref<16x1152xf32, #tpu.memory_space<vmem>>, vector<3x128xf32>,
    %c4_148 = arith.constant 4 : index
    %c0_149 = arith.constant 0 : index
    %102 = vector.load %arg13[%c4_148, %c0_149] : memref<16x128xf32, #tpu.memory_space<vmem>>, vector<12x128xf32>
    %c0_150 = arith.constant 0 : index
    %c896 = arith.constant 896 : index
    %103 = vector.load %arg14[%c0_150, %c896] : memref<16x1152xf32, #tpu.memory_space<vmem>>, vector<12x128xf32>
    tpu.vector_store %arg14[%c0_150, %c896], %102 {strides = array<i32>} : memref<16x1152xf32, #tpu.memory_space<vmem>>, vector<12x128xf32>,
    %c5_151 = arith.constant 5 : index
    %c0_152 = arith.constant 0 : index
    %104 = vector.load %arg13[%c5_151, %c0_152] : memref<16x128xf32, #tpu.memory_space<vmem>>, vector<3x128xf32>
    %c0_153 = arith.constant 0 : index
    %c1024 = arith.constant 1024 : index
    %105 = vector.load %arg14[%c0_153, %c1024] : memref<16x1152xf32, #tpu.memory_space<vmem>>, vector<3x128xf32>
    tpu.vector_store %arg14[%c0_153, %c1024], %104 {strides = array<i32>} : memref<16x1152xf32, #tpu.memory_space<vmem>>, vector<3x128xf32>,
    %c9_154 = arith.constant 9 : index
    %c0_155 = arith.constant 0 : index
    %106 = vector.load %arg13[%c9_154, %c0_155] : memref<16x128xf32, #tpu.memory_space<vmem>>, vector<3x128xf32>
    %c4_156 = arith.constant 4 : index
    %c1024_157 = arith.constant 1024 : index
    %107 = vector.load %arg14[%c4_156, %c1024_157] : memref<16x1152xf32, #tpu.memory_space<vmem>>, vector<3x128xf32>
    tpu.vector_store %arg14[%c4_156, %c1024_157], %106 {strides = array<i32>} : memref<16x1152xf32, #tpu.memory_space<vmem>>, vector<3x128xf32>,
    %c13_158 = arith.constant 13 : index
    %c0_159 = arith.constant 0 : index
    %108 = vector.load %arg13[%c13_158, %c0_159] : memref<16x128xf32, #tpu.memory_space<vmem>>, vector<3x128xf32>
    %c8_160 = arith.constant 8 : index
    %c1024_161 = arith.constant 1024 : index
    %109 = vector.load %arg14[%c8_160, %c1024_161] : memref<16x1152xf32, #tpu.memory_space<vmem>>, vector<3x128xf32>
    tpu.vector_store %arg14[%c8_160, %c1024_161], %108 {strides = array<i32>} : memref<16x1152xf32, #tpu.memory_space<vmem>>, vector<3x128xf32>,
    %c0_162 = arith.constant 0 : index
    %c0_163 = arith.constant 0 : index
    %110 = vector.load %arg14[%c0_162, %c0_163] : memref<16x1152xf32, #tpu.memory_space<vmem>>, vector<16x1152xf32>
    %111 = arith.truncf %110 : vector<16x1152xf32> to vector<16x1152xbf16>
    %c0_164 = arith.constant 0 : index
    %c0_165 = arith.constant 0 : index
    %112 = vector.load %arg6[%c0_164, %c0_165] : memref<1152x256xbf16, #tpu.memory_space<vmem>>, vector<1152x256xbf16>
    %cst_166 = arith.constant dense<0.000000e+00> : vector<16x256xf32>
    %113 = tpu.matmul %111, %112, %cst_166 {dimension_numbers = #tpu.dot_dimension_numbers<[1], [0], [0], [1], [0, 0, 1, 1], [], []>} : vector<16x1152xbf16>, vector<1152x256xbf16>, vector<16x256xf32> -> vector<16x256xf32>
    %c0_167 = arith.constant 0 : index
    %c0_168 = arith.constant 0 : index
    %114 = vector.load %arg7[%c0_167, %c0_168] : memref<1x256xf32, #tpu.memory_space<vmem>>, vector<1x256xf32>
    %115 = vector.broadcast %114 : vector<1x256xf32> to vector<16x256xf32>
    %116 = arith.addf %113, %115 : vector<16x256xf32>
    %cst_169 = arith.constant 0.000000e+00 : f32
    %117 = vector.broadcast %cst_169 : f32 to vector<16x256xf32>
    %118 = arith.cmpf oge, %116, %117 : vector<16x256xf32>
    %cst_170 = arith.constant 0.00999999977 : f32
    %119 = vector.broadcast %cst_170 : f32 to vector<16x256xf32>
    %120 = arith.mulf %119, %116 : vector<16x256xf32>
    %121 = arith.select %118, %116, %120 : vector<16x256xi1>, vector<16x256xf32>
    %c0_171 = arith.constant 0 : index
    %c0_172 = arith.constant 0 : index
    %122 = vector.load %arg15[%c0_171, %c0_172] : memref<16x256xf32, #tpu.memory_space<vmem>>, vector<16x256xf32>
    tpu.vector_store %arg15[%c0_171, %c0_172], %121 {strides = array<i32>} : memref<16x256xf32, #tpu.memory_space<vmem>>, vector<16x256xf32>,
    %c0_173 = arith.constant 0 : index
    %c0_174 = arith.constant 0 : index
    %123 = vector.load %arg15[%c0_173, %c0_174] : memref<16x256xf32, #tpu.memory_space<vmem>>, vector<4x64xf32>
    %c0_175 = arith.constant 0 : index
    %c0_176 = arith.constant 0 : index
    %124 = vector.load %arg16[%c0_175, %c0_176] : memref<64x64xf32, #tpu.memory_space<vmem>>, vector<4x64xf32>
    tpu.vector_store %arg16[%c0_175, %c0_176], %123 {strides = array<i32>} : memref<64x64xf32, #tpu.memory_space<vmem>>, vector<4x64xf32>,
    %c4_177 = arith.constant 4 : index
    %c0_178 = arith.constant 0 : index
    %125 = vector.load %arg15[%c4_177, %c0_178] : memref<16x256xf32, #tpu.memory_space<vmem>>, vector<4x64xf32>
    %c16_179 = arith.constant 16 : index
    %c0_180 = arith.constant 0 : index
    %126 = vector.load %arg16[%c16_179, %c0_180] : memref<64x64xf32, #tpu.memory_space<vmem>>, vector<4x64xf32>
    tpu.vector_store %arg16[%c16_179, %c0_180], %125 {strides = array<i32>} : memref<64x64xf32, #tpu.memory_space<vmem>>, vector<4x64xf32>,
    %c8_181 = arith.constant 8 : index
    %c0_182 = arith.constant 0 : index
    %127 = vector.load %arg15[%c8_181, %c0_182] : memref<16x256xf32, #tpu.memory_space<vmem>>, vector<4x64xf32>
    %c32_183 = arith.constant 32 : index
    %c0_184 = arith.constant 0 : index
    %128 = vector.load %arg16[%c32_183, %c0_184] : memref<64x64xf32, #tpu.memory_space<vmem>>, vector<4x64xf32>
    tpu.vector_store %arg16[%c32_183, %c0_184], %127 {strides = array<i32>} : memref<64x64xf32, #tpu.memory_space<vmem>>, vector<4x64xf32>,
    %c12_185 = arith.constant 12 : index
    %c0_186 = arith.constant 0 : index
    %129 = vector.load %arg15[%c12_185, %c0_186] : memref<16x256xf32, #tpu.memory_space<vmem>>, vector<4x64xf32>
    %c48_187 = arith.constant 48 : index
    %c0_188 = arith.constant 0 : index
    %130 = vector.load %arg16[%c48_187, %c0_188] : memref<64x64xf32, #tpu.memory_space<vmem>>, vector<4x64xf32>
    tpu.vector_store %arg16[%c48_187, %c0_188], %129 {strides = array<i32>} : memref<64x64xf32, #tpu.memory_space<vmem>>, vector<4x64xf32>,
    %c0_189 = arith.constant 0 : index
    %c64_190 = arith.constant 64 : index
    %131 = vector.load %arg15[%c0_189, %c64_190] : memref<16x256xf32, #tpu.memory_space<vmem>>, vector<4x64xf32>
    %c4_191 = arith.constant 4 : index
    %c0_192 = arith.constant 0 : index
    %132 = vector.load %arg16[%c4_191, %c0_192] : memref<64x64xf32, #tpu.memory_space<vmem>>, vector<4x64xf32>
    tpu.vector_store %arg16[%c4_191, %c0_192], %131 {strides = array<i32>} : memref<64x64xf32, #tpu.memory_space<vmem>>, vector<4x64xf32>,
    %c4_193 = arith.constant 4 : index
    %c64_194 = arith.constant 64 : index
    %133 = vector.load %arg15[%c4_193, %c64_194] : memref<16x256xf32, #tpu.memory_space<vmem>>, vector<4x64xf32>
    %c20 = arith.constant 20 : index
    %c0_195 = arith.constant 0 : index
    %134 = vector.load %arg16[%c20, %c0_195] : memref<64x64xf32, #tpu.memory_space<vmem>>, vector<4x64xf32>
    tpu.vector_store %arg16[%c20, %c0_195], %133 {strides = array<i32>} : memref<64x64xf32, #tpu.memory_space<vmem>>, vector<4x64xf32>,
    %c8_196 = arith.constant 8 : index
    %c64_197 = arith.constant 64 : index
    %135 = vector.load %arg15[%c8_196, %c64_197] : memref<16x256xf32, #tpu.memory_space<vmem>>, vector<4x64xf32>
    %c36_198 = arith.constant 36 : index
    %c0_199 = arith.constant 0 : index
    %136 = vector.load %arg16[%c36_198, %c0_199] : memref<64x64xf32, #tpu.memory_space<vmem>>, vector<4x64xf32>
    tpu.vector_store %arg16[%c36_198, %c0_199], %135 {strides = array<i32>} : memref<64x64xf32, #tpu.memory_space<vmem>>, vector<4x64xf32>,
    %c12_200 = arith.constant 12 : index
    %c64_201 = arith.constant 64 : index
    %137 = vector.load %arg15[%c12_200, %c64_201] : memref<16x256xf32, #tpu.memory_space<vmem>>, vector<4x64xf32>
    %c52 = arith.constant 52 : index
    %c0_202 = arith.constant 0 : index
    %138 = vector.load %arg16[%c52, %c0_202] : memref<64x64xf32, #tpu.memory_space<vmem>>, vector<4x64xf32>
    tpu.vector_store %arg16[%c52, %c0_202], %137 {strides = array<i32>} : memref<64x64xf32, #tpu.memory_space<vmem>>, vector<4x64xf32>,
    %c0_203 = arith.constant 0 : index
    %c128_204 = arith.constant 128 : index
    %139 = vector.load %arg15[%c0_203, %c128_204] : memref<16x256xf32, #tpu.memory_space<vmem>>, vector<4x64xf32>
    %c8_205 = arith.constant 8 : index
    %c0_206 = arith.constant 0 : index
    %140 = vector.load %arg16[%c8_205, %c0_206] : memref<64x64xf32, #tpu.memory_space<vmem>>, vector<4x64xf32>
    tpu.vector_store %arg16[%c8_205, %c0_206], %139 {strides = array<i32>} : memref<64x64xf32, #tpu.memory_space<vmem>>, vector<4x64xf32>,
    %c4_207 = arith.constant 4 : index
    %c128_208 = arith.constant 128 : index
    %141 = vector.load %arg15[%c4_207, %c128_208] : memref<16x256xf32, #tpu.memory_space<vmem>>, vector<4x64xf32>
    %c24 = arith.constant 24 : index
    %c0_209 = arith.constant 0 : index
    %142 = vector.load %arg16[%c24, %c0_209] : memref<64x64xf32, #tpu.memory_space<vmem>>, vector<4x64xf32>
    tpu.vector_store %arg16[%c24, %c0_209], %141 {strides = array<i32>} : memref<64x64xf32, #tpu.memory_space<vmem>>, vector<4x64xf32>,
    %c8_210 = arith.constant 8 : index
    %c128_211 = arith.constant 128 : index
    %143 = vector.load %arg15[%c8_210, %c128_211] : memref<16x256xf32, #tpu.memory_space<vmem>>, vector<4x64xf32>
    %c40_212 = arith.constant 40 : index
    %c0_213 = arith.constant 0 : index
    %144 = vector.load %arg16[%c40_212, %c0_213] : memref<64x64xf32, #tpu.memory_space<vmem>>, vector<4x64xf32>
    tpu.vector_store %arg16[%c40_212, %c0_213], %143 {strides = array<i32>} : memref<64x64xf32, #tpu.memory_space<vmem>>, vector<4x64xf32>,
    %c12_214 = arith.constant 12 : index
    %c128_215 = arith.constant 128 : index
    %145 = vector.load %arg15[%c12_214, %c128_215] : memref<16x256xf32, #tpu.memory_space<vmem>>, vector<4x64xf32>
    %c56 = arith.constant 56 : index
    %c0_216 = arith.constant 0 : index
    %146 = vector.load %arg16[%c56, %c0_216] : memref<64x64xf32, #tpu.memory_space<vmem>>, vector<4x64xf32>
    tpu.vector_store %arg16[%c56, %c0_216], %145 {strides = array<i32>} : memref<64x64xf32, #tpu.memory_space<vmem>>, vector<4x64xf32>,
    %c0_217 = arith.constant 0 : index
    %c192_218 = arith.constant 192 : index
    %147 = vector.load %arg15[%c0_217, %c192_218] : memref<16x256xf32, #tpu.memory_space<vmem>>, vector<4x64xf32>
    %c12_219 = arith.constant 12 : index
    %c0_220 = arith.constant 0 : index
    %148 = vector.load %arg16[%c12_219, %c0_220] : memref<64x64xf32, #tpu.memory_space<vmem>>, vector<4x64xf32>
    tpu.vector_store %arg16[%c12_219, %c0_220], %147 {strides = array<i32>} : memref<64x64xf32, #tpu.memory_space<vmem>>, vector<4x64xf32>,
    %c4_221 = arith.constant 4 : index
    %c192_222 = arith.constant 192 : index
    %149 = vector.load %arg15[%c4_221, %c192_222] : memref<16x256xf32, #tpu.memory_space<vmem>>, vector<4x64xf32>
    %c28 = arith.constant 28 : index
    %c0_223 = arith.constant 0 : index
    %150 = vector.load %arg16[%c28, %c0_223] : memref<64x64xf32, #tpu.memory_space<vmem>>, vector<4x64xf32>
    tpu.vector_store %arg16[%c28, %c0_223], %149 {strides = array<i32>} : memref<64x64xf32, #tpu.memory_space<vmem>>, vector<4x64xf32>,
    %c8_224 = arith.constant 8 : index
    %c192_225 = arith.constant 192 : index
    %151 = vector.load %arg15[%c8_224, %c192_225] : memref<16x256xf32, #tpu.memory_space<vmem>>, vector<4x64xf32>
    %c44_226 = arith.constant 44 : index
    %c0_227 = arith.constant 0 : index
    %152 = vector.load %arg16[%c44_226, %c0_227] : memref<64x64xf32, #tpu.memory_space<vmem>>, vector<4x64xf32>
    tpu.vector_store %arg16[%c44_226, %c0_227], %151 {strides = array<i32>} : memref<64x64xf32, #tpu.memory_space<vmem>>, vector<4x64xf32>,
    %c12_228 = arith.constant 12 : index
    %c192_229 = arith.constant 192 : index
    %153 = vector.load %arg15[%c12_228, %c192_229] : memref<16x256xf32, #tpu.memory_space<vmem>>, vector<4x64xf32>
    %c60 = arith.constant 60 : index
    %c0_230 = arith.constant 0 : index
    %154 = vector.load %arg16[%c60, %c0_230] : memref<64x64xf32, #tpu.memory_space<vmem>>, vector<4x64xf32>
    tpu.vector_store %arg16[%c60, %c0_230], %153 {strides = array<i32>} : memref<64x64xf32, #tpu.memory_space<vmem>>, vector<4x64xf32>,
    %cst_231 = arith.constant 0.000000e+00 : f32
    %155 = vector.broadcast %cst_231 : f32 to vector<64x576xf32>
    %c0_232 = arith.constant 0 : index
    %c0_233 = arith.constant 0 : index
    %156 = vector.load %arg17[%c0_232, %c0_233] : memref<64x576xf32, #tpu.memory_space<vmem>>, vector<64x576xf32>
    tpu.vector_store %arg17[%c0_232, %c0_233], %155 {strides = array<i32>} : memref<64x576xf32, #tpu.memory_space<vmem>>, vector<64x576xf32>,
    %c4_234 = arith.constant 4 : index
    %c0_235 = arith.constant 0 : index
    %157 = vector.load %arg16[%c4_234, %c0_235] : memref<64x64xf32, #tpu.memory_space<vmem>>, vector<3x64xf32>
    %c9_236 = arith.constant 9 : index
    %c0_237 = arith.constant 0 : index
    %158 = vector.load %arg17[%c9_236, %c0_237] : memref<64x576xf32, #tpu.memory_space<vmem>>, vector<3x64xf32>
    tpu.vector_store %arg17[%c9_236, %c0_237], %157 {strides = array<i32>} : memref<64x576xf32, #tpu.memory_space<vmem>>, vector<3x64xf32>,
    %c0_238 = arith.constant 0 : index
    %c0_239 = arith.constant 0 : index
    %159 = vector.load %arg16[%c0_238, %c0_239] : memref<64x64xf32, #tpu.memory_space<vmem>>, vector<4x64xf32>
    %c12_240 = arith.constant 12 : index
    %c0_241 = arith.constant 0 : index
    %160 = vector.load %arg17[%c12_240, %c0_241] : memref<64x576xf32, #tpu.memory_space<vmem>>, vector<4x64xf32>
    tpu.vector_store %arg17[%c12_240, %c0_241], %159 {strides = array<i32>} : memref<64x576xf32, #tpu.memory_space<vmem>>, vector<4x64xf32>,
    %c12_242 = arith.constant 12 : index
    %c0_243 = arith.constant 0 : index
    %161 = vector.load %arg16[%c12_242, %c0_243] : memref<64x64xf32, #tpu.memory_space<vmem>>, vector<3x64xf32>
    %c17 = arith.constant 17 : index
    %c0_244 = arith.constant 0 : index
    %162 = vector.load %arg17[%c17, %c0_244] : memref<64x576xf32, #tpu.memory_space<vmem>>, vector<3x64xf32>
    tpu.vector_store %arg17[%c17, %c0_244], %161 {strides = array<i32>} : memref<64x576xf32, #tpu.memory_space<vmem>>, vector<3x64xf32>,
    %c8_245 = arith.constant 8 : index
    %c0_246 = arith.constant 0 : index
    %163 = vector.load %arg16[%c8_245, %c0_246] : memref<64x64xf32, #tpu.memory_space<vmem>>, vector<4x64xf32>
    %c20_247 = arith.constant 20 : index
    %c0_248 = arith.constant 0 : index
    %164 = vector.load %arg17[%c20_247, %c0_248] : memref<64x576xf32, #tpu.memory_space<vmem>>, vector<4x64xf32>
    tpu.vector_store %arg17[%c20_247, %c0_248], %163 {strides = array<i32>} : memref<64x576xf32, #tpu.memory_space<vmem>>, vector<4x64xf32>,
    %c20_249 = arith.constant 20 : index
    %c0_250 = arith.constant 0 : index
    %165 = vector.load %arg16[%c20_249, %c0_250] : memref<64x64xf32, #tpu.memory_space<vmem>>, vector<3x64xf32>
    %c25 = arith.constant 25 : index
    %c0_251 = arith.constant 0 : index
    %166 = vector.load %arg17[%c25, %c0_251] : memref<64x576xf32, #tpu.memory_space<vmem>>, vector<3x64xf32>
    tpu.vector_store %arg17[%c25, %c0_251], %165 {strides = array<i32>} : memref<64x576xf32, #tpu.memory_space<vmem>>, vector<3x64xf32>,
    %c16_252 = arith.constant 16 : index
    %c0_253 = arith.constant 0 : index
    %167 = vector.load %arg16[%c16_252, %c0_253] : memref<64x64xf32, #tpu.memory_space<vmem>>, vector<4x64xf32>
    %c28_254 = arith.constant 28 : index
    %c0_255 = arith.constant 0 : index
    %168 = vector.load %arg17[%c28_254, %c0_255] : memref<64x576xf32, #tpu.memory_space<vmem>>, vector<4x64xf32>
    tpu.vector_store %arg17[%c28_254, %c0_255], %167 {strides = array<i32>} : memref<64x576xf32, #tpu.memory_space<vmem>>, vector<4x64xf32>,
    %c28_256 = arith.constant 28 : index
    %c0_257 = arith.constant 0 : index
    %169 = vector.load %arg16[%c28_256, %c0_257] : memref<64x64xf32, #tpu.memory_space<vmem>>, vector<3x64xf32>
    %c33 = arith.constant 33 : index
    %c0_258 = arith.constant 0 : index
    %170 = vector.load %arg17[%c33, %c0_258] : memref<64x576xf32, #tpu.memory_space<vmem>>, vector<3x64xf32>
    tpu.vector_store %arg17[%c33, %c0_258], %169 {strides = array<i32>} : memref<64x576xf32, #tpu.memory_space<vmem>>, vector<3x64xf32>,
    %c24_259 = arith.constant 24 : index
    %c0_260 = arith.constant 0 : index
    %171 = vector.load %arg16[%c24_259, %c0_260] : memref<64x64xf32, #tpu.memory_space<vmem>>, vector<4x64xf32>
    %c36_261 = arith.constant 36 : index
    %c0_262 = arith.constant 0 : index
    %172 = vector.load %arg17[%c36_261, %c0_262] : memref<64x576xf32, #tpu.memory_space<vmem>>, vector<4x64xf32>
    tpu.vector_store %arg17[%c36_261, %c0_262], %171 {strides = array<i32>} : memref<64x576xf32, #tpu.memory_space<vmem>>, vector<4x64xf32>,
    %c36_263 = arith.constant 36 : index
    %c0_264 = arith.constant 0 : index
    %173 = vector.load %arg16[%c36_263, %c0_264] : memref<64x64xf32, #tpu.memory_space<vmem>>, vector<3x64xf32>
    %c41 = arith.constant 41 : index
    %c0_265 = arith.constant 0 : index
    %174 = vector.load %arg17[%c41, %c0_265] : memref<64x576xf32, #tpu.memory_space<vmem>>, vector<3x64xf32>
    tpu.vector_store %arg17[%c41, %c0_265], %173 {strides = array<i32>} : memref<64x576xf32, #tpu.memory_space<vmem>>, vector<3x64xf32>,
    %c32_266 = arith.constant 32 : index
    %c0_267 = arith.constant 0 : index
    %175 = vector.load %arg16[%c32_266, %c0_267] : memref<64x64xf32, #tpu.memory_space<vmem>>, vector<4x64xf32>
    %c44_268 = arith.constant 44 : index
    %c0_269 = arith.constant 0 : index
    %176 = vector.load %arg17[%c44_268, %c0_269] : memref<64x576xf32, #tpu.memory_space<vmem>>, vector<4x64xf32>
    tpu.vector_store %arg17[%c44_268, %c0_269], %175 {strides = array<i32>} : memref<64x576xf32, #tpu.memory_space<vmem>>, vector<4x64xf32>,
    %c44_270 = arith.constant 44 : index
    %c0_271 = arith.constant 0 : index
    %177 = vector.load %arg16[%c44_270, %c0_271] : memref<64x64xf32, #tpu.memory_space<vmem>>, vector<3x64xf32>
    %c49 = arith.constant 49 : index
    %c0_272 = arith.constant 0 : index
    %178 = vector.load %arg17[%c49, %c0_272] : memref<64x576xf32, #tpu.memory_space<vmem>>, vector<3x64xf32>
    tpu.vector_store %arg17[%c49, %c0_272], %177 {strides = array<i32>} : memref<64x576xf32, #tpu.memory_space<vmem>>, vector<3x64xf32>,
    %c40_273 = arith.constant 40 : index
    %c0_274 = arith.constant 0 : index
    %179 = vector.load %arg16[%c40_273, %c0_274] : memref<64x64xf32, #tpu.memory_space<vmem>>, vector<4x64xf32>
    %c52_275 = arith.constant 52 : index
    %c0_276 = arith.constant 0 : index
    %180 = vector.load %arg17[%c52_275, %c0_276] : memref<64x576xf32, #tpu.memory_space<vmem>>, vector<4x64xf32>
    tpu.vector_store %arg17[%c52_275, %c0_276], %179 {strides = array<i32>} : memref<64x576xf32, #tpu.memory_space<vmem>>, vector<4x64xf32>,
    %c52_277 = arith.constant 52 : index
    %c0_278 = arith.constant 0 : index
    %181 = vector.load %arg16[%c52_277, %c0_278] : memref<64x64xf32, #tpu.memory_space<vmem>>, vector<3x64xf32>
    %c57 = arith.constant 57 : index
    %c0_279 = arith.constant 0 : index
    %182 = vector.load %arg17[%c57, %c0_279] : memref<64x576xf32, #tpu.memory_space<vmem>>, vector<3x64xf32>
    tpu.vector_store %arg17[%c57, %c0_279], %181 {strides = array<i32>} : memref<64x576xf32, #tpu.memory_space<vmem>>, vector<3x64xf32>,
    %c48_280 = arith.constant 48 : index
    %c0_281 = arith.constant 0 : index
    %183 = vector.load %arg16[%c48_280, %c0_281] : memref<64x64xf32, #tpu.memory_space<vmem>>, vector<4x64xf32>
    %c60_282 = arith.constant 60 : index
    %c0_283 = arith.constant 0 : index
    %184 = vector.load %arg17[%c60_282, %c0_283] : memref<64x576xf32, #tpu.memory_space<vmem>>, vector<4x64xf32>
    tpu.vector_store %arg17[%c60_282, %c0_283], %183 {strides = array<i32>} : memref<64x576xf32, #tpu.memory_space<vmem>>, vector<4x64xf32>,
    %c0_284 = arith.constant 0 : index
    %c0_285 = arith.constant 0 : index
    %185 = vector.load %arg16[%c0_284, %c0_285] : memref<64x64xf32, #tpu.memory_space<vmem>>, vector<56x64xf32>
    %c8_286 = arith.constant 8 : index
    %c64_287 = arith.constant 64 : index
    %186 = vector.load %arg17[%c8_286, %c64_287] : memref<64x576xf32, #tpu.memory_space<vmem>>, vector<56x64xf32>
    tpu.vector_store %arg17[%c8_286, %c64_287], %185 {strides = array<i32>} : memref<64x576xf32, #tpu.memory_space<vmem>>, vector<56x64xf32>,
    %c4_288 = arith.constant 4 : index
    %c0_289 = arith.constant 0 : index
    %187 = vector.load %arg16[%c4_288, %c0_289] : memref<64x64xf32, #tpu.memory_space<vmem>>, vector<4x64xf32>
    %c8_290 = arith.constant 8 : index
    %c128_291 = arith.constant 128 : index
    %188 = vector.load %arg17[%c8_290, %c128_291] : memref<64x576xf32, #tpu.memory_space<vmem>>, vector<4x64xf32>
    tpu.vector_store %arg17[%c8_290, %c128_291], %187 {strides = array<i32>} : memref<64x576xf32, #tpu.memory_space<vmem>>, vector<4x64xf32>,
    %c1_292 = arith.constant 1 : index
    %c0_293 = arith.constant 0 : index
    %189 = vector.load %arg16[%c1_292, %c0_293] : memref<64x64xf32, #tpu.memory_space<vmem>>, vector<3x64xf32>
    %c12_294 = arith.constant 12 : index
    %c128_295 = arith.constant 128 : index
    %190 = vector.load %arg17[%c12_294, %c128_295] : memref<64x576xf32, #tpu.memory_space<vmem>>, vector<3x64xf32>
    tpu.vector_store %arg17[%c12_294, %c128_295], %189 {strides = array<i32>} : memref<64x576xf32, #tpu.memory_space<vmem>>, vector<3x64xf32>,
    %c12_296 = arith.constant 12 : index
    %c0_297 = arith.constant 0 : index
    %191 = vector.load %arg16[%c12_296, %c0_297] : memref<64x64xf32, #tpu.memory_space<vmem>>, vector<4x64xf32>
    %c16_298 = arith.constant 16 : index
    %c128_299 = arith.constant 128 : index
    %192 = vector.load %arg17[%c16_298, %c128_299] : memref<64x576xf32, #tpu.memory_space<vmem>>, vector<4x64xf32>
    tpu.vector_store %arg17[%c16_298, %c128_299], %191 {strides = array<i32>} : memref<64x576xf32, #tpu.memory_space<vmem>>, vector<4x64xf32>,
    %c9_300 = arith.constant 9 : index
    %c0_301 = arith.constant 0 : index
    %193 = vector.load %arg16[%c9_300, %c0_301] : memref<64x64xf32, #tpu.memory_space<vmem>>, vector<3x64xf32>
    %c20_302 = arith.constant 20 : index
    %c128_303 = arith.constant 128 : index
    %194 = vector.load %arg17[%c20_302, %c128_303] : memref<64x576xf32, #tpu.memory_space<vmem>>, vector<3x64xf32>
    tpu.vector_store %arg17[%c20_302, %c128_303], %193 {strides = array<i32>} : memref<64x576xf32, #tpu.memory_space<vmem>>, vector<3x64xf32>,
    %c20_304 = arith.constant 20 : index
    %c0_305 = arith.constant 0 : index
    %195 = vector.load %arg16[%c20_304, %c0_305] : memref<64x64xf32, #tpu.memory_space<vmem>>, vector<4x64xf32>
    %c24_306 = arith.constant 24 : index
    %c128_307 = arith.constant 128 : index
    %196 = vector.load %arg17[%c24_306, %c128_307] : memref<64x576xf32, #tpu.memory_space<vmem>>, vector<4x64xf32>
    tpu.vector_store %arg17[%c24_306, %c128_307], %195 {strides = array<i32>} : memref<64x576xf32, #tpu.memory_space<vmem>>, vector<4x64xf32>,
    %c17_308 = arith.constant 17 : index
    %c0_309 = arith.constant 0 : index
    %197 = vector.load %arg16[%c17_308, %c0_309] : memref<64x64xf32, #tpu.memory_space<vmem>>, vector<3x64xf32>
    %c28_310 = arith.constant 28 : index
    %c128_311 = arith.constant 128 : index
    %198 = vector.load %arg17[%c28_310, %c128_311] : memref<64x576xf32, #tpu.memory_space<vmem>>, vector<3x64xf32>
    tpu.vector_store %arg17[%c28_310, %c128_311], %197 {strides = array<i32>} : memref<64x576xf32, #tpu.memory_space<vmem>>, vector<3x64xf32>,
    %c28_312 = arith.constant 28 : index
    %c0_313 = arith.constant 0 : index
    %199 = vector.load %arg16[%c28_312, %c0_313] : memref<64x64xf32, #tpu.memory_space<vmem>>, vector<4x64xf32>
    %c32_314 = arith.constant 32 : index
    %c128_315 = arith.constant 128 : index
    %200 = vector.load %arg17[%c32_314, %c128_315] : memref<64x576xf32, #tpu.memory_space<vmem>>, vector<4x64xf32>
    tpu.vector_store %arg17[%c32_314, %c128_315], %199 {strides = array<i32>} : memref<64x576xf32, #tpu.memory_space<vmem>>, vector<4x64xf32>,
    %c25_316 = arith.constant 25 : index
    %c0_317 = arith.constant 0 : index
    %201 = vector.load %arg16[%c25_316, %c0_317] : memref<64x64xf32, #tpu.memory_space<vmem>>, vector<3x64xf32>
    %c36_318 = arith.constant 36 : index
    %c128_319 = arith.constant 128 : index
    %202 = vector.load %arg17[%c36_318, %c128_319] : memref<64x576xf32, #tpu.memory_space<vmem>>, vector<3x64xf32>
    tpu.vector_store %arg17[%c36_318, %c128_319], %201 {strides = array<i32>} : memref<64x576xf32, #tpu.memory_space<vmem>>, vector<3x64xf32>,
    %c36_320 = arith.constant 36 : index
    %c0_321 = arith.constant 0 : index
    %203 = vector.load %arg16[%c36_320, %c0_321] : memref<64x64xf32, #tpu.memory_space<vmem>>, vector<4x64xf32>
    %c40_322 = arith.constant 40 : index
    %c128_323 = arith.constant 128 : index
    %204 = vector.load %arg17[%c40_322, %c128_323] : memref<64x576xf32, #tpu.memory_space<vmem>>, vector<4x64xf32>
    tpu.vector_store %arg17[%c40_322, %c128_323], %203 {strides = array<i32>} : memref<64x576xf32, #tpu.memory_space<vmem>>, vector<4x64xf32>,
    %c33_324 = arith.constant 33 : index
    %c0_325 = arith.constant 0 : index
    %205 = vector.load %arg16[%c33_324, %c0_325] : memref<64x64xf32, #tpu.memory_space<vmem>>, vector<3x64xf32>
    %c44_326 = arith.constant 44 : index
    %c128_327 = arith.constant 128 : index
    %206 = vector.load %arg17[%c44_326, %c128_327] : memref<64x576xf32, #tpu.memory_space<vmem>>, vector<3x64xf32>
    tpu.vector_store %arg17[%c44_326, %c128_327], %205 {strides = array<i32>} : memref<64x576xf32, #tpu.memory_space<vmem>>, vector<3x64xf32>,
    %c44_328 = arith.constant 44 : index
    %c0_329 = arith.constant 0 : index
    %207 = vector.load %arg16[%c44_328, %c0_329] : memref<64x64xf32, #tpu.memory_space<vmem>>, vector<4x64xf32>
    %c48_330 = arith.constant 48 : index
    %c128_331 = arith.constant 128 : index
    %208 = vector.load %arg17[%c48_330, %c128_331] : memref<64x576xf32, #tpu.memory_space<vmem>>, vector<4x64xf32>
    tpu.vector_store %arg17[%c48_330, %c128_331], %207 {strides = array<i32>} : memref<64x576xf32, #tpu.memory_space<vmem>>, vector<4x64xf32>,
    %c41_332 = arith.constant 41 : index
    %c0_333 = arith.constant 0 : index
    %209 = vector.load %arg16[%c41_332, %c0_333] : memref<64x64xf32, #tpu.memory_space<vmem>>, vector<3x64xf32>
    %c52_334 = arith.constant 52 : index
    %c128_335 = arith.constant 128 : index
    %210 = vector.load %arg17[%c52_334, %c128_335] : memref<64x576xf32, #tpu.memory_space<vmem>>, vector<3x64xf32>
    tpu.vector_store %arg17[%c52_334, %c128_335], %209 {strides = array<i32>} : memref<64x576xf32, #tpu.memory_space<vmem>>, vector<3x64xf32>,
    %c52_336 = arith.constant 52 : index
    %c0_337 = arith.constant 0 : index
    %211 = vector.load %arg16[%c52_336, %c0_337] : memref<64x64xf32, #tpu.memory_space<vmem>>, vector<4x64xf32>
    %c56_338 = arith.constant 56 : index
    %c128_339 = arith.constant 128 : index
    %212 = vector.load %arg17[%c56_338, %c128_339] : memref<64x576xf32, #tpu.memory_space<vmem>>, vector<4x64xf32>
    tpu.vector_store %arg17[%c56_338, %c128_339], %211 {strides = array<i32>} : memref<64x576xf32, #tpu.memory_space<vmem>>, vector<4x64xf32>,
    %c49_340 = arith.constant 49 : index
    %c0_341 = arith.constant 0 : index
    %213 = vector.load %arg16[%c49_340, %c0_341] : memref<64x64xf32, #tpu.memory_space<vmem>>, vector<3x64xf32>
    %c60_342 = arith.constant 60 : index
    %c128_343 = arith.constant 128 : index
    %214 = vector.load %arg17[%c60_342, %c128_343] : memref<64x576xf32, #tpu.memory_space<vmem>>, vector<3x64xf32>
    tpu.vector_store %arg17[%c60_342, %c128_343], %213 {strides = array<i32>} : memref<64x576xf32, #tpu.memory_space<vmem>>, vector<3x64xf32>,
    %c4_344 = arith.constant 4 : index
    %c0_345 = arith.constant 0 : index
    %215 = vector.load %arg16[%c4_344, %c0_345] : memref<64x64xf32, #tpu.memory_space<vmem>>, vector<3x64xf32>
    %c1_346 = arith.constant 1 : index
    %c192_347 = arith.constant 192 : index
    %216 = vector.load %arg17[%c1_346, %c192_347] : memref<64x576xf32, #tpu.memory_space<vmem>>, vector<3x64xf32>
    tpu.vector_store %arg17[%c1_346, %c192_347], %215 {strides = array<i32>} : memref<64x576xf32, #tpu.memory_space<vmem>>, vector<3x64xf32>,
    %c0_348 = arith.constant 0 : index
    %c0_349 = arith.constant 0 : index
    %217 = vector.load %arg16[%c0_348, %c0_349] : memref<64x64xf32, #tpu.memory_space<vmem>>, vector<4x64xf32>
    %c4_350 = arith.constant 4 : index
    %c192_351 = arith.constant 192 : index
    %218 = vector.load %arg17[%c4_350, %c192_351] : memref<64x576xf32, #tpu.memory_space<vmem>>, vector<4x64xf32>
    tpu.vector_store %arg17[%c4_350, %c192_351], %217 {strides = array<i32>} : memref<64x576xf32, #tpu.memory_space<vmem>>, vector<4x64xf32>,
    %c12_352 = arith.constant 12 : index
    %c0_353 = arith.constant 0 : index
    %219 = vector.load %arg16[%c12_352, %c0_353] : memref<64x64xf32, #tpu.memory_space<vmem>>, vector<3x64xf32>
    %c9_354 = arith.constant 9 : index
    %c192_355 = arith.constant 192 : index
    %220 = vector.load %arg17[%c9_354, %c192_355] : memref<64x576xf32, #tpu.memory_space<vmem>>, vector<3x64xf32>
    tpu.vector_store %arg17[%c9_354, %c192_355], %219 {strides = array<i32>} : memref<64x576xf32, #tpu.memory_space<vmem>>, vector<3x64xf32>,
    %c8_356 = arith.constant 8 : index
    %c0_357 = arith.constant 0 : index
    %221 = vector.load %arg16[%c8_356, %c0_357] : memref<64x64xf32, #tpu.memory_space<vmem>>, vector<4x64xf32>
    %c12_358 = arith.constant 12 : index
    %c192_359 = arith.constant 192 : index
    %222 = vector.load %arg17[%c12_358, %c192_359] : memref<64x576xf32, #tpu.memory_space<vmem>>, vector<4x64xf32>
    tpu.vector_store %arg17[%c12_358, %c192_359], %221 {strides = array<i32>} : memref<64x576xf32, #tpu.memory_space<vmem>>, vector<4x64xf32>,
    %c20_360 = arith.constant 20 : index
    %c0_361 = arith.constant 0 : index
    %223 = vector.load %arg16[%c20_360, %c0_361] : memref<64x64xf32, #tpu.memory_space<vmem>>, vector<3x64xf32>
    %c17_362 = arith.constant 17 : index
    %c192_363 = arith.constant 192 : index
    %224 = vector.load %arg17[%c17_362, %c192_363] : memref<64x576xf32, #tpu.memory_space<vmem>>, vector<3x64xf32>
    tpu.vector_store %arg17[%c17_362, %c192_363], %223 {strides = array<i32>} : memref<64x576xf32, #tpu.memory_space<vmem>>, vector<3x64xf32>,
    %c16_364 = arith.constant 16 : index
    %c0_365 = arith.constant 0 : index
    %225 = vector.load %arg16[%c16_364, %c0_365] : memref<64x64xf32, #tpu.memory_space<vmem>>, vector<4x64xf32>
    %c20_366 = arith.constant 20 : index
    %c192_367 = arith.constant 192 : index
    %226 = vector.load %arg17[%c20_366, %c192_367] : memref<64x576xf32, #tpu.memory_space<vmem>>, vector<4x64xf32>
    tpu.vector_store %arg17[%c20_366, %c192_367], %225 {strides = array<i32>} : memref<64x576xf32, #tpu.memory_space<vmem>>, vector<4x64xf32>,
    %c28_368 = arith.constant 28 : index
    %c0_369 = arith.constant 0 : index
    %227 = vector.load %arg16[%c28_368, %c0_369] : memref<64x64xf32, #tpu.memory_space<vmem>>, vector<3x64xf32>
    %c25_370 = arith.constant 25 : index
    %c192_371 = arith.constant 192 : index
    %228 = vector.load %arg17[%c25_370, %c192_371] : memref<64x576xf32, #tpu.memory_space<vmem>>, vector<3x64xf32>
    tpu.vector_store %arg17[%c25_370, %c192_371], %227 {strides = array<i32>} : memref<64x576xf32, #tpu.memory_space<vmem>>, vector<3x64xf32>,
    %c24_372 = arith.constant 24 : index
    %c0_373 = arith.constant 0 : index
    %229 = vector.load %arg16[%c24_372, %c0_373] : memref<64x64xf32, #tpu.memory_space<vmem>>, vector<4x64xf32>
    %c28_374 = arith.constant 28 : index
    %c192_375 = arith.constant 192 : index
    %230 = vector.load %arg17[%c28_374, %c192_375] : memref<64x576xf32, #tpu.memory_space<vmem>>, vector<4x64xf32>
    tpu.vector_store %arg17[%c28_374, %c192_375], %229 {strides = array<i32>} : memref<64x576xf32, #tpu.memory_space<vmem>>, vector<4x64xf32>,
    %c36_376 = arith.constant 36 : index
    %c0_377 = arith.constant 0 : index
    %231 = vector.load %arg16[%c36_376, %c0_377] : memref<64x64xf32, #tpu.memory_space<vmem>>, vector<3x64xf32>
    %c33_378 = arith.constant 33 : index
    %c192_379 = arith.constant 192 : index
    %232 = vector.load %arg17[%c33_378, %c192_379] : memref<64x576xf32, #tpu.memory_space<vmem>>, vector<3x64xf32>
    tpu.vector_store %arg17[%c33_378, %c192_379], %231 {strides = array<i32>} : memref<64x576xf32, #tpu.memory_space<vmem>>, vector<3x64xf32>,
    %c32_380 = arith.constant 32 : index
    %c0_381 = arith.constant 0 : index
    %233 = vector.load %arg16[%c32_380, %c0_381] : memref<64x64xf32, #tpu.memory_space<vmem>>, vector<4x64xf32>
    %c36_382 = arith.constant 36 : index
    %c192_383 = arith.constant 192 : index
    %234 = vector.load %arg17[%c36_382, %c192_383] : memref<64x576xf32, #tpu.memory_space<vmem>>, vector<4x64xf32>
    tpu.vector_store %arg17[%c36_382, %c192_383], %233 {strides = array<i32>} : memref<64x576xf32, #tpu.memory_space<vmem>>, vector<4x64xf32>,
    %c44_384 = arith.constant 44 : index
    %c0_385 = arith.constant 0 : index
    %235 = vector.load %arg16[%c44_384, %c0_385] : memref<64x64xf32, #tpu.memory_space<vmem>>, vector<3x64xf32>
    %c41_386 = arith.constant 41 : index
    %c192_387 = arith.constant 192 : index
    %236 = vector.load %arg17[%c41_386, %c192_387] : memref<64x576xf32, #tpu.memory_space<vmem>>, vector<3x64xf32>
    tpu.vector_store %arg17[%c41_386, %c192_387], %235 {strides = array<i32>} : memref<64x576xf32, #tpu.memory_space<vmem>>, vector<3x64xf32>,
    %c40_388 = arith.constant 40 : index
    %c0_389 = arith.constant 0 : index
    %237 = vector.load %arg16[%c40_388, %c0_389] : memref<64x64xf32, #tpu.memory_space<vmem>>, vector<4x64xf32>
    %c44_390 = arith.constant 44 : index
    %c192_391 = arith.constant 192 : index
    %238 = vector.load %arg17[%c44_390, %c192_391] : memref<64x576xf32, #tpu.memory_space<vmem>>, vector<4x64xf32>
    tpu.vector_store %arg17[%c44_390, %c192_391], %237 {strides = array<i32>} : memref<64x576xf32, #tpu.memory_space<vmem>>, vector<4x64xf32>,
    %c52_392 = arith.constant 52 : index
    %c0_393 = arith.constant 0 : index
    %239 = vector.load %arg16[%c52_392, %c0_393] : memref<64x64xf32, #tpu.memory_space<vmem>>, vector<3x64xf32>
    %c49_394 = arith.constant 49 : index
    %c192_395 = arith.constant 192 : index
    %240 = vector.load %arg17[%c49_394, %c192_395] : memref<64x576xf32, #tpu.memory_space<vmem>>, vector<3x64xf32>
    tpu.vector_store %arg17[%c49_394, %c192_395], %239 {strides = array<i32>} : memref<64x576xf32, #tpu.memory_space<vmem>>, vector<3x64xf32>,
    %c48_396 = arith.constant 48 : index
    %c0_397 = arith.constant 0 : index
    %241 = vector.load %arg16[%c48_396, %c0_397] : memref<64x64xf32, #tpu.memory_space<vmem>>, vector<4x64xf32>
    %c52_398 = arith.constant 52 : index
    %c192_399 = arith.constant 192 : index
    %242 = vector.load %arg17[%c52_398, %c192_399] : memref<64x576xf32, #tpu.memory_space<vmem>>, vector<4x64xf32>
    tpu.vector_store %arg17[%c52_398, %c192_399], %241 {strides = array<i32>} : memref<64x576xf32, #tpu.memory_space<vmem>>, vector<4x64xf32>,
    %c60_400 = arith.constant 60 : index
    %c0_401 = arith.constant 0 : index
    %243 = vector.load %arg16[%c60_400, %c0_401] : memref<64x64xf32, #tpu.memory_space<vmem>>, vector<3x64xf32>
    %c57_402 = arith.constant 57 : index
    %c192_403 = arith.constant 192 : index
    %244 = vector.load %arg17[%c57_402, %c192_403] : memref<64x576xf32, #tpu.memory_space<vmem>>, vector<3x64xf32>
    tpu.vector_store %arg17[%c57_402, %c192_403], %243 {strides = array<i32>} : memref<64x576xf32, #tpu.memory_space<vmem>>, vector<3x64xf32>,
    %c56_404 = arith.constant 56 : index
    %c0_405 = arith.constant 0 : index
    %245 = vector.load %arg16[%c56_404, %c0_405] : memref<64x64xf32, #tpu.memory_space<vmem>>, vector<4x64xf32>
    %c60_406 = arith.constant 60 : index
    %c192_407 = arith.constant 192 : index
    %246 = vector.load %arg17[%c60_406, %c192_407] : memref<64x576xf32, #tpu.memory_space<vmem>>, vector<4x64xf32>
    tpu.vector_store %arg17[%c60_406, %c192_407], %245 {strides = array<i32>} : memref<64x576xf32, #tpu.memory_space<vmem>>, vector<4x64xf32>,
    %c0_408 = arith.constant 0 : index
    %c0_409 = arith.constant 0 : index
    %247 = vector.load %arg16[%c0_408, %c0_409] : memref<64x64xf32, #tpu.memory_space<vmem>>, vector<64x64xf32>
    %c0_410 = arith.constant 0 : index
    %c256_411 = arith.constant 256 : index
    %248 = vector.load %arg17[%c0_410, %c256_411] : memref<64x576xf32, #tpu.memory_space<vmem>>, vector<64x64xf32>
    tpu.vector_store %arg17[%c0_410, %c256_411], %247 {strides = array<i32>} : memref<64x576xf32, #tpu.memory_space<vmem>>, vector<64x64xf32>,
    %c4_412 = arith.constant 4 : index
    %c0_413 = arith.constant 0 : index
    %249 = vector.load %arg16[%c4_412, %c0_413] : memref<64x64xf32, #tpu.memory_space<vmem>>, vector<4x64xf32>
    %c0_414 = arith.constant 0 : index
    %c320_415 = arith.constant 320 : index
    %250 = vector.load %arg17[%c0_414, %c320_415] : memref<64x576xf32, #tpu.memory_space<vmem>>, vector<4x64xf32>
    tpu.vector_store %arg17[%c0_414, %c320_415], %249 {strides = array<i32>} : memref<64x576xf32, #tpu.memory_space<vmem>>, vector<4x64xf32>,
    %c1_416 = arith.constant 1 : index
    %c0_417 = arith.constant 0 : index
    %251 = vector.load %arg16[%c1_416, %c0_417] : memref<64x64xf32, #tpu.memory_space<vmem>>, vector<3x64xf32>
    %c4_418 = arith.constant 4 : index
    %c320_419 = arith.constant 320 : index
    %252 = vector.load %arg17[%c4_418, %c320_419] : memref<64x576xf32, #tpu.memory_space<vmem>>, vector<3x64xf32>
    tpu.vector_store %arg17[%c4_418, %c320_419], %251 {strides = array<i32>} : memref<64x576xf32, #tpu.memory_space<vmem>>, vector<3x64xf32>,
    %c12_420 = arith.constant 12 : index
    %c0_421 = arith.constant 0 : index
    %253 = vector.load %arg16[%c12_420, %c0_421] : memref<64x64xf32, #tpu.memory_space<vmem>>, vector<4x64xf32>
    %c8_422 = arith.constant 8 : index
    %c320_423 = arith.constant 320 : index
    %254 = vector.load %arg17[%c8_422, %c320_423] : memref<64x576xf32, #tpu.memory_space<vmem>>, vector<4x64xf32>
    tpu.vector_store %arg17[%c8_422, %c320_423], %253 {strides = array<i32>} : memref<64x576xf32, #tpu.memory_space<vmem>>, vector<4x64xf32>,
    %c9_424 = arith.constant 9 : index
    %c0_425 = arith.constant 0 : index
    %255 = vector.load %arg16[%c9_424, %c0_425] : memref<64x64xf32, #tpu.memory_space<vmem>>, vector<3x64xf32>
    %c12_426 = arith.constant 12 : index
    %c320_427 = arith.constant 320 : index
    %256 = vector.load %arg17[%c12_426, %c320_427] : memref<64x576xf32, #tpu.memory_space<vmem>>, vector<3x64xf32>
    tpu.vector_store %arg17[%c12_426, %c320_427], %255 {strides = array<i32>} : memref<64x576xf32, #tpu.memory_space<vmem>>, vector<3x64xf32>,
    %c20_428 = arith.constant 20 : index
    %c0_429 = arith.constant 0 : index
    %257 = vector.load %arg16[%c20_428, %c0_429] : memref<64x64xf32, #tpu.memory_space<vmem>>, vector<4x64xf32>
    %c16_430 = arith.constant 16 : index
    %c320_431 = arith.constant 320 : index
    %258 = vector.load %arg17[%c16_430, %c320_431] : memref<64x576xf32, #tpu.memory_space<vmem>>, vector<4x64xf32>
    tpu.vector_store %arg17[%c16_430, %c320_431], %257 {strides = array<i32>} : memref<64x576xf32, #tpu.memory_space<vmem>>, vector<4x64xf32>,
    %c17_432 = arith.constant 17 : index
    %c0_433 = arith.constant 0 : index
    %259 = vector.load %arg16[%c17_432, %c0_433] : memref<64x64xf32, #tpu.memory_space<vmem>>, vector<3x64xf32>
    %c20_434 = arith.constant 20 : index
    %c320_435 = arith.constant 320 : index
    %260 = vector.load %arg17[%c20_434, %c320_435] : memref<64x576xf32, #tpu.memory_space<vmem>>, vector<3x64xf32>
    tpu.vector_store %arg17[%c20_434, %c320_435], %259 {strides = array<i32>} : memref<64x576xf32, #tpu.memory_space<vmem>>, vector<3x64xf32>,
    %c28_436 = arith.constant 28 : index
    %c0_437 = arith.constant 0 : index
    %261 = vector.load %arg16[%c28_436, %c0_437] : memref<64x64xf32, #tpu.memory_space<vmem>>, vector<4x64xf32>
    %c24_438 = arith.constant 24 : index
    %c320_439 = arith.constant 320 : index
    %262 = vector.load %arg17[%c24_438, %c320_439] : memref<64x576xf32, #tpu.memory_space<vmem>>, vector<4x64xf32>
    tpu.vector_store %arg17[%c24_438, %c320_439], %261 {strides = array<i32>} : memref<64x576xf32, #tpu.memory_space<vmem>>, vector<4x64xf32>,
    %c25_440 = arith.constant 25 : index
    %c0_441 = arith.constant 0 : index
    %263 = vector.load %arg16[%c25_440, %c0_441] : memref<64x64xf32, #tpu.memory_space<vmem>>, vector<3x64xf32>
    %c28_442 = arith.constant 28 : index
    %c320_443 = arith.constant 320 : index
    %264 = vector.load %arg17[%c28_442, %c320_443] : memref<64x576xf32, #tpu.memory_space<vmem>>, vector<3x64xf32>
    tpu.vector_store %arg17[%c28_442, %c320_443], %263 {strides = array<i32>} : memref<64x576xf32, #tpu.memory_space<vmem>>, vector<3x64xf32>,
    %c36_444 = arith.constant 36 : index
    %c0_445 = arith.constant 0 : index
    %265 = vector.load %arg16[%c36_444, %c0_445] : memref<64x64xf32, #tpu.memory_space<vmem>>, vector<4x64xf32>
    %c32_446 = arith.constant 32 : index
    %c320_447 = arith.constant 320 : index
    %266 = vector.load %arg17[%c32_446, %c320_447] : memref<64x576xf32, #tpu.memory_space<vmem>>, vector<4x64xf32>
    tpu.vector_store %arg17[%c32_446, %c320_447], %265 {strides = array<i32>} : memref<64x576xf32, #tpu.memory_space<vmem>>, vector<4x64xf32>,
    %c33_448 = arith.constant 33 : index
    %c0_449 = arith.constant 0 : index
    %267 = vector.load %arg16[%c33_448, %c0_449] : memref<64x64xf32, #tpu.memory_space<vmem>>, vector<3x64xf32>
    %c36_450 = arith.constant 36 : index
    %c320_451 = arith.constant 320 : index
    %268 = vector.load %arg17[%c36_450, %c320_451] : memref<64x576xf32, #tpu.memory_space<vmem>>, vector<3x64xf32>
    tpu.vector_store %arg17[%c36_450, %c320_451], %267 {strides = array<i32>} : memref<64x576xf32, #tpu.memory_space<vmem>>, vector<3x64xf32>,
    %c44_452 = arith.constant 44 : index
    %c0_453 = arith.constant 0 : index
    %269 = vector.load %arg16[%c44_452, %c0_453] : memref<64x64xf32, #tpu.memory_space<vmem>>, vector<4x64xf32>
    %c40_454 = arith.constant 40 : index
    %c320_455 = arith.constant 320 : index
    %270 = vector.load %arg17[%c40_454, %c320_455] : memref<64x576xf32, #tpu.memory_space<vmem>>, vector<4x64xf32>
    tpu.vector_store %arg17[%c40_454, %c320_455], %269 {strides = array<i32>} : memref<64x576xf32, #tpu.memory_space<vmem>>, vector<4x64xf32>,
    %c41_456 = arith.constant 41 : index
    %c0_457 = arith.constant 0 : index
    %271 = vector.load %arg16[%c41_456, %c0_457] : memref<64x64xf32, #tpu.memory_space<vmem>>, vector<3x64xf32>
    %c44_458 = arith.constant 44 : index
    %c320_459 = arith.constant 320 : index
    %272 = vector.load %arg17[%c44_458, %c320_459] : memref<64x576xf32, #tpu.memory_space<vmem>>, vector<3x64xf32>
    tpu.vector_store %arg17[%c44_458, %c320_459], %271 {strides = array<i32>} : memref<64x576xf32, #tpu.memory_space<vmem>>, vector<3x64xf32>,
    %c52_460 = arith.constant 52 : index
    %c0_461 = arith.constant 0 : index
    %273 = vector.load %arg16[%c52_460, %c0_461] : memref<64x64xf32, #tpu.memory_space<vmem>>, vector<4x64xf32>
    %c48_462 = arith.constant 48 : index
    %c320_463 = arith.constant 320 : index
    %274 = vector.load %arg17[%c48_462, %c320_463] : memref<64x576xf32, #tpu.memory_space<vmem>>, vector<4x64xf32>
    tpu.vector_store %arg17[%c48_462, %c320_463], %273 {strides = array<i32>} : memref<64x576xf32, #tpu.memory_space<vmem>>, vector<4x64xf32>,
    %c49_464 = arith.constant 49 : index
    %c0_465 = arith.constant 0 : index
    %275 = vector.load %arg16[%c49_464, %c0_465] : memref<64x64xf32, #tpu.memory_space<vmem>>, vector<3x64xf32>
    %c52_466 = arith.constant 52 : index
    %c320_467 = arith.constant 320 : index
    %276 = vector.load %arg17[%c52_466, %c320_467] : memref<64x576xf32, #tpu.memory_space<vmem>>, vector<3x64xf32>
    tpu.vector_store %arg17[%c52_466, %c320_467], %275 {strides = array<i32>} : memref<64x576xf32, #tpu.memory_space<vmem>>, vector<3x64xf32>,
    %c60_468 = arith.constant 60 : index
    %c0_469 = arith.constant 0 : index
    %277 = vector.load %arg16[%c60_468, %c0_469] : memref<64x64xf32, #tpu.memory_space<vmem>>, vector<4x64xf32>
    %c56_470 = arith.constant 56 : index
    %c320_471 = arith.constant 320 : index
    %278 = vector.load %arg17[%c56_470, %c320_471] : memref<64x576xf32, #tpu.memory_space<vmem>>, vector<4x64xf32>
    tpu.vector_store %arg17[%c56_470, %c320_471], %277 {strides = array<i32>} : memref<64x576xf32, #tpu.memory_space<vmem>>, vector<4x64xf32>,
    %c57_472 = arith.constant 57 : index
    %c0_473 = arith.constant 0 : index
    %279 = vector.load %arg16[%c57_472, %c0_473] : memref<64x64xf32, #tpu.memory_space<vmem>>, vector<3x64xf32>
    %c60_474 = arith.constant 60 : index
    %c320_475 = arith.constant 320 : index
    %280 = vector.load %arg17[%c60_474, %c320_475] : memref<64x576xf32, #tpu.memory_space<vmem>>, vector<3x64xf32>
    tpu.vector_store %arg17[%c60_474, %c320_475], %279 {strides = array<i32>} : memref<64x576xf32, #tpu.memory_space<vmem>>, vector<3x64xf32>,
    %c12_476 = arith.constant 12 : index
    %c0_477 = arith.constant 0 : index
    %281 = vector.load %arg16[%c12_476, %c0_477] : memref<64x64xf32, #tpu.memory_space<vmem>>, vector<3x64xf32>
    %c1_478 = arith.constant 1 : index
    %c384_479 = arith.constant 384 : index
    %282 = vector.load %arg17[%c1_478, %c384_479] : memref<64x576xf32, #tpu.memory_space<vmem>>, vector<3x64xf32>
    tpu.vector_store %arg17[%c1_478, %c384_479], %281 {strides = array<i32>} : memref<64x576xf32, #tpu.memory_space<vmem>>, vector<3x64xf32>,
    %c8_480 = arith.constant 8 : index
    %c0_481 = arith.constant 0 : index
    %283 = vector.load %arg16[%c8_480, %c0_481] : memref<64x64xf32, #tpu.memory_space<vmem>>, vector<4x64xf32>
    %c4_482 = arith.constant 4 : index
    %c384_483 = arith.constant 384 : index
    %284 = vector.load %arg17[%c4_482, %c384_483] : memref<64x576xf32, #tpu.memory_space<vmem>>, vector<4x64xf32>
    tpu.vector_store %arg17[%c4_482, %c384_483], %283 {strides = array<i32>} : memref<64x576xf32, #tpu.memory_space<vmem>>, vector<4x64xf32>,
    %c20_484 = arith.constant 20 : index
    %c0_485 = arith.constant 0 : index
    %285 = vector.load %arg16[%c20_484, %c0_485] : memref<64x64xf32, #tpu.memory_space<vmem>>, vector<3x64xf32>
    %c9_486 = arith.constant 9 : index
    %c384_487 = arith.constant 384 : index
    %286 = vector.load %arg17[%c9_486, %c384_487] : memref<64x576xf32, #tpu.memory_space<vmem>>, vector<3x64xf32>
    tpu.vector_store %arg17[%c9_486, %c384_487], %285 {strides = array<i32>} : memref<64x576xf32, #tpu.memory_space<vmem>>, vector<3x64xf32>,
    %c16_488 = arith.constant 16 : index
    %c0_489 = arith.constant 0 : index
    %287 = vector.load %arg16[%c16_488, %c0_489] : memref<64x64xf32, #tpu.memory_space<vmem>>, vector<4x64xf32>
    %c12_490 = arith.constant 12 : index
    %c384_491 = arith.constant 384 : index
    %288 = vector.load %arg17[%c12_490, %c384_491] : memref<64x576xf32, #tpu.memory_space<vmem>>, vector<4x64xf32>
    tpu.vector_store %arg17[%c12_490, %c384_491], %287 {strides = array<i32>} : memref<64x576xf32, #tpu.memory_space<vmem>>, vector<4x64xf32>,
    %c28_492 = arith.constant 28 : index
    %c0_493 = arith.constant 0 : index
    %289 = vector.load %arg16[%c28_492, %c0_493] : memref<64x64xf32, #tpu.memory_space<vmem>>, vector<3x64xf32>
    %c17_494 = arith.constant 17 : index
    %c384_495 = arith.constant 384 : index
    %290 = vector.load %arg17[%c17_494, %c384_495] : memref<64x576xf32, #tpu.memory_space<vmem>>, vector<3x64xf32>
    tpu.vector_store %arg17[%c17_494, %c384_495], %289 {strides = array<i32>} : memref<64x576xf32, #tpu.memory_space<vmem>>, vector<3x64xf32>,
    %c24_496 = arith.constant 24 : index
    %c0_497 = arith.constant 0 : index
    %291 = vector.load %arg16[%c24_496, %c0_497] : memref<64x64xf32, #tpu.memory_space<vmem>>, vector<4x64xf32>
    %c20_498 = arith.constant 20 : index
    %c384_499 = arith.constant 384 : index
    %292 = vector.load %arg17[%c20_498, %c384_499] : memref<64x576xf32, #tpu.memory_space<vmem>>, vector<4x64xf32>
    tpu.vector_store %arg17[%c20_498, %c384_499], %291 {strides = array<i32>} : memref<64x576xf32, #tpu.memory_space<vmem>>, vector<4x64xf32>,
    %c36_500 = arith.constant 36 : index
    %c0_501 = arith.constant 0 : index
    %293 = vector.load %arg16[%c36_500, %c0_501] : memref<64x64xf32, #tpu.memory_space<vmem>>, vector<3x64xf32>
    %c25_502 = arith.constant 25 : index
    %c384_503 = arith.constant 384 : index
    %294 = vector.load %arg17[%c25_502, %c384_503] : memref<64x576xf32, #tpu.memory_space<vmem>>, vector<3x64xf32>
    tpu.vector_store %arg17[%c25_502, %c384_503], %293 {strides = array<i32>} : memref<64x576xf32, #tpu.memory_space<vmem>>, vector<3x64xf32>,
    %c32_504 = arith.constant 32 : index
    %c0_505 = arith.constant 0 : index
    %295 = vector.load %arg16[%c32_504, %c0_505] : memref<64x64xf32, #tpu.memory_space<vmem>>, vector<4x64xf32>
    %c28_506 = arith.constant 28 : index
    %c384_507 = arith.constant 384 : index
    %296 = vector.load %arg17[%c28_506, %c384_507] : memref<64x576xf32, #tpu.memory_space<vmem>>, vector<4x64xf32>
    tpu.vector_store %arg17[%c28_506, %c384_507], %295 {strides = array<i32>} : memref<64x576xf32, #tpu.memory_space<vmem>>, vector<4x64xf32>,
    %c44_508 = arith.constant 44 : index
    %c0_509 = arith.constant 0 : index
    %297 = vector.load %arg16[%c44_508, %c0_509] : memref<64x64xf32, #tpu.memory_space<vmem>>, vector<3x64xf32>
    %c33_510 = arith.constant 33 : index
    %c384_511 = arith.constant 384 : index
    %298 = vector.load %arg17[%c33_510, %c384_511] : memref<64x576xf32, #tpu.memory_space<vmem>>, vector<3x64xf32>
    tpu.vector_store %arg17[%c33_510, %c384_511], %297 {strides = array<i32>} : memref<64x576xf32, #tpu.memory_space<vmem>>, vector<3x64xf32>,
    %c40_512 = arith.constant 40 : index
    %c0_513 = arith.constant 0 : index
    %299 = vector.load %arg16[%c40_512, %c0_513] : memref<64x64xf32, #tpu.memory_space<vmem>>, vector<4x64xf32>
    %c36_514 = arith.constant 36 : index
    %c384_515 = arith.constant 384 : index
    %300 = vector.load %arg17[%c36_514, %c384_515] : memref<64x576xf32, #tpu.memory_space<vmem>>, vector<4x64xf32>
    tpu.vector_store %arg17[%c36_514, %c384_515], %299 {strides = array<i32>} : memref<64x576xf32, #tpu.memory_space<vmem>>, vector<4x64xf32>,
    %c52_516 = arith.constant 52 : index
    %c0_517 = arith.constant 0 : index
    %301 = vector.load %arg16[%c52_516, %c0_517] : memref<64x64xf32, #tpu.memory_space<vmem>>, vector<3x64xf32>
    %c41_518 = arith.constant 41 : index
    %c384_519 = arith.constant 384 : index
    %302 = vector.load %arg17[%c41_518, %c384_519] : memref<64x576xf32, #tpu.memory_space<vmem>>, vector<3x64xf32>
    tpu.vector_store %arg17[%c41_518, %c384_519], %301 {strides = array<i32>} : memref<64x576xf32, #tpu.memory_space<vmem>>, vector<3x64xf32>,
    %c48_520 = arith.constant 48 : index
    %c0_521 = arith.constant 0 : index
    %303 = vector.load %arg16[%c48_520, %c0_521] : memref<64x64xf32, #tpu.memory_space<vmem>>, vector<4x64xf32>
    %c44_522 = arith.constant 44 : index
    %c384_523 = arith.constant 384 : index
    %304 = vector.load %arg17[%c44_522, %c384_523] : memref<64x576xf32, #tpu.memory_space<vmem>>, vector<4x64xf32>
    tpu.vector_store %arg17[%c44_522, %c384_523], %303 {strides = array<i32>} : memref<64x576xf32, #tpu.memory_space<vmem>>, vector<4x64xf32>,
    %c60_524 = arith.constant 60 : index
    %c0_525 = arith.constant 0 : index
    %305 = vector.load %arg16[%c60_524, %c0_525] : memref<64x64xf32, #tpu.memory_space<vmem>>, vector<3x64xf32>
    %c49_526 = arith.constant 49 : index
    %c384_527 = arith.constant 384 : index
    %306 = vector.load %arg17[%c49_526, %c384_527] : memref<64x576xf32, #tpu.memory_space<vmem>>, vector<3x64xf32>
    tpu.vector_store %arg17[%c49_526, %c384_527], %305 {strides = array<i32>} : memref<64x576xf32, #tpu.memory_space<vmem>>, vector<3x64xf32>,
    %c56_528 = arith.constant 56 : index
    %c0_529 = arith.constant 0 : index
    %307 = vector.load %arg16[%c56_528, %c0_529] : memref<64x64xf32, #tpu.memory_space<vmem>>, vector<4x64xf32>
    %c52_530 = arith.constant 52 : index
    %c384_531 = arith.constant 384 : index
    %308 = vector.load %arg17[%c52_530, %c384_531] : memref<64x576xf32, #tpu.memory_space<vmem>>, vector<4x64xf32>
    tpu.vector_store %arg17[%c52_530, %c384_531], %307 {strides = array<i32>} : memref<64x576xf32, #tpu.memory_space<vmem>>, vector<4x64xf32>,
    %c8_532 = arith.constant 8 : index
    %c0_533 = arith.constant 0 : index
    %309 = vector.load %arg16[%c8_532, %c0_533] : memref<64x64xf32, #tpu.memory_space<vmem>>, vector<56x64xf32>
    %c0_534 = arith.constant 0 : index
    %c448_535 = arith.constant 448 : index
    %310 = vector.load %arg17[%c0_534, %c448_535] : memref<64x576xf32, #tpu.memory_space<vmem>>, vector<56x64xf32>
    tpu.vector_store %arg17[%c0_534, %c448_535], %309 {strides = array<i32>} : memref<64x576xf32, #tpu.memory_space<vmem>>, vector<56x64xf32>,
    %c12_536 = arith.constant 12 : index
    %c0_537 = arith.constant 0 : index
    %311 = vector.load %arg16[%c12_536, %c0_537] : memref<64x64xf32, #tpu.memory_space<vmem>>, vector<4x64xf32>
    %c0_538 = arith.constant 0 : index
    %c512_539 = arith.constant 512 : index
    %312 = vector.load %arg17[%c0_538, %c512_539] : memref<64x576xf32, #tpu.memory_space<vmem>>, vector<4x64xf32>
    tpu.vector_store %arg17[%c0_538, %c512_539], %311 {strides = array<i32>} : memref<64x576xf32, #tpu.memory_space<vmem>>, vector<4x64xf32>,
    %c9_540 = arith.constant 9 : index
    %c0_541 = arith.constant 0 : index
    %313 = vector.load %arg16[%c9_540, %c0_541] : memref<64x64xf32, #tpu.memory_space<vmem>>, vector<3x64xf32>
    %c4_542 = arith.constant 4 : index
    %c512_543 = arith.constant 512 : index
    %314 = vector.load %arg17[%c4_542, %c512_543] : memref<64x576xf32, #tpu.memory_space<vmem>>, vector<3x64xf32>
    tpu.vector_store %arg17[%c4_542, %c512_543], %313 {strides = array<i32>} : memref<64x576xf32, #tpu.memory_space<vmem>>, vector<3x64xf32>,
    %c20_544 = arith.constant 20 : index
    %c0_545 = arith.constant 0 : index
    %315 = vector.load %arg16[%c20_544, %c0_545] : memref<64x64xf32, #tpu.memory_space<vmem>>, vector<4x64xf32>
    %c8_546 = arith.constant 8 : index
    %c512_547 = arith.constant 512 : index
    %316 = vector.load %arg17[%c8_546, %c512_547] : memref<64x576xf32, #tpu.memory_space<vmem>>, vector<4x64xf32>
    tpu.vector_store %arg17[%c8_546, %c512_547], %315 {strides = array<i32>} : memref<64x576xf32, #tpu.memory_space<vmem>>, vector<4x64xf32>,
    %c17_548 = arith.constant 17 : index
    %c0_549 = arith.constant 0 : index
    %317 = vector.load %arg16[%c17_548, %c0_549] : memref<64x64xf32, #tpu.memory_space<vmem>>, vector<3x64xf32>
    %c12_550 = arith.constant 12 : index
    %c512_551 = arith.constant 512 : index
    %318 = vector.load %arg17[%c12_550, %c512_551] : memref<64x576xf32, #tpu.memory_space<vmem>>, vector<3x64xf32>
    tpu.vector_store %arg17[%c12_550, %c512_551], %317 {strides = array<i32>} : memref<64x576xf32, #tpu.memory_space<vmem>>, vector<3x64xf32>,
    %c28_552 = arith.constant 28 : index
    %c0_553 = arith.constant 0 : index
    %319 = vector.load %arg16[%c28_552, %c0_553] : memref<64x64xf32, #tpu.memory_space<vmem>>, vector<4x64xf32>
    %c16_554 = arith.constant 16 : index
    %c512_555 = arith.constant 512 : index
    %320 = vector.load %arg17[%c16_554, %c512_555] : memref<64x576xf32, #tpu.memory_space<vmem>>, vector<4x64xf32>
    tpu.vector_store %arg17[%c16_554, %c512_555], %319 {strides = array<i32>} : memref<64x576xf32, #tpu.memory_space<vmem>>, vector<4x64xf32>,
    %c25_556 = arith.constant 25 : index
    %c0_557 = arith.constant 0 : index
    %321 = vector.load %arg16[%c25_556, %c0_557] : memref<64x64xf32, #tpu.memory_space<vmem>>, vector<3x64xf32>
    %c20_558 = arith.constant 20 : index
    %c512_559 = arith.constant 512 : index
    %322 = vector.load %arg17[%c20_558, %c512_559] : memref<64x576xf32, #tpu.memory_space<vmem>>, vector<3x64xf32>
    tpu.vector_store %arg17[%c20_558, %c512_559], %321 {strides = array<i32>} : memref<64x576xf32, #tpu.memory_space<vmem>>, vector<3x64xf32>,
    %c36_560 = arith.constant 36 : index
    %c0_561 = arith.constant 0 : index
    %323 = vector.load %arg16[%c36_560, %c0_561] : memref<64x64xf32, #tpu.memory_space<vmem>>, vector<4x64xf32>
    %c24_562 = arith.constant 24 : index
    %c512_563 = arith.constant 512 : index
    %324 = vector.load %arg17[%c24_562, %c512_563] : memref<64x576xf32, #tpu.memory_space<vmem>>, vector<4x64xf32>
    tpu.vector_store %arg17[%c24_562, %c512_563], %323 {strides = array<i32>} : memref<64x576xf32, #tpu.memory_space<vmem>>, vector<4x64xf32>,
    %c33_564 = arith.constant 33 : index
    %c0_565 = arith.constant 0 : index
    %325 = vector.load %arg16[%c33_564, %c0_565] : memref<64x64xf32, #tpu.memory_space<vmem>>, vector<3x64xf32>
    %c28_566 = arith.constant 28 : index
    %c512_567 = arith.constant 512 : index
    %326 = vector.load %arg17[%c28_566, %c512_567] : memref<64x576xf32, #tpu.memory_space<vmem>>, vector<3x64xf32>
    tpu.vector_store %arg17[%c28_566, %c512_567], %325 {strides = array<i32>} : memref<64x576xf32, #tpu.memory_space<vmem>>, vector<3x64xf32>,
    %c44_568 = arith.constant 44 : index
    %c0_569 = arith.constant 0 : index
    %327 = vector.load %arg16[%c44_568, %c0_569] : memref<64x64xf32, #tpu.memory_space<vmem>>, vector<4x64xf32>
    %c32_570 = arith.constant 32 : index
    %c512_571 = arith.constant 512 : index
    %328 = vector.load %arg17[%c32_570, %c512_571] : memref<64x576xf32, #tpu.memory_space<vmem>>, vector<4x64xf32>
    tpu.vector_store %arg17[%c32_570, %c512_571], %327 {strides = array<i32>} : memref<64x576xf32, #tpu.memory_space<vmem>>, vector<4x64xf32>,
    %c41_572 = arith.constant 41 : index
    %c0_573 = arith.constant 0 : index
    %329 = vector.load %arg16[%c41_572, %c0_573] : memref<64x64xf32, #tpu.memory_space<vmem>>, vector<3x64xf32>
    %c36_574 = arith.constant 36 : index
    %c512_575 = arith.constant 512 : index
    %330 = vector.load %arg17[%c36_574, %c512_575] : memref<64x576xf32, #tpu.memory_space<vmem>>, vector<3x64xf32>
    tpu.vector_store %arg17[%c36_574, %c512_575], %329 {strides = array<i32>} : memref<64x576xf32, #tpu.memory_space<vmem>>, vector<3x64xf32>,
    %c52_576 = arith.constant 52 : index
    %c0_577 = arith.constant 0 : index
    %331 = vector.load %arg16[%c52_576, %c0_577] : memref<64x64xf32, #tpu.memory_space<vmem>>, vector<4x64xf32>
    %c40_578 = arith.constant 40 : index
    %c512_579 = arith.constant 512 : index
    %332 = vector.load %arg17[%c40_578, %c512_579] : memref<64x576xf32, #tpu.memory_space<vmem>>, vector<4x64xf32>
    tpu.vector_store %arg17[%c40_578, %c512_579], %331 {strides = array<i32>} : memref<64x576xf32, #tpu.memory_space<vmem>>, vector<4x64xf32>,
    %c49_580 = arith.constant 49 : index
    %c0_581 = arith.constant 0 : index
    %333 = vector.load %arg16[%c49_580, %c0_581] : memref<64x64xf32, #tpu.memory_space<vmem>>, vector<3x64xf32>
    %c44_582 = arith.constant 44 : index
    %c512_583 = arith.constant 512 : index
    %334 = vector.load %arg17[%c44_582, %c512_583] : memref<64x576xf32, #tpu.memory_space<vmem>>, vector<3x64xf32>
    tpu.vector_store %arg17[%c44_582, %c512_583], %333 {strides = array<i32>} : memref<64x576xf32, #tpu.memory_space<vmem>>, vector<3x64xf32>,
    %c60_584 = arith.constant 60 : index
    %c0_585 = arith.constant 0 : index
    %335 = vector.load %arg16[%c60_584, %c0_585] : memref<64x64xf32, #tpu.memory_space<vmem>>, vector<4x64xf32>
    %c48_586 = arith.constant 48 : index
    %c512_587 = arith.constant 512 : index
    %336 = vector.load %arg17[%c48_586, %c512_587] : memref<64x576xf32, #tpu.memory_space<vmem>>, vector<4x64xf32>
    tpu.vector_store %arg17[%c48_586, %c512_587], %335 {strides = array<i32>} : memref<64x576xf32, #tpu.memory_space<vmem>>, vector<4x64xf32>,
    %c57_588 = arith.constant 57 : index
    %c0_589 = arith.constant 0 : index
    %337 = vector.load %arg16[%c57_588, %c0_589] : memref<64x64xf32, #tpu.memory_space<vmem>>, vector<3x64xf32>
    %c52_590 = arith.constant 52 : index
    %c512_591 = arith.constant 512 : index
    %338 = vector.load %arg17[%c52_590, %c512_591] : memref<64x576xf32, #tpu.memory_space<vmem>>, vector<3x64xf32>
    tpu.vector_store %arg17[%c52_590, %c512_591], %337 {strides = array<i32>} : memref<64x576xf32, #tpu.memory_space<vmem>>, vector<3x64xf32>,
    %c0_592 = arith.constant 0 : index
    %c0_593 = arith.constant 0 : index
    %339 = vector.load %arg17[%c0_592, %c0_593] : memref<64x576xf32, #tpu.memory_space<vmem>>, vector<64x576xf32>
    %340 = arith.truncf %339 : vector<64x576xf32> to vector<64x576xbf16>
    %c0_594 = arith.constant 0 : index
    %c0_595 = arith.constant 0 : index
    %341 = vector.load %arg8[%c0_594, %c0_595] : memref<576x16xbf16, #tpu.memory_space<vmem>>, vector<576x16xbf16>
    %cst_596 = arith.constant dense<0.000000e+00> : vector<64x16xf32>
    %342 = tpu.matmul %340, %341, %cst_596 {dimension_numbers = #tpu.dot_dimension_numbers<[1], [0], [0], [1], [0, 0, 1, 1], [], []>} : vector<64x576xbf16>, vector<576x16xbf16>, vector<64x16xf32> -> vector<64x16xf32>
    %c0_597 = arith.constant 0 : index
    %c0_598 = arith.constant 0 : index
    %343 = vector.load %arg9[%c0_597, %c0_598] : memref<1x16xf32, #tpu.memory_space<vmem>>, vector<1x16xf32>
    %344 = vector.broadcast %343 : vector<1x16xf32> to vector<64x16xf32>
    %345 = arith.addf %342, %344 : vector<64x16xf32>
    %c0_599 = arith.constant 0 : index
    %c0_600 = arith.constant 0 : index
    %c0_601 = arith.constant 0 : index
    %346 = vector.load %arg10[%c0_599, %c0_600, %c0_601] : memref<1x64x16xf32, #tpu.memory_space<vmem>>, vector<1x64x16xf32>
    %347 = vector.shape_cast %346 : vector<1x64x16xf32> to vector<64x16xf32>
    %348 = vector.shape_cast %345 : vector<64x16xf32> to vector<1x64x16xf32>
    tpu.vector_store %arg10[%c0_599, %c0_600, %c0_601], %348 {strides = array<i32>} : memref<1x64x16xf32, #tpu.memory_space<vmem>>, vector<1x64x16xf32>,
    return
  }
  func.func @transform_0(%arg0: i32) -> (i32, i32, i32) {
    %c0_i32 = arith.constant 0 : i32
    %c0_i32_0 = arith.constant 0 : i32
    %c0_i32_1 = arith.constant 0 : i32
    return %arg0, %c0_i32, %c0_i32_0 : i32, i32, i32
  }
  func.func @transform_1(%arg0: i32) -> (i32, i32) {
    %c0_i32 = arith.constant 0 : i32
    %c0_i32_0 = arith.constant 0 : i32
    %c0_i32_1 = arith.constant 0 : i32
    return %c0_i32, %c0_i32_0 : i32, i32
  }
  func.func @transform_2(%arg0: i32) -> (i32, i32) {
    %c0_i32 = arith.constant 0 : i32
    %c0_i32_0 = arith.constant 0 : i32
    %c0_i32_1 = arith.constant 0 : i32
    return %c0_i32, %c0_i32_0 : i32, i32
  }
  func.func @transform_3(%arg0: i32) -> (i32, i32) {
    %c0_i32 = arith.constant 0 : i32
    %c0_i32_0 = arith.constant 0 : i32
    %c0_i32_1 = arith.constant 0 : i32
    return %c0_i32, %c0_i32_0 : i32, i32
  }
  func.func @transform_4(%arg0: i32) -> (i32, i32) {
    %c0_i32 = arith.constant 0 : i32
    %c0_i32_0 = arith.constant 0 : i32
    %c0_i32_1 = arith.constant 0 : i32
    return %c0_i32, %c0_i32_0 : i32, i32
  }
  func.func @transform_5(%arg0: i32) -> (i32, i32) {
    %c0_i32 = arith.constant 0 : i32
    %c0_i32_0 = arith.constant 0 : i32
    %c0_i32_1 = arith.constant 0 : i32
    return %c0_i32, %c0_i32_0 : i32, i32
  }
  func.func @transform_6(%arg0: i32) -> (i32, i32) {
    %c0_i32 = arith.constant 0 : i32
    %c0_i32_0 = arith.constant 0 : i32
    %c0_i32_1 = arith.constant 0 : i32
    return %c0_i32, %c0_i32_0 : i32, i32
  }
  func.func @transform_7(%arg0: i32) -> (i32, i32) {
    %c0_i32 = arith.constant 0 : i32
    %c0_i32_0 = arith.constant 0 : i32
    %c0_i32_1 = arith.constant 0 : i32
    return %c0_i32, %c0_i32_0 : i32, i32
  }
  func.func @transform_8(%arg0: i32) -> (i32, i32) {
    %c0_i32 = arith.constant 0 : i32
    %c0_i32_0 = arith.constant 0 : i32
    %c0_i32_1 = arith.constant 0 : i32
    return %c0_i32, %c0_i32_0 : i32, i32
  }
  func.func @transform_9(%arg0: i32) -> (i32, i32, i32) {
    %c0_i32 = arith.constant 0 : i32
    %c0_i32_0 = arith.constant 0 : i32
    %c0_i32_1 = arith.constant 0 : i32
    return %arg0, %c0_i32, %c0_i32_0 : i32, i32, i32
  }
}

</mosaic_0001>

<llo_original>
// kernel: tile.13
$region0: #{tile.13}
  #allocation0 [shape = 's32[1]{0}', space=sflag, size = 0x4, scoped, tag = 'scoped memory for tile.13']
  %s0 = inlined_call_operand.vmem [shape: f32[64], index: 0, kind: input, shape index: {}]
  %s1 = inlined_call_operand.vmem [shape: f32[4,64], index: 1, kind: output, shape index: {}]
  // Predicated region
  $region2: #{tile.13} parent=0 // pred_check
    _
  $region3: #{tile.13} parent=0 // pred_check_branch
    %3 = sbr.rel (0) target = $region5
  $region4: #{tile.13} parent=0 // pred_region
    _
  $region5: #{tile.13} parent=0 // pred_fallthru
    _
  %v4 = vld [vmem:[%s0] ss:$0 sm:$0xff]
  %5 = vst [vmem:[%s1] sm:$0xf] %v4

// kernel: tile.14
$region0: #{tile.14}
  %s0 = inlined_call_operand.vmem [shape: f32[4,64], index: 0, kind: input, shape index: {}]
  %s1 = inlined_call_operand.vmem [shape: f32[1,256], index: 1, kind: output, shape index: {}]
  $region1: #{tile.14} parent=0
    #allocation0 [shape = 'u8[8192]{0}', space=vmem, size = 0x2000, scoped, tag = 'scoped mem for output reshape']
    #allocation1 [shape = 'u8[4096]{0}', space=vmem, size = 0x1000, scoped, tag = 'scoped mem for input reshape']
    %s3 = sshll.u32 1, 4
    %s4 = ssub.s32 %s3, 1
    %v5 = vld [vmem:[%s0] sm:%s4]
    %6 = vst [vmem:[#allocation1] sm:%s4] %v5
    %s7 = smov 3
    %v8 = vld [vmem:[#allocation1] ss:$2 sm:%s7]
    %vm9 = vcmask 523264
    %10 = vst.msk [vmem:[#allocation0] ss:$8 sm:$0x3] %vm9, %v8
    %s11 = scalar_lea.vmem [#allocation1], 1
    %s12 = smov 3
    %v13 = vld [vmem:[%s11] ss:$2 sm:%s12]
    %14 = vrot.lane.b32.xlu0 %v13, 64
    %v15 = vpop.permute.xlu0 %14
    %vm16 = vcmask 1048064
    %17 = vst.msk [vmem:[#allocation0] ss:$8 sm:$0x3] %vm16, %v15
    %s19 = sshll.u32 1, 1
    %s20 = ssub.s32 %s19, 1
    %v22 = vld [vmem:[#allocation0] sm:%s20]
    %s23 = sshll.u32 1, 1
    %s24 = ssub.s32 %s23, 1
    %25 = vst [vmem:[%s1] sm:%s24] %v22
    %s26 = scalar_lea.vmem [#allocation0], 8
    %v27 = vld [vmem:[%s26] sm:%s20]
    %s28 = sshll.u32 1, 1
    %s29 = ssub.s32 %s28, 1
    %s30 = scalar_lea.vmem %s1, 1
    %31 = vst [vmem:[%s30] sm:%s29] %v27

// kernel: tile.18
$region0: #{tile.18}
  #allocation0 [shape = 's32[1]{0}', space=sflag, size = 0x4, scoped, tag = 'scoped memory for tile.18']
  %s0 = inlined_call_operand.vmem [shape: f32[4], index: 0, kind: input, shape index: {}]
  %s1 = inlined_call_operand.vmem [shape: f32[4,4], index: 1, kind: output, shape index: {}]
  // Predicated region
  $region2: #{tile.18} parent=0 // pred_check
    _
  $region3: #{tile.18} parent=0 // pred_check_branch
    %3 = sbr.rel (0) target = $region5
  $region4: #{tile.18} parent=0 // pred_region
    _
  $region5: #{tile.18} parent=0 // pred_fallthru
    _
  %v4 = vld [vmem:[%s0] ss:$0 sm:$0xff]
  %5 = vst [vmem:[%s1] sm:$0xf] %v4

// kernel: tile.19
$region0: #{tile.19}
  %s0 = inlined_call_operand.vmem [shape: f32[4,4], index: 0, kind: input, shape index: {}]
  %s1 = inlined_call_operand.vmem [shape: f32[1,16], index: 1, kind: output, shape index: {}]
  $region1: #{tile.19} parent=0
    #allocation0 [shape = 'u8[4096]{0}', space=vmem, size = 0x1000, scoped, tag = 'scoped mem for output reshape']
    #allocation1 [shape = 'u8[4096]{0}', space=vmem, size = 0x1000, scoped, tag = 'scoped mem for input reshape']
    %s3 = sshll.u32 1, 4
    %s4 = ssub.s32 %s3, 1
    %v5 = vld [vmem:[%s0] sm:%s4]
    %6 = vst [vmem:[#allocation1] sm:%s4] %v5
    %v7 = vld [vmem:[#allocation1] sm:$0x1]
    %vm8 = vcmask 31744
    %9 = vst.msk [vmem:[#allocation0] sm:$0x1] %vm8, %v7
    %s10 = scalar_lea.vmem [#allocation1], 3
    %v11 = vld [vmem:[%s10] sm:$0x1]
    %12 = vrot.lane.b32.xlu0 %v11, 12
    %v13 = vpop.permute.xlu0 %12
    %vm14 = vcmask 130144
    %15 = vst.msk [vmem:[#allocation0] sm:$0x1] %vm14, %v13
    %s16 = scalar_lea.vmem [#allocation1], 2
    %v17 = vld [vmem:[%s16] sm:$0x1]
    %18 = vrot.lane.b32.xlu0 %v17, 8
    %v19 = vpop.permute.xlu0 %18
    %vm20 = vcmask 97344
    %21 = vst.msk [vmem:[#allocation0] sm:$0x1] %vm20, %v19
    %s22 = scalar_lea.vmem [#allocation1], 1
    %v23 = vld [vmem:[%s22] sm:$0x1]
    %24 = vrot.lane.b32.xlu0 %v23, 4
    %v25 = vpop.permute.xlu0 %24
    %vm26 = vcmask 64544
    %27 = vst.msk [vmem:[#allocation0] sm:$0x1] %vm26, %v25
    %s29 = sshll.u32 1, 1
    %s30 = ssub.s32 %s29, 1
    %v32 = vld [vmem:[#allocation0] sm:%s30]
    %s33 = sshll.u32 1, 1
    %s34 = ssub.s32 %s33, 1
    %35 = vst [vmem:[%s1] sm:%s34] %v32

// kernel: center_speed_dense_forward.1
$region0: #{center_speed_dense_forward.1}
  #allocation0 [shape = 'u32[]', space=smem, size = 0x4, offset = 0x4, fixed_abs, tag = 'smem constant byte address 0x4 - core index']
  #allocation1 [shape = 'u32[144,128]{1,0:T(1,128)}', space=vmem, size = 0x12000, scoped, tag = 'internal scratch']
  #allocation2 [shape = 'f32[64,64]{1,0:T(8,128)}', space=vmem, size = 0x8000, scoped, tag = 'scratch operand']
  #allocation3 [shape = 'f32[16,576]{1,0:T(8,128)}', space=vmem, size = 0xa000, scoped, tag = 'scratch operand']
  #allocation4 [shape = 'f32[16,128]{1,0:T(8,128)}', space=vmem, size = 0x2000, scoped, tag = 'scratch operand']
  #allocation5 [shape = 'f32[16,1152]{1,0:T(8,128)}', space=vmem, size = 0x12000, scoped, tag = 'scratch operand']
  #allocation6 [shape = 'f32[16,256]{1,0:T(8,128)}', space=vmem, size = 0x4000, scoped, tag = 'scratch operand']
  #allocation7 [shape = 'f32[64,64]{1,0:T(8,128)}', space=vmem, size = 0x8000, scoped, tag = 'scratch operand']
  #allocation8 [shape = 'f32[64,576]{1,0:T(8,128)}', space=vmem, size = 0x28000, scoped, tag = 'scratch operand']
  %s0 = inlined_call_operand.vmem [shape: bf16[2,64,54], index: 0, kind: input, shape index: {}]
  %s1 = inlined_call_operand.vmem [shape: bf16[54,64], index: 1, kind: input, shape index: {}]
  %s2 = inlined_call_operand.vmem [shape: f32[1,64], index: 2, kind: input, shape index: {}]
  %s3 = inlined_call_operand.vmem [shape: bf16[576,128], index: 3, kind: input, shape index: {}]
  %s4 = inlined_call_operand.vmem [shape: f32[1,128], index: 4, kind: input, shape index: {}]
  %s5 = inlined_call_operand.vmem [shape: bf16[1152,256], index: 5, kind: input, shape index: {}]
  %s6 = inlined_call_operand.vmem [shape: f32[1,256], index: 6, kind: input, shape index: {}]
  %s7 = inlined_call_operand.vmem [shape: bf16[576,16], index: 7, kind: input, shape index: {}]
  %s8 = inlined_call_operand.vmem [shape: f32[1,16], index: 8, kind: input, shape index: {}]
  %s9 = inlined_call_operand.vmem [shape: f32[2,64,16], index: 9, kind: output, shape index: {}]
  %s10 = sld [smem:[#allocation0]]
  $region69: #{center_speed_dense_forward.1} parent=0
    _
  %s12 = ssub.s32 1, %s10
  %s13 = scalar_select 0, %s12, %s10
  loop: start=0, step=1, limit=4
  $region2: #{center_speed_dense_forward.1} parent=0 // loop_pre_header
    _
  $region3: #{center_speed_dense_forward.1} parent=0 // loop_header
    %s15 = sphi 0, %s19
    %p16 = scmp.ge.s32.totalorder %s15, 4
    %s25 = sphi 0, %s27
    %s28 = sphi 0, %s25
    %s29 = sphi 0, %s28
    %s45 = sphi 0, %s29
    %s49 = sphi 0, %s49
    %s51 = sphi 0, %s49
    %s52 = sphi 0, %s51
    %s66 = sphi 0, %s52
    %s70 = sphi 0, %s70
    %s72 = sphi 0, %s70
    %s73 = sphi 0, %s72
    %s87 = sphi 0, %s73
    %s91 = sphi 0, %s91
    %s93 = sphi 0, %s91
    %s94 = sphi 0, %s93
    %s108 = sphi 0, %s94
    %s112 = sphi 0, %s112
    %s114 = sphi 0, %s112
    %s115 = sphi 0, %s114
    %s129 = sphi 0, %s115
    %s133 = sphi 0, %s133
    %s135 = sphi 0, %s133
    %s136 = sphi 0, %s135
    %s150 = sphi 0, %s136
    %s154 = sphi 0, %s154
    %s156 = sphi 0, %s154
    %s157 = sphi 0, %s156
    %s171 = sphi 0, %s157
    %s175 = sphi 0, %s175
    %s177 = sphi 0, %s175
    %s178 = sphi 0, %s177
    %s192 = sphi 0, %s178
    %s196 = sphi 0, %s196
    %s198 = sphi 0, %s196
    %s199 = sphi 0, %s198
    %s213 = sphi 0, %s199
    %s219 = sphi 0, %s221
    %s222 = sphi 0, %s219
    %s223 = sphi 0, %s222
    %s239 = sphi 0, %s223
  $region4: #{center_speed_dense_forward.1} parent=0 // loop_header_branch
    %18 = sbr.rel (%p16) target = $region8
  $region5: #{center_speed_dense_forward.1} parent=0 // loop_body
    %s20 = ssub.s32 %s15, 1
    %s21 = ssub.s32 %s15, 2
    %s22 = sadd.s32 %s15, 1
    %s23 = ssub.s32 %s15, %s22
    %p24 = scmp.eq.s32.totalorder %s23, 0
    %s26 = sadd.s32 %s25, 1
    %s27 = scalar_select %p24, %s25, %s26
    %p30 = pneg %p24
    %p31 = scmp.eq.s32.totalorder %s15, 1
    %p32 = por %p30, %p31
    %p33 = scmp.ne.s32.totalorder %s25, %s28
    %p34 = scmp.eq.s32.totalorder %s15, 0
    %p35 = por %p33, %p34
    %p36 = scmp.ne.s32.totalorder %s25, %s28
    %p37 = scmp.eq.s32.totalorder %s20, 1
    %p38 = por %p36, %p37
    %p39 = scmp.ne.s32.totalorder %s28, %s29
    %p40 = scmp.eq.s32.totalorder %s20, 0
    %p41 = por %p39, %p40
    %p42 = scmp.ne.s32.totalorder %s28, %s29
    %p43 = scmp.eq.s32.totalorder %s21, 1
    %p44 = por %p42, %p43
    %p46 = scmp.ne.s32.totalorder %s29, %s45
    %p47 = scmp.eq.s32.totalorder %s21, 0
    %p48 = por %p46, %p47
    %s50 = sadd.s32 %s49, 1
    %p53 = scmp.eq.s32.totalorder %s15, 1
    %p54 = scmp.ne.s32.totalorder %s49, %s51
    %p55 = scmp.eq.s32.totalorder %s15, 0
    %p56 = por %p54, %p55
    %p57 = scmp.ne.s32.totalorder %s49, %s51
    %p58 = scmp.eq.s32.totalorder %s20, 1
    %p59 = por %p57, %p58
    %p60 = scmp.ne.s32.totalorder %s51, %s52
    %p61 = scmp.eq.s32.totalorder %s20, 0
    %p62 = por %p60, %p61
    %p63 = scmp.ne.s32.totalorder %s51, %s52
    %p64 = scmp.eq.s32.totalorder %s21, 1
    %p65 = por %p63, %p64
    %p67 = scmp.ne.s32.totalorder %s52, %s66
    %p68 = scmp.eq.s32.totalorder %s21, 0
    %p69 = por %p67, %p68
    %s71 = sadd.s32 %s70, 1
    %p74 = scmp.eq.s32.totalorder %s15, 1
    %p75 = scmp.ne.s32.totalorder %s70, %s72
    %p76 = scmp.eq.s32.totalorder %s15, 0
    %p77 = por %p75, %p76
    %p78 = scmp.ne.s32.totalorder %s70, %s72
    %p79 = scmp.eq.s32.totalorder %s20, 1
    %p80 = por %p78, %p79
    %p81 = scmp.ne.s32.totalorder %s72, %s73
    %p82 = scmp.eq.s32.totalorder %s20, 0
    %p83 = por %p81, %p82
    %p84 = scmp.ne.s32.totalorder %s72, %s73
    %p85 = scmp.eq.s32.totalorder %s21, 1
    %p86 = por %p84, %p85
    %p88 = scmp.ne.s32.totalorder %s73, %s87
    %p89 = scmp.eq.s32.totalorder %s21, 0
    %p90 = por %p88, %p89
    %s92 = sadd.s32 %s91, 1
    %p95 = scmp.eq.s32.totalorder %s15, 1
    %p96 = scmp.ne.s32.totalorder %s91, %s93
    %p97 = scmp.eq.s32.totalorder %s15, 0
    %p98 = por %p96, %p97
    %p99 = scmp.ne.s32.totalorder %s91, %s93
    %p100 = scmp.eq.s32.totalorder %s20, 1
    %p101 = por %p99, %p100
    %p102 = scmp.ne.s32.totalorder %s93, %s94
    %p103 = scmp.eq.s32.totalorder %s20, 0
    %p104 = por %p102, %p103
    %p105 = scmp.ne.s32.totalorder %s93, %s94
    %p106 = scmp.eq.s32.totalorder %s21, 1
    %p107 = por %p105, %p106
    %p109 = scmp.ne.s32.totalorder %s94, %s108
    %p110 = scmp.eq.s32.totalorder %s21, 0
    %p111 = por %p109, %p110
    %s113 = sadd.s32 %s112, 1
    %p116 = scmp.eq.s32.totalorder %s15, 1
    %p117 = scmp.ne.s32.totalorder %s112, %s114
    %p118 = scmp.eq.s32.totalorder %s15, 0
    %p119 = por %p117, %p118
    %p120 = scmp.ne.s32.totalorder %s112, %s114
    %p121 = scmp.eq.s32.totalorder %s20, 1
    %p122 = por %p120, %p121
    %p123 = scmp.ne.s32.totalorder %s114, %s115
    %p124 = scmp.eq.s32.totalorder %s20, 0
    %p125 = por %p123, %p124
    %p126 = scmp.ne.s32.totalorder %s114, %s115
    %p127 = scmp.eq.s32.totalorder %s21, 1
    %p128 = por %p126, %p127
    %p130 = scmp.ne.s32.totalorder %s115, %s129
    %p131 = scmp.eq.s32.totalorder %s21, 0
    %p132 = por %p130, %p131
    %s134 = sadd.s32 %s133, 1
    %p137 = scmp.eq.s32.totalorder %s15, 1
    %p138 = scmp.ne.s32.totalorder %s133, %s135
    %p139 = scmp.eq.s32.totalorder %s15, 0
    %p140 = por %p138, %p139
    %p141 = scmp.ne.s32.totalorder %s133, %s135
    %p142 = scmp.eq.s32.totalorder %s20, 1
    %p143 = por %p141, %p142
    %p144 = scmp.ne.s32.totalorder %s135, %s136
    %p145 = scmp.eq.s32.totalorder %s20, 0
    %p146 = por %p144, %p145
    %p147 = scmp.ne.s32.totalorder %s135, %s136
    %p148 = scmp.eq.s32.totalorder %s21, 1
    %p149 = por %p147, %p148
    %p151 = scmp.ne.s32.totalorder %s136, %s150
    %p152 = scmp.eq.s32.totalorder %s21, 0
    %p153 = por %p151, %p152
    %s155 = sadd.s32 %s154, 1
    %p158 = scmp.eq.s32.totalorder %s15, 1
    %p159 = scmp.ne.s32.totalorder %s154, %s156
    %p160 = scmp.eq.s32.totalorder %s15, 0
    %p161 = por %p159, %p160
    %p162 = scmp.ne.s32.totalorder %s154, %s156
    %p163 = scmp.eq.s32.totalorder %s20, 1
    %p164 = por %p162, %p163
    %p165 = scmp.ne.s32.totalorder %s156, %s157
    %p166 = scmp.eq.s32.totalorder %s20, 0
    %p167 = por %p165, %p166
    %p168 = scmp.ne.s32.totalorder %s156, %s157
    %p169 = scmp.eq.s32.totalorder %s21, 1
    %p170 = por %p168, %p169
    %p172 = scmp.ne.s32.totalorder %s157, %s171
    %p173 = scmp.eq.s32.totalorder %s21, 0
    %p174 = por %p172, %p173
    %s176 = sadd.s32 %s175, 1
    %p179 = scmp.eq.s32.totalorder %s15, 1
    %p180 = scmp.ne.s32.totalorder %s175, %s177
    %p181 = scmp.eq.s32.totalorder %s15, 0
    %p182 = por %p180, %p181
    %p183 = scmp.ne.s32.totalorder %s175, %s177
    %p184 = scmp.eq.s32.totalorder %s20, 1
    %p185 = por %p183, %p184
    %p186 = scmp.ne.s32.totalorder %s177, %s178
    %p187 = scmp.eq.s32.totalorder %s20, 0
    %p188 = por %p186, %p187
    %p189 = scmp.ne.s32.totalorder %s177, %s178
    %p190 = scmp.eq.s32.totalorder %s21, 1
    %p191 = por %p189, %p190
    %p193 = scmp.ne.s32.totalorder %s178, %s192
    %p194 = scmp.eq.s32.totalorder %s21, 0
    %p195 = por %p193, %p194
    %s197 = sadd.s32 %s196, 1
    %p200 = scmp.eq.s32.totalorder %s15, 1
    %p201 = scmp.ne.s32.totalorder %s196, %s198
    %p202 = scmp.eq.s32.totalorder %s15, 0
    %p203 = por %p201, %p202
    %p204 = scmp.ne.s32.totalorder %s196, %s198
    %p205 = scmp.eq.s32.totalorder %s20, 1
    %p206 = por %p204, %p205
    %p207 = scmp.ne.s32.totalorder %s198, %s199
    %p208 = scmp.eq.s32.totalorder %s20, 0
    %p209 = por %p207, %p208
    %p210 = scmp.ne.s32.totalorder %s198, %s199
    %p211 = scmp.eq.s32.totalorder %s21, 1
    %p212 = por %p210, %p211
    %p214 = scmp.ne.s32.totalorder %s199, %s213
    %p215 = scmp.eq.s32.totalorder %s21, 0
    %p216 = por %p214, %p215
    %s217 = ssub.s32 %s15, %s22
    %p218 = scmp.eq.s32.totalorder %s217, 0
    %s220 = sadd.s32 %s219, 1
    %s221 = scalar_select %p218, %s219, %s220
    %p224 = pneg %p218
    %p225 = scmp.eq.s32.totalorder %s15, 1
    %p226 = por %p224, %p225
    %p227 = scmp.ne.s32.totalorder %s219, %s222
    %p228 = scmp.eq.s32.totalorder %s15, 0
    %p229 = por %p227, %p228
    %p230 = scmp.ne.s32.totalorder %s219, %s222
    %p231 = scmp.eq.s32.totalorder %s20, 1
    %p232 = por %p230, %p231
    %p233 = scmp.ne.s32.totalorder %s222, %s223
    %p234 = scmp.eq.s32.totalorder %s20, 0
    %p235 = por %p233, %p234
    %p236 = scmp.ne.s32.totalorder %s222, %s223
    %p237 = scmp.eq.s32.totalorder %s21, 1
    %p238 = por %p236, %p237
    %p240 = scmp.ne.s32.totalorder %s223, %s239
    %p241 = scmp.eq.s32.totalorder %s21, 0
    %p242 = por %p240, %p241
    %p243 = scmp.le.s32.totalorder 1, %s15
    %p244 = scmp.lt.s32.totalorder %s15, 3
    %p245 = pnand %p243, %p244
    %p246 = pneg %p245
    // Predicated region
    $region9: #{center_speed_dense_forward.1} parent=5 // pred_check
      _
    $region10: #{center_speed_dense_forward.1} parent=5 // pred_check_branch
      %248 = sbr.rel (%p245) target = $region12
    $region11: #{center_speed_dense_forward.1} parent=5 // pred_region
      %s249 = ssub.s32 %s15, 1
      // Predicated region
      $region13: #{center_speed_dense_forward.1} parent=11 // pred_check
        %p250 = pneg %p62
      $region14: #{center_speed_dense_forward.1} parent=11 // pred_check_branch
        %252 = sbr.rel (%p250) target = $region16
      $region15: #{center_speed_dense_forward.1} parent=11 // pred_region
        _
      $region16: #{center_speed_dense_forward.1} parent=11 // pred_fallthru
        _
      // Predicated region
      $region17: #{center_speed_dense_forward.1} parent=11 // pred_check
        %p253 = pneg %p83
      $region18: #{center_speed_dense_forward.1} parent=11 // pred_check_branch
        %255 = sbr.rel (%p253) target = $region20
      $region19: #{center_speed_dense_forward.1} parent=11 // pred_region
        _
      $region20: #{center_speed_dense_forward.1} parent=11 // pred_fallthru
        _
      // Predicated region
      $region21: #{center_speed_dense_forward.1} parent=11 // pred_check
        %p256 = pneg %p104
      $region22: #{center_speed_dense_forward.1} parent=11 // pred_check_branch
        %258 = sbr.rel (%p256) target = $region24
      $region23: #{center_speed_dense_forward.1} parent=11 // pred_region
        _
      $region24: #{center_speed_dense_forward.1} parent=11 // pred_fallthru
        _
      // Predicated region
      $region25: #{center_speed_dense_forward.1} parent=11 // pred_check
        %p259 = pneg %p125
      $region26: #{center_speed_dense_forward.1} parent=11 // pred_check_branch
        %261 = sbr.rel (%p259) target = $region28
      $region27: #{center_speed_dense_forward.1} parent=11 // pred_region
        _
      $region28: #{center_speed_dense_forward.1} parent=11 // pred_fallthru
        _
      // Predicated region
      $region29: #{center_speed_dense_forward.1} parent=11 // pred_check
        %p262 = pneg %p146
      $region30: #{center_speed_dense_forward.1} parent=11 // pred_check_branch
        %264 = sbr.rel (%p262) target = $region32
      $region31: #{center_speed_dense_forward.1} parent=11 // pred_region
        _
      $region32: #{center_speed_dense_forward.1} parent=11 // pred_fallthru
        _
      // Predicated region
      $region33: #{center_speed_dense_forward.1} parent=11 // pred_check
        %p265 = pneg %p167
      $region34: #{center_speed_dense_forward.1} parent=11 // pred_check_branch
        %267 = sbr.rel (%p265) target = $region36
      $region35: #{center_speed_dense_forward.1} parent=11 // pred_region
        _
      $region36: #{center_speed_dense_forward.1} parent=11 // pred_fallthru
        _
      // Predicated region
      $region37: #{center_speed_dense_forward.1} parent=11 // pred_check
        %p268 = pneg %p188
      $region38: #{center_speed_dense_forward.1} parent=11 // pred_check_branch
        %270 = sbr.rel (%p268) target = $region40
      $region39: #{center_speed_dense_forward.1} parent=11 // pred_region
        _
      $region40: #{center_speed_dense_forward.1} parent=11 // pred_fallthru
        _
      // Predicated region
      $region41: #{center_speed_dense_forward.1} parent=11 // pred_check
        %p271 = pneg %p209
      $region42: #{center_speed_dense_forward.1} parent=11 // pred_check_branch
        %273 = sbr.rel (%p271) target = $region44
      $region43: #{center_speed_dense_forward.1} parent=11 // pred_region
        _
      $region44: #{center_speed_dense_forward.1} parent=11 // pred_fallthru
        _
    $region12: #{center_speed_dense_forward.1} parent=5 // pred_fallthru
      _
    %p274 = scmp.lt.s32.totalorder %s15, 2
    // Predicated region
    $region45: #{center_speed_dense_forward.1} parent=5 // pred_check
      %p275 = pneg %p274
    $region46: #{center_speed_dense_forward.1} parent=5 // pred_check_branch
      %277 = sbr.rel (%p275) target = $region48
    $region47: #{center_speed_dense_forward.1} parent=5 // pred_region
      // Predicated region
      $region49: #{center_speed_dense_forward.1} parent=47 // pred_check
        %p278 = pneg %p35
      $region50: #{center_speed_dense_forward.1} parent=47 // pred_check_branch
        %280 = sbr.rel (%p278) target = $region52
      $region51: #{center_speed_dense_forward.1} parent=47 // pred_region
        %p281 = scmp.lt.s32.totalorder %s15, 1
        %s282 = scalar_select %p281, %s15, 1
        %s283 = smul.addr %s282, 8
        %s284 = smul.addr %s283, 4
        %s285 = scalar_lea.vmem %s0, %s284
      $region52: #{center_speed_dense_forward.1} parent=47 // pred_fallthru
        _
    $region48: #{center_speed_dense_forward.1} parent=5 // pred_fallthru
      _
    %p286 = scmp.le.s32.totalorder 1, %s15
    %p287 = scmp.lt.s32.totalorder %s15, 3
    %p288 = pnand %p286, %p287
    %p289 = pneg %p288
    // Predicated region
    $region53: #{center_speed_dense_forward.1} parent=5 // pred_check
      _
    $region54: #{center_speed_dense_forward.1} parent=5 // pred_check_branch
      %291 = sbr.rel (%p288) target = $region56
    $region55: #{center_speed_dense_forward.1} parent=5 // pred_region
      %s292 = ssub.s32 %s15, 1
      %p293 = scmp.lt.s32.totalorder %s20, 1
      %s294 = scalar_select %p293, %s20, 1
      %s295 = smul.addr %s294, 8
      %s296 = smul.addr %s295, 4
      %s297 = scalar_lea.vmem %s0, %s296
      %p298 = pneg %p41
      %p299 = pneg %p38
      %p300 = pneg %p62
      %p301 = pneg %p59
      %p302 = pneg %p83
      %p303 = pneg %p80
      %p304 = pneg %p104
      %p305 = pneg %p101
      %p306 = pneg %p125
      %p307 = pneg %p122
      %p308 = pneg %p146
      %p309 = pneg %p143
      %p310 = pneg %p167
      %p311 = pneg %p164
      %p312 = pneg %p188
      %p313 = pneg %p185
      %p314 = pneg %p209
      %p315 = pneg %p206
      %p316 = pneg %p235
      %p317 = pneg %p232
      %p318 = scmp.lt.s32.totalorder %s20, 1
      %s319 = scalar_select %p318, %s20, 1
      %s320 = smul.addr %s319, 8
      %s321 = smul.addr %s320, 8
      %s322 = scalar_lea.vmem %s9, %s321
      %p323 = scmp.lt.s32.totalorder %s20, 1
      %s324 = scalar_select %p323, %s20, 1
      %s325 = smul.addr %s324, 8
      %s326 = smul.addr %s325, 4
      %s327 = scalar_lea.vmem %s0, %s326
      %p328 = scmp.lt.s32.totalorder %s20, 1
      %s329 = scalar_select %p328, %s20, 1
      %s330 = smul.addr %s329, 8
      %s331 = smul.addr %s330, 8
      %s332 = scalar_lea.vmem %s9, %s331
      %v334 = vld [vmem:[%s327] sm:$0xf]
      %v335 = vld [vmem:[%s327 + $0x4] sm:$0xf]
      %v336 = vld [vmem:[%s327 + $0x8] sm:$0xf]
      %v337 = vld [vmem:[%s327 + $0xc] sm:$0xf]
      %v338 = vld [vmem:[%s327 + $0x10] sm:$0xf]
      %v339 = vld [vmem:[%s327 + $0x14] sm:$0xf]
      %v340 = vld [vmem:[%s327 + $0x18] sm:$0xf]
      %v341 = vld [vmem:[%s327 + $0x1c] sm:$0xf]
      %v342 = vld [vmem:[%s1] sm:$0xf]
      %v343 = vld [vmem:[%s1 + $0x4] sm:$0xf]
      %v344 = vld [vmem:[%s1 + $0x8] sm:$0xf]
      %v345 = vld [vmem:[%s1 + $0xc] sm:$0xf]
      %v346 = vld [vmem:[%s1 + $0x10] sm:$0xf]
      %v347 = vld [vmem:[%s1 + $0x14] sm:$0xf]
      %v348 = vld [vmem:[%s1 + $0x18] sm:$0x7]
      %v349 = vld [vmem:[%s2] sm:$0x1]
      %v351 = vlaneseq
      %v352 = vshrl.u32 %v351, 7
      %v353 = vsub.s32 0, %v352
      %v354 = vrot.slane %v349, %v353
      %v364 = vunpack.c.l.b16 %v334
      %v365 = vunpack.c.l.b16 %v335
      %v366 = vunpack.c.l.b16 %v336
      %v367 = vunpack.c.l.b16 %v337
      %v368 = vunpack.c.l.b16 %v338
      %v369 = vunpack.c.l.b16 %v339
      %v370 = vunpack.c.l.b16 %v340
      %v371 = vunpack.c.l.b16 %v341
      %v372 = vpack.c.b16 %v365, %v364
      %v373 = vpack.c.b16 %v367, %v366
      %v374 = vpack.c.b16 %v369, %v368
      %v375 = vpack.c.b16 %v371, %v370
      %v383 = vunpack.c.l.b16 %v342
      %v384 = vunpack.c.l.b16 %v343
      %v385 = vunpack.c.l.b16 %v344
      %v386 = vunpack.c.l.b16 %v345
      %v387 = vunpack.c.l.b16 %v346
      %v388 = vunpack.c.l.b16 %v347
      %v389 = vunpack.c.l.b16 %v348
      %v390 = vpack.c.b16 %v384, %v383
      %v391 = vpack.c.b16 %v386, %v385
      %v392 = vpack.c.b16 %v388, %v387
      %v393 = vpack.c.b16 %v389, %v389
      %vm397 = vcmask 441344
      %v399 = vsel %vm397, %v372, 0
      %v402 = vsel %vm397, %v373, 0
      %v405 = vsel %vm397, %v374, 0
      %v408 = vsel %vm397, %v375, 0
      %vm410 = vcmask 1042432
      %v412 = vsel %vm410, %v393, 0
      %414 = vmatprep.subr.bf16.mxu0 0
      %415 = vmatpush1.bf16.msra.mxu0 0
      %416 = vmatprep.subr.bf16.mxu0 0
      %417 = vmatpush1.bf16.msra.mxu0 0
      %418 = vmatprep.subr.bf16.mxu0 0
      %419 = vmatpush1.bf16.msra.mxu0 0
      %420 = vmatprep.subr.bf16.mxu0 0
      %421 = vmatpush1.bf16.msra.mxu0 0
      %422 = vmatprep.subr.bf16.mxu0 0
      %423 = vmatpush1.bf16.msra.mxu0 %v412
      %424 = vmatprep.subr.bf16.mxu0 0
      %425 = vmatpush1.bf16.msra.mxu0 %v392
      %426 = vmatprep.subr.bf16.mxu0 0
      %427 = vmatpush1.bf16.msra.mxu0 %v391
      %428 = vmatprep.subr.bf16.mxu0 0
      %429 = vmatpush1.bf16.msra.mxu0 %v390
      %430 = vmatprep.subr.bf16.mxu0 0
      %431 = vmatpush2.bf16.msra.mxu0 0
      %432 = vmatprep.subr.bf16.mxu0 0
      %433 = vmatpush2.bf16.msra.mxu0 0
      %434 = vmatprep.subr.bf16.mxu0 0
      %435 = vmatpush2.bf16.msra.mxu0 0
      %436 = vmatprep.subr.bf16.mxu0 0
      %437 = vmatpush2.bf16.msra.mxu0 0
      %438 = vmatprep.subr.bf16.mxu0 0
      %439 = vmatpush2.bf16.msra.mxu0 0
      %440 = vmatprep.subr.bf16.mxu0 0
      %441 = vmatpush2.bf16.msra.mxu0 0
      %442 = vmatprep.subr.bf16.mxu0 0
      %443 = vmatpush2.bf16.msra.mxu0 0
      %444 = vmatprep.subr.bf16.mxu0 0
      %445 = vmatpush2.bf16.msra.mxu0 0
      %446 = vmatprep.mubr.bf16.mxu0 0
      %447 = vmatmul.mubr.bf16.gmra.mxu0 %v399
      %v448 = vpop.f32.mrf.mxu0
      %v449 = vadd.f32 %v354, %v448
      %v450 = vpop.f32.mrf.mxu0
      %v451 = vpop.f32.mrf.mxu0
      %v452 = vadd.f32 %v354, %v451
      %v453 = vpop.f32.mrf.mxu0
      %454 = vmatprep.mubr.bf16.mxu0 0
      %455 = vmatmul.mubr.bf16.gmra.mxu0 %v402
      %v456 = vpop.f32.mrf.mxu0
      %v457 = vadd.f32 %v354, %v456
      %v458 = vpop.f32.mrf.mxu0
      %v459 = vpop.f32.mrf.mxu0
      %v460 = vadd.f32 %v354, %v459
      %v461 = vpop.f32.mrf.mxu0
      %462 = vmatprep.mubr.bf16.mxu0 0
      %463 = vmatmul.mubr.bf16.gmra.mxu0 %v405
      %v464 = vpop.f32.mrf.mxu0
      %v465 = vadd.f32 %v354, %v464
      %v466 = vpop.f32.mrf.mxu0
      %v467 = vpop.f32.mrf.mxu0
      %v468 = vadd.f32 %v354, %v467
      %v469 = vpop.f32.mrf.mxu0
      %470 = vmatprep.mubr.bf16.mxu0 0
      %471 = vmatmul.mubr.bf16.gmra.mxu0 %v408
      %v472 = vpop.f32.mrf.mxu0
      %v473 = vadd.f32 %v354, %v472
      %v474 = vpop.f32.mrf.mxu0
      %v475 = vpop.f32.mrf.mxu0
      %v476 = vadd.f32 %v354, %v475
      %v477 = vpop.f32.mrf.mxu0
      %478 = vdwg.mxu0
      %vm479 = vcmp.ge.f32.partialorder %v449, 0.0
      %vm480 = vcmp.ge.f32.partialorder %v452, 0.0
      %vm481 = vcmp.ge.f32.partialorder %v457, 0.0
      %vm482 = vcmp.ge.f32.partialorder %v460, 0.0
      %vm483 = vcmp.ge.f32.partialorder %v465, 0.0
      %vm484 = vcmp.ge.f32.partialorder %v468, 0.0
      %vm485 = vcmp.ge.f32.partialorder %v473, 0.0
      %vm486 = vcmp.ge.f32.partialorder %v476, 0.0
      %v487 = vmul.f32 %v449, 0.01
      %v488 = vmul.f32 %v452, 0.01
      %v489 = vmul.f32 %v457, 0.01
      %v490 = vmul.f32 %v460, 0.01
      %v491 = vmul.f32 %v465, 0.01
      %v492 = vmul.f32 %v468, 0.01
      %v493 = vmul.f32 %v473, 0.01
      %v494 = vmul.f32 %v476, 0.01
      %v495 = vsel %vm479, %v449, %v487
      %v496 = vsel %vm480, %v452, %v488
      %v497 = vsel %vm481, %v457, %v489
      %v498 = vsel %vm482, %v460, %v490
      %v499 = vsel %vm483, %v465, %v491
      %v500 = vsel %vm484, %v468, %v492
      %v501 = vsel %vm485, %v473, %v493
      %v502 = vsel %vm486, %v476, %v494
      %vm503 = vcmask 523264
      %504 = vst.msk [vmem:[#allocation2] sm:$0xff] %vm503, %v495
      %505 = vst.msk [vmem:[#allocation2 + $0x8] sm:$0xff] %vm503, %v496
      %506 = vst.msk [vmem:[#allocation2 + $0x10] sm:$0xff] %vm503, %v497
      %507 = vst.msk [vmem:[#allocation2 + $0x18] sm:$0xff] %vm503, %v498
      %508 = vst.msk [vmem:[#allocation2 + $0x20] sm:$0xff] %vm503, %v499
      %509 = vst.msk [vmem:[#allocation2 + $0x28] sm:$0xff] %vm503, %v500
      %510 = vst.msk [vmem:[#allocation2 + $0x30] sm:$0xff] %vm503, %v501
      %511 = vst.msk [vmem:[#allocation2 + $0x38] sm:$0xff] %vm503, %v502
      %512 = vst [vmem:[#allocation3] sm:$0xff] 0.0
      %513 = vst [vmem:[#allocation3 + $0x8] sm:$0xff] 0.0
      %514 = vst [vmem:[#allocation3 + $0x10] sm:$0xff] 0.0
      %515 = vst [vmem:[#allocation3 + $0x18] sm:$0xff] 0.0
      %516 = vst.msk [vmem:[#allocation3 + $0x20] sm:$0xff] %vm503, 0.0
      %517 = vst [vmem:[#allocation3 + $0x28] sm:$0xff] 0.0
      %518 = vst [vmem:[#allocation3 + $0x30] sm:$0xff] 0.0
      %519 = vst [vmem:[#allocation3 + $0x38] sm:$0xff] 0.0
      %520 = vst [vmem:[#allocation3 + $0x40] sm:$0xff] 0.0
      %521 = vst.msk [vmem:[#allocation3 + $0x48] sm:$0xff] %vm503, 0.0
      %v522 = vld [vmem:[#allocation2] sm:$0x7]
      %v524 = vrot.slane %v522, 3
      %vm526 = vcmask 523269
      %527 = vst.msk [vmem:[#allocation3] sm:$0xe0] %vm526, %v524
      %v528 = vld [vmem:[#allocation2 + $0x4] sm:$0x7]
      %v530 = vrot.slane %v528, 7
      %vm532 = vcmask 519169
      %533 = vst.msk [vmem:[#allocation3 + $0x28] sm:$0xe] %vm532, %v530
      %v534 = vld [vmem:[#allocation2 + $0x8] sm:$0x7]
      %v536 = vrot.slane %v534, 3
      %538 = vst.msk [vmem:[#allocation3 + $0x28] sm:$0xe0] %vm526, %v536
      %v539 = vld [vmem:[#allocation2 + $0x10] sm:$0xff]
      %v540 = vld [vmem:[#allocation2 + $0x18] sm:$0xf]
      %vm543 = vcmask 1043456
      %v544 = vrot.slane %v539, 4
      %v545 = vrot.slane %v540, 4
      %v546 = vsel %vm543, %v544, %v545
      %547 = vrot.lane.b32.xlu0 %v544, 64
      %v548 = vpop.permute.xlu0 %547
      %549 = vrot.lane.b32.xlu0 %v546, 64
      %v550 = vpop.permute.xlu0 %549
      %vm553 = vcmask 1048068
      %554 = vst.msk [vmem:[#allocation3] sm:$0xf0] %vm553, %v548
      %vm555 = vcmask 1048064
      %556 = vst.msk [vmem:[#allocation3 + $0x28] sm:$0xff] %vm555, %v550
      %v557 = vld [vmem:[#allocation2] sm:$0xff]
      %v558 = vld [vmem:[#allocation2 + $0x8] sm:$0xf]
      %v561 = vrot.slane %v557, 4
      %v562 = vrot.slane %v558, 4
      %v563 = vsel %vm543, %v561, %v562
      %vm566 = vcmask 523268
      %567 = vst.msk [vmem:[#allocation3 + $0x8] sm:$0xf0] %vm566, %v561
      %568 = vst.msk [vmem:[#allocation3 + $0x30] sm:$0xff] %vm503, %v563
      %v569 = vld [vmem:[#allocation2 + $0x20] sm:$0x7]
      %v571 = vrot.slane %v569, 7
      %572 = vrot.lane.b32.xlu0 %v571, 64
      %v573 = vpop.permute.xlu0 %572
      %vm575 = vcmask 1043969
      %576 = vst.msk [vmem:[#allocation3 + $0x8] sm:$0xe] %vm575, %v573
      %v577 = vld [vmem:[#allocation2 + $0x24] sm:$0x7]
      %v579 = vrot.slane %v577, 3
      %580 = vrot.lane.b32.xlu0 %v579, 64
      %v581 = vpop.permute.xlu0 %580
      %vm583 = vcmask 1048069
      %584 = vst.msk [vmem:[#allocation3 + $0x8] sm:$0xe0] %vm583, %v581
      %v585 = vld [vmem:[#allocation2 + $0x28] sm:$0x7]
      %v587 = vrot.slane %v585, 7
      %588 = vrot.lane.b32.xlu0 %v587, 64
      %v589 = vpop.permute.xlu0 %588
      %591 = vst.msk [vmem:[#allocation3 + $0x30] sm:$0xe] %vm575, %v589
      %v592 = vld [vmem:[#allocation2 + $0x2c] sm:$0x7]
      %v594 = vrot.slane %v592, 3
      %595 = vrot.lane.b32.xlu0 %v594, 64
      %v596 = vpop.permute.xlu0 %595
      %598 = vst.msk [vmem:[#allocation3 + $0x30] sm:$0xe0] %vm583, %v596
      %v599 = vld [vmem:[#allocation2 + $0x30] sm:$0xff]
      %v600 = vld [vmem:[#allocation2 + $0x38] sm:$0xff]
      %601 = vst.msk [vmem:[#allocation3 + $0x10] sm:$0xff] %vm503, %v599
      %602 = vst.msk [vmem:[#allocation3 + $0x38] sm:$0xff] %vm503, %v600
      %v603 = vld [vmem:[#allocation2 + $0x20] sm:$0xff]
      %v604 = vld [vmem:[#allocation2 + $0x28] sm:$0xff]
      %607 = vrot.lane.b32.xlu0 %v603, 64
      %v608 = vpop.permute.xlu0 %607
      %609 = vrot.lane.b32.xlu0 %v604, 64
      %v610 = vpop.permute.xlu0 %609
      %613 = vst.msk [vmem:[#allocation3 + $0x10] sm:$0xff] %vm555, %v608
      %614 = vst.msk [vmem:[#allocation3 + $0x38] sm:$0xff] %vm555, %v610
      %v615 = vld [vmem:[#allocation2] sm:$0x7]
      %v617 = vrot.slane %v615, 7
      %619 = vst.msk [vmem:[#allocation3 + $0x18] sm:$0xe] %vm532, %v617
      %v620 = vld [vmem:[#allocation2 + $0x4] sm:$0x7]
      %v622 = vrot.slane %v620, 3
      %624 = vst.msk [vmem:[#allocation3 + $0x18] sm:$0xe0] %vm526, %v622
      %v625 = vld [vmem:[#allocation2 + $0x8] sm:$0x7]
      %v627 = vrot.slane %v625, 7
      %629 = vst.msk [vmem:[#allocation3 + $0x40] sm:$0xe] %vm532, %v627
      %v630 = vld [vmem:[#allocation2 + $0xc] sm:$0x7]
      %v632 = vrot.slane %v630, 3
      %634 = vst.msk [vmem:[#allocation3 + $0x40] sm:$0xe0] %vm526, %v632
      %v635 = vld [vmem:[#allocation2 + $0x10] sm:$0xff]
      %v636 = vld [vmem:[#allocation2 + $0x18] sm:$0xff]
      %639 = vrot.lane.b32.xlu0 %v635, 64
      %v640 = vpop.permute.xlu0 %639
      %641 = vrot.lane.b32.xlu0 %v636, 64
      %v642 = vpop.permute.xlu0 %641
      %645 = vst.msk [vmem:[#allocation3 + $0x18] sm:$0xff] %vm555, %v640
      %646 = vst.msk [vmem:[#allocation3 + $0x40] sm:$0xff] %vm555, %v642
      %v647 = vld [vmem:[#allocation2] sm:$0xff]
      %v648 = vld [vmem:[#allocation2 + $0x8] sm:$0xff]
      %649 = vst.msk [vmem:[#allocation3 + $0x20] sm:$0xff] %vm503, %v647
      %650 = vst.msk [vmem:[#allocation3 + $0x48] sm:$0xff] %vm503, %v648
      %v651 = vld [vmem:[#allocation3] sm:$0xff]
      %v652 = vld [vmem:[#allocation3 + $0x8] sm:$0xff]
      %v653 = vld [vmem:[#allocation3 + $0x10] sm:$0xff]
      %v654 = vld [vmem:[#allocation3 + $0x18] sm:$0xff]
      %v655 = vld [vmem:[#allocation3 + $0x20] sm:$0xff]
      %v656 = vld [vmem:[#allocation3 + $0x28] sm:$0xff]
      %v657 = vld [vmem:[#allocation3 + $0x30] sm:$0xff]
      %v658 = vld [vmem:[#allocation3 + $0x38] sm:$0xff]
      %v659 = vld [vmem:[#allocation3 + $0x40] sm:$0xff]
      %v660 = vld [vmem:[#allocation3 + $0x48] sm:$0xff]
      %v661 = vpack.c.bf16 %v656, %v651
      %v662 = vpack.c.bf16 %v657, %v652
      %v663 = vpack.c.bf16 %v658, %v653
      %v664 = vpack.c.bf16 %v659, %v654
      %v665 = vpack.c.bf16 %v660, %v655
      %v666 = vld [vmem:[%s3] sm:$0xf]
      %v667 = vld [vmem:[%s3 + $0x4] sm:$0xf]
      %v668 = vld [vmem:[%s3 + $0x8] sm:$0xf]
      %v669 = vld [vmem:[%s3 + $0xc] sm:$0xf]
      %v670 = vld [vmem:[%s3 + $0x10] sm:$0xf]
      %v671 = vld [vmem:[%s3 + $0x14] sm:$0xf]
      %v672 = vld [vmem:[%s3 + $0x18] sm:$0xf]
      %v673 = vld [vmem:[%s3 + $0x1c] sm:$0xf]
      %v674 = vld [vmem:[%s3 + $0x20] sm:$0xf]
      %v675 = vld [vmem:[%s3 + $0x24] sm:$0xf]
      %v676 = vld [vmem:[%s3 + $0x28] sm:$0xf]
      %v677 = vld [vmem:[%s3 + $0x2c] sm:$0xf]
      %v678 = vld [vmem:[%s3 + $0x30] sm:$0xf]
      %v679 = vld [vmem:[%s3 + $0x34] sm:$0xf]
      %v680 = vld [vmem:[%s3 + $0x38] sm:$0xf]
      %v681 = vld [vmem:[%s3 + $0x3c] sm:$0xf]
      %v682 = vld [vmem:[%s3 + $0x40] sm:$0xf]
      %v683 = vld [vmem:[%s3 + $0x44] sm:$0xf]
      %v684 = vld [vmem:[%s3 + $0x48] sm:$0xf]
      %v685 = vld [vmem:[%s3 + $0x4c] sm:$0xf]
      %v686 = vld [vmem:[%s3 + $0x50] sm:$0xf]
      %v687 = vld [vmem:[%s3 + $0x54] sm:$0xf]
      %v688 = vld [vmem:[%s3 + $0x58] sm:$0xf]
      %v689 = vld [vmem:[%s3 + $0x5c] sm:$0xf]
      %v690 = vld [vmem:[%s3 + $0x60] sm:$0xf]
      %v691 = vld [vmem:[%s3 + $0x64] sm:$0xf]
      %v692 = vld [vmem:[%s3 + $0x68] sm:$0xf]
      %v693 = vld [vmem:[%s3 + $0x6c] sm:$0xf]
      %v694 = vld [vmem:[%s3 + $0x70] sm:$0xf]
      %v695 = vld [vmem:[%s3 + $0x74] sm:$0xf]
      %v696 = vld [vmem:[%s3 + $0x78] sm:$0xf]
      %v697 = vld [vmem:[%s3 + $0x7c] sm:$0xf]
      %v698 = vld [vmem:[%s3 + $0x80] sm:$0xf]
      %v699 = vld [vmem:[%s3 + $0x84] sm:$0xf]
      %v700 = vld [vmem:[%s3 + $0x88] sm:$0xf]
      %v701 = vld [vmem:[%s3 + $0x8c] sm:$0xf]
      %v702 = vld [vmem:[%s3 + $0x90] sm:$0xf]
      %v703 = vld [vmem:[%s3 + $0x94] sm:$0xf]
      %v704 = vld [vmem:[%s3 + $0x98] sm:$0xf]
      %v705 = vld [vmem:[%s3 + $0x9c] sm:$0xf]
      %v706 = vld [vmem:[%s3 + $0xa0] sm:$0xf]
      %v707 = vld [vmem:[%s3 + $0xa4] sm:$0xf]
      %v708 = vld [vmem:[%s3 + $0xa8] sm:$0xf]
      %v709 = vld [vmem:[%s3 + $0xac] sm:$0xf]
      %v710 = vld [vmem:[%s3 + $0xb0] sm:$0xf]
      %v711 = vld [vmem:[%s3 + $0xb4] sm:$0xf]
      %v712 = vld [vmem:[%s3 + $0xb8] sm:$0xf]
      %v713 = vld [vmem:[%s3 + $0xbc] sm:$0xf]
      %v714 = vld [vmem:[%s3 + $0xc0] sm:$0xf]
      %v715 = vld [vmem:[%s3 + $0xc4] sm:$0xf]
      %v716 = vld [vmem:[%s3 + $0xc8] sm:$0xf]
      %v717 = vld [vmem:[%s3 + $0xcc] sm:$0xf]
      %v718 = vld [vmem:[%s3 + $0xd0] sm:$0xf]
      %v719 = vld [vmem:[%s3 + $0xd4] sm:$0xf]
      %v720 = vld [vmem:[%s3 + $0xd8] sm:$0xf]
      %v721 = vld [vmem:[%s3 + $0xdc] sm:$0xf]
      %v722 = vld [vmem:[%s3 + $0xe0] sm:$0xf]
      %v723 = vld [vmem:[%s3 + $0xe4] sm:$0xf]
      %v724 = vld [vmem:[%s3 + $0xe8] sm:$0xf]
      %v725 = vld [vmem:[%s3 + $0xec] sm:$0xf]
      %v726 = vld [vmem:[%s3 + $0xf0] sm:$0xf]
      %v727 = vld [vmem:[%s3 + $0xf4] sm:$0xf]
      %v728 = vld [vmem:[%s3 + $0xf8] sm:$0xf]
      %v729 = vld [vmem:[%s3 + $0xfc] sm:$0xf]
      %v730 = vld [vmem:[%s3 + $0x100] sm:$0xf]
      %v731 = vld [vmem:[%s3 + $0x104] sm:$0xf]
      %v732 = vld [vmem:[%s3 + $0x108] sm:$0xf]
      %v733 = vld [vmem:[%s3 + $0x10c] sm:$0xf]
      %v734 = vld [vmem:[%s3 + $0x110] sm:$0xf]
      %v735 = vld [vmem:[%s3 + $0x114] sm:$0xf]
      %v736 = vld [vmem:[%s3 + $0x118] sm:$0xf]
      %v737 = vld [vmem:[%s3 + $0x11c] sm:$0xf]
      %v738 = vld [vmem:[%s4] sm:$0x1]
      %v740 = vlaneseq
      %v741 = vshrl.u32 %v740, 7
      %v742 = vsub.s32 0, %v741
      %v743 = vrot.slane %v738, %v742
      %v817 = vunpack.c.l.b16 %v666
      %v818 = vunpack.c.l.b16 %v667
      %v819 = vunpack.c.l.b16 %v668
      %v820 = vunpack.c.l.b16 %v669
      %v821 = vunpack.c.l.b16 %v670
      %v822 = vunpack.c.l.b16 %v671
      %v823 = vunpack.c.l.b16 %v672
      %v824 = vunpack.c.l.b16 %v673
      %v825 = vunpack.c.l.b16 %v674
      %v826 = vunpack.c.l.b16 %v675
      %v827 = vunpack.c.l.b16 %v676
      %v828 = vunpack.c.l.b16 %v677
      %v829 = vunpack.c.l.b16 %v678
      %v830 = vunpack.c.l.b16 %v679
      %v831 = vunpack.c.l.b16 %v680
      %v832 = vunpack.c.l.b16 %v681
      %v833 = vunpack.c.l.b16 %v682
      %v834 = vunpack.c.l.b16 %v683
      %v835 = vunpack.c.l.b16 %v684
      %v836 = vunpack.c.l.b16 %v685
      %v837 = vunpack.c.l.b16 %v686
      %v838 = vunpack.c.l.b16 %v687
      %v839 = vunpack.c.l.b16 %v688
      %v840 = vunpack.c.l.b16 %v689
      %v841 = vunpack.c.l.b16 %v690
      %v842 = vunpack.c.l.b16 %v691
      %v843 = vunpack.c.l.b16 %v692
      %v844 = vunpack.c.l.b16 %v693
      %v845 = vunpack.c.l.b16 %v694
      %v846 = vunpack.c.l.b16 %v695
      %v847 = vunpack.c.l.b16 %v696
      %v848 = vunpack.c.l.b16 %v697
      %v849 = vunpack.c.l.b16 %v698
      %v850 = vunpack.c.l.b16 %v699
      %v851 = vunpack.c.l.b16 %v700
      %v852 = vunpack.c.l.b16 %v701
      %v853 = vunpack.c.l.b16 %v702
      %v854 = vunpack.c.l.b16 %v703
      %v855 = vunpack.c.l.b16 %v704
      %v856 = vunpack.c.l.b16 %v705
      %v857 = vunpack.c.l.b16 %v706
      %v858 = vunpack.c.l.b16 %v707
      %v859 = vunpack.c.l.b16 %v708
      %v860 = vunpack.c.l.b16 %v709
      %v861 = vunpack.c.l.b16 %v710
      %v862 = vunpack.c.l.b16 %v711
      %v863 = vunpack.c.l.b16 %v712
      %v864 = vunpack.c.l.b16 %v713
      %v865 = vunpack.c.l.b16 %v714
      %v866 = vunpack.c.l.b16 %v715
      %v867 = vunpack.c.l.b16 %v716
      %v868 = vunpack.c.l.b16 %v717
      %v869 = vunpack.c.l.b16 %v718
      %v870 = vunpack.c.l.b16 %v719
      %v871 = vunpack.c.l.b16 %v720
      %v872 = vunpack.c.l.b16 %v721
      %v873 = vunpack.c.l.b16 %v722
      %v874 = vunpack.c.l.b16 %v723
      %v875 = vunpack.c.l.b16 %v724
      %v876 = vunpack.c.l.b16 %v725
      %v877 = vunpack.c.l.b16 %v726
      %v878 = vunpack.c.l.b16 %v727
      %v879 = vunpack.c.l.b16 %v728
      %v880 = vunpack.c.l.b16 %v729
      %v881 = vunpack.c.l.b16 %v730
      %v882 = vunpack.c.l.b16 %v731
      %v883 = vunpack.c.l.b16 %v732
      %v884 = vunpack.c.l.b16 %v733
      %v885 = vunpack.c.l.b16 %v734
      %v886 = vunpack.c.l.b16 %v735
      %v887 = vunpack.c.l.b16 %v736
      %v888 = vunpack.c.l.b16 %v737
      %v889 = vpack.c.b16 %v818, %v817
      %v890 = vpack.c.b16 %v820, %v819
      %v891 = vpack.c.b16 %v822, %v821
      %v892 = vpack.c.b16 %v824, %v823
      %v893 = vpack.c.b16 %v826, %v825
      %v894 = vpack.c.b16 %v828, %v827
      %v895 = vpack.c.b16 %v830, %v829
      %v896 = vpack.c.b16 %v832, %v831
      %v897 = vpack.c.b16 %v834, %v833
      %v898 = vpack.c.b16 %v836, %v835
      %v899 = vpack.c.b16 %v838, %v837
      %v900 = vpack.c.b16 %v840, %v839
      %v901 = vpack.c.b16 %v842, %v841
      %v902 = vpack.c.b16 %v844, %v843
      %v903 = vpack.c.b16 %v846, %v845
      %v904 = vpack.c.b16 %v848, %v847
      %v905 = vpack.c.b16 %v850, %v849
      %v906 = vpack.c.b16 %v852, %v851
      %v907 = vpack.c.b16 %v854, %v853
      %v908 = vpack.c.b16 %v856, %v855
      %v909 = vpack.c.b16 %v858, %v857
      %v910 = vpack.c.b16 %v860, %v859
      %v911 = vpack.c.b16 %v862, %v861
      %v912 = vpack.c.b16 %v864, %v863
      %v913 = vpack.c.b16 %v866, %v865
      %v914 = vpack.c.b16 %v868, %v867
      %v915 = vpack.c.b16 %v870, %v869
      %v916 = vpack.c.b16 %v872, %v871
      %v917 = vpack.c.b16 %v874, %v873
      %v918 = vpack.c.b16 %v876, %v875
      %v919 = vpack.c.b16 %v878, %v877
      %v920 = vpack.c.b16 %v880, %v879
      %v921 = vpack.c.b16 %v882, %v881
      %v922 = vpack.c.b16 %v884, %v883
      %v923 = vpack.c.b16 %v886, %v885
      %v924 = vpack.c.b16 %v888, %v887
      %v962 = vsel %vm503, %v665, 0
      %964 = vmatprep.subr.bf16.mxu0 0
      %965 = vmatpush1.bf16.msra.mxu0 %v896
      %966 = vmatprep.subr.bf16.mxu0 0
      %967 = vmatpush1.bf16.msra.mxu0 %v895
      %968 = vmatprep.subr.bf16.mxu0 0
      %969 = vmatpush1.bf16.msra.mxu0 %v894
      %970 = vmatprep.subr.bf16.mxu0 0
      %971 = vmatpush1.bf16.msra.mxu0 %v893
      %972 = vmatprep.subr.bf16.mxu0 0
      %973 = vmatpush1.bf16.msra.mxu0 %v892
      %974 = vmatprep.subr.bf16.mxu0 0
      %975 = vmatpush1.bf16.msra.mxu0 %v891
      %976 = vmatprep.subr.bf16.mxu0 0
      %977 = vmatpush1.bf16.msra.mxu0 %v890
      %978 = vmatprep.subr.bf16.mxu0 0
      %979 = vmatpush1.bf16.msra.mxu0 %v889
      %980 = vmatprep.subr.bf16.mxu0 0
      %981 = vmatpush2.bf16.msra.mxu0 %v904
      %982 = vmatprep.subr.bf16.mxu0 0
      %983 = vmatpush2.bf16.msra.mxu0 %v903
      %984 = vmatprep.subr.bf16.mxu0 0
      %985 = vmatpush2.bf16.msra.mxu0 %v902
      %986 = vmatprep.subr.bf16.mxu0 0
      %987 = vmatpush2.bf16.msra.mxu0 %v901
      %988 = vmatprep.subr.bf16.mxu0 0
      %989 = vmatpush2.bf16.msra.mxu0 %v900
      %990 = vmatprep.subr.bf16.mxu0 0
      %991 = vmatpush2.bf16.msra.mxu0 %v899
      %992 = vmatprep.subr.bf16.mxu0 0
      %993 = vmatpush2.bf16.msra.mxu0 %v898
      %994 = vmatprep.subr.bf16.mxu0 0
      %995 = vmatpush2.bf16.msra.mxu0 %v897
      %996 = vmatprep.mubr.bf16.mxu0 %v662
      %997 = vmatmul.mubr.bf16.gmra.mxu0 %v661
      %v998 = vpop.f32.mrf.mxu0
      %v999 = vadd.f32 %v743, %v998
      %v1000 = vpop.f32.mrf.mxu0
      %v1001 = vpop.f32.mrf.mxu0
      %v1002 = vadd.f32 %v743, %v1001
      %v1003 = vpop.f32.mrf.mxu0
      %1004 = vdwg.mxu0
      %1005 = vmatprep.subr.bf16.mxu0 0
      %1006 = vmatpush1.bf16.msra.mxu0 %v912
      %1007 = vmatprep.subr.bf16.mxu0 0
      %1008 = vmatpush1.bf16.msra.mxu0 %v911
      %1009 = vmatprep.subr.bf16.mxu0 0
      %1010 = vmatpush1.bf16.msra.mxu0 %v910
      %1011 = vmatprep.subr.bf16.mxu0 0
      %1012 = vmatpush1.bf16.msra.mxu0 %v909
      %1013 = vmatprep.subr.bf16.mxu0 0
      %1014 = vmatpush1.bf16.msra.mxu0 %v908
      %1015 = vmatprep.subr.bf16.mxu0 0
      %1016 = vmatpush1.bf16.msra.mxu0 %v907
      %1017 = vmatprep.subr.bf16.mxu0 0
      %1018 = vmatpush1.bf16.msra.mxu0 %v906
      %1019 = vmatprep.subr.bf16.mxu0 0
      %1020 = vmatpush1.bf16.msra.mxu0 %v905
      %1021 = vmatprep.subr.bf16.mxu0 0
      %1022 = vmatpush2.bf16.msra.mxu0 %v920
      %1023 = vmatprep.subr.bf16.mxu0 0
      %1024 = vmatpush2.bf16.msra.mxu0 %v919
      %1025 = vmatprep.subr.bf16.mxu0 0
      %1026 = vmatpush2.bf16.msra.mxu0 %v918
      %1027 = vmatprep.subr.bf16.mxu0 0
      %1028 = vmatpush2.bf16.msra.mxu0 %v917
      %1029 = vmatprep.subr.bf16.mxu0 0
      %1030 = vmatpush2.bf16.msra.mxu0 %v916
      %1031 = vmatprep.subr.bf16.mxu0 0
      %1032 = vmatpush2.bf16.msra.mxu0 %v915
      %1033 = vmatprep.subr.bf16.mxu0 0
      %1034 = vmatpush2.bf16.msra.mxu0 %v914
      %1035 = vmatprep.subr.bf16.mxu0 0
      %1036 = vmatpush2.bf16.msra.mxu0 %v913
      %1037 = vmatprep.mubr.bf16.mxu0 %v664
      %1038 = vmatmul.mubr.bf16.gmra.mxu0 %v663
      %v1039 = vpop.f32.mrf.mxu0
      %v1040 = vadd.f32 %v999, %v1039
      %v1041 = vpop.f32.mrf.mxu0
      %v1042 = vpop.f32.mrf.mxu0
      %v1043 = vadd.f32 %v1002, %v1042
      %v1044 = vpop.f32.mrf.mxu0
      %1045 = vdwg.mxu0
      %1046 = vmatprep.subr.bf16.mxu0 0
      %1047 = vmatpush1.bf16.msra.mxu0 0
      %1048 = vmatprep.subr.bf16.mxu0 0
      %1049 = vmatpush1.bf16.msra.mxu0 0
      %1050 = vmatprep.subr.bf16.mxu0 0
      %1051 = vmatpush1.bf16.msra.mxu0 0
      %1052 = vmatprep.subr.bf16.mxu0 0
      %1053 = vmatpush1.bf16.msra.mxu0 0
      %1054 = vmatprep.subr.bf16.mxu0 0
      %1055 = vmatpush1.bf16.msra.mxu0 %v924
      %1056 = vmatprep.subr.bf16.mxu0 0
      %1057 = vmatpush1.bf16.msra.mxu0 %v923
      %1058 = vmatprep.subr.bf16.mxu0 0
      %1059 = vmatpush1.bf16.msra.mxu0 %v922
      %1060 = vmatprep.subr.bf16.mxu0 0
      %1061 = vmatpush1.bf16.msra.mxu0 %v921
      %1062 = vmatprep.subr.bf16.mxu0 0
      %1063 = vmatpush2.bf16.msra.mxu0 0
      %1064 = vmatprep.subr.bf16.mxu0 0
      %1065 = vmatpush2.bf16.msra.mxu0 0
      %1066 = vmatprep.subr.bf16.mxu0 0
      %1067 = vmatpush2.bf16.msra.mxu0 0
      %1068 = vmatprep.subr.bf16.mxu0 0
      %1069 = vmatpush2.bf16.msra.mxu0 0
      %1070 = vmatprep.subr.bf16.mxu0 0
      %1071 = vmatpush2.bf16.msra.mxu0 0
      %1072 = vmatprep.subr.bf16.mxu0 0
      %1073 = vmatpush2.bf16.msra.mxu0 0
      %1074 = vmatprep.subr.bf16.mxu0 0
      %1075 = vmatpush2.bf16.msra.mxu0 0
      %1076 = vmatprep.subr.bf16.mxu0 0
      %1077 = vmatpush2.bf16.msra.mxu0 0
      %1078 = vmatprep.mubr.bf16.mxu0 0
      %1079 = vmatmul.mubr.bf16.gmra.mxu0 %v962
      %v1080 = vpop.f32.mrf.mxu0
      %v1081 = vadd.f32 %v1040, %v1080
      %v1082 = vpop.f32.mrf.mxu0
      %v1083 = vpop.f32.mrf.mxu0
      %v1084 = vadd.f32 %v1043, %v1083
      %v1085 = vpop.f32.mrf.mxu0
      %1086 = vdwg.mxu0
      %vm1087 = vcmp.ge.f32.partialorder %v1081, 0.0
      %vm1088 = vcmp.ge.f32.partialorder %v1084, 0.0
      %v1089 = vmul.f32 %v1081, 0.01
      %v1090 = vmul.f32 %v1084, 0.01
      %v1091 = vsel %vm1087, %v1081, %v1089
      %v1092 = vsel %vm1088, %v1084, %v1090
      %1093 = vst [vmem:[#allocation4] sm:$0xff] %v1091
      %1094 = vst [vmem:[#allocation4 + $0x8] sm:$0xff] %v1092
      %1095 = vst [vmem:[#allocation5] sm:$0xff] 0.0
      %1096 = vst [vmem:[#allocation5 + $0x8] sm:$0xff] 0.0
      %1097 = vst [vmem:[#allocation5 + $0x10] sm:$0xff] 0.0
      %1098 = vst [vmem:[#allocation5 + $0x18] sm:$0xff] 0.0
      %1099 = vst [vmem:[#allocation5 + $0x20] sm:$0xff] 0.0
      %1100 = vst [vmem:[#allocation5 + $0x28] sm:$0xff] 0.0
      %1101 = vst [vmem:[#allocation5 + $0x30] sm:$0xff] 0.0
      %1102 = vst [vmem:[#allocation5 + $0x38] sm:$0xff] 0.0
      %1103 = vst [vmem:[#allocation5 + $0x40] sm:$0xff] 0.0
      %1104 = vst [vmem:[#allocation5 + $0x48] sm:$0xff] 0.0
      %1105 = vst [vmem:[#allocation5 + $0x50] sm:$0xff] 0.0
      %1106 = vst [vmem:[#allocation5 + $0x58] sm:$0xff] 0.0
      %1107 = vst [vmem:[#allocation5 + $0x60] sm:$0xff] 0.0
      %1108 = vst [vmem:[#allocation5 + $0x68] sm:$0xff] 0.0
      %1109 = vst [vmem:[#allocation5 + $0x70] sm:$0xff] 0.0
      %1110 = vst [vmem:[#allocation5 + $0x78] sm:$0xff] 0.0
      %1111 = vst [vmem:[#allocation5 + $0x80] sm:$0xff] 0.0
      %1112 = vst [vmem:[#allocation5 + $0x88] sm:$0xff] 0.0
      %v1113 = vld [vmem:[#allocation4] sm:$0x7]
      %v1115 = vrot.slane %v1113, 3
      %1117 = vst [vmem:[#allocation5] sm:$0xe0] %v1115
      %v1118 = vld [vmem:[#allocation4 + $0x4] sm:$0x7]
      %v1120 = vrot.slane %v1118, 7
      %1122 = vst [vmem:[#allocation5 + $0x48] sm:$0xe] %v1120
      %v1123 = vld [vmem:[#allocation4 + $0x8] sm:$0x7]
      %v1125 = vrot.slane %v1123, 3
      %1127 = vst [vmem:[#allocation5 + $0x48] sm:$0xe0] %v1125
      %v1128 = vld [vmem:[#allocation4] sm:$0xff]
      %v1129 = vld [vmem:[#allocation4 + $0x8] sm:$0xf]
      %v1132 = vrot.slane %v1128, 4
      %v1133 = vrot.slane %v1129, 4
      %v1134 = vsel %vm543, %v1132, %v1133
      %1137 = vst [vmem:[#allocation5 + $0x8] sm:$0xf0] %v1132
      %1138 = vst [vmem:[#allocation5 + $0x50] sm:$0xff] %v1134
      %v1139 = vld [vmem:[#allocation4 + $0x1] sm:$0x7]
      %v1141 = vrot.slane %v1139, 4
      %1143 = vst [vmem:[#allocation5 + $0x10] sm:$0x70] %v1141
      %v1144 = vld [vmem:[#allocation4 + $0x5] sm:$0x7]
      %1145 = vst [vmem:[#allocation5 + $0x58] sm:$0x7] %v1144
      %v1146 = vld [vmem:[#allocation4 + $0x9] sm:$0x7]
      %v1148 = vrot.slane %v1146, 4
      %1150 = vst [vmem:[#allocation5 + $0x58] sm:$0x70] %v1148
      %v1151 = vld [vmem:[#allocation4] sm:$0x7]
      %v1153 = vrot.slane %v1151, 7
      %1155 = vst [vmem:[#allocation5 + $0x18] sm:$0xe] %v1153
      %v1156 = vld [vmem:[#allocation4 + $0x4] sm:$0x7]
      %v1158 = vrot.slane %v1156, 3
      %1160 = vst [vmem:[#allocation5 + $0x18] sm:$0xe0] %v1158
      %v1161 = vld [vmem:[#allocation4 + $0x8] sm:$0x7]
      %v1163 = vrot.slane %v1161, 7
      %1165 = vst [vmem:[#allocation5 + $0x60] sm:$0xe] %v1163
      %v1166 = vld [vmem:[#allocation4 + $0xc] sm:$0x7]
      %v1168 = vrot.slane %v1166, 3
      %1170 = vst [vmem:[#allocation5 + $0x60] sm:$0xe0] %v1168
      %v1171 = vld [vmem:[#allocation4] sm:$0xff]
      %v1172 = vld [vmem:[#allocation4 + $0x8] sm:$0xff]
      %1173 = vst [vmem:[#allocation5 + $0x20] sm:$0xff] %v1171
      %1174 = vst [vmem:[#allocation5 + $0x68] sm:$0xff] %v1172
      %v1175 = vld [vmem:[#allocation4 + $0x1] sm:$0x7]
      %1176 = vst [vmem:[#allocation5 + $0x28] sm:$0x7] %v1175
      %v1177 = vld [vmem:[#allocation4 + $0x5] sm:$0x7]
      %v1179 = vrot.slane %v1177, 4
      %1181 = vst [vmem:[#allocation5 + $0x28] sm:$0x70] %v1179
      %v1182 = vld [vmem:[#allocation4 + $0x9] sm:$0x7]
      %1183 = vst [vmem:[#allocation5 + $0x70] sm:$0x7] %v1182
      %v1184 = vld [vmem:[#allocation4 + $0xd] sm:$0x7]
      %v1186 = vrot.slane %v1184, 4
      %1188 = vst [vmem:[#allocation5 + $0x70] sm:$0x70] %v1186
      %v1189 = vld [vmem:[#allocation4 + $0x4] sm:$0x7]
      %v1191 = vrot.slane %v1189, 7
      %1193 = vst [vmem:[#allocation5 + $0x30] sm:$0xe] %v1191
      %v1194 = vld [vmem:[#allocation4 + $0x8] sm:$0x7]
      %v1196 = vrot.slane %v1194, 3
      %1198 = vst [vmem:[#allocation5 + $0x30] sm:$0xe0] %v1196
      %v1199 = vld [vmem:[#allocation4 + $0xc] sm:$0x7]
      %v1201 = vrot.slane %v1199, 7
      %1203 = vst [vmem:[#allocation5 + $0x78] sm:$0xe] %v1201
      %v1204 = vld [vmem:[#allocation4 + $0x4] sm:$0xff]
      %v1205 = vld [vmem:[#allocation4 + $0xc] sm:$0xf]
      %1206 = vst [vmem:[#allocation5 + $0x38] sm:$0xff] %v1204
      %1207 = vst [vmem:[#allocation5 + $0x80] sm:$0xf] %v1205
      %v1208 = vld [vmem:[#allocation4 + $0x5] sm:$0x7]
      %1209 = vst [vmem:[#allocation5 + $0x40] sm:$0x7] %v1208
      %v1210 = vld [vmem:[#allocation4 + $0x9] sm:$0x7]
      %v1212 = vrot.slane %v1210, 4
      %1214 = vst [vmem:[#allocation5 + $0x40] sm:$0x70] %v1212
      %v1215 = vld [vmem:[#allocation4 + $0xd] sm:$0x7]
      %1216 = vst [vmem:[#allocation5 + $0x88] sm:$0x7] %v1215
      %v1217 = vld [vmem:[#allocation5] sm:$0xff]
      %v1218 = vld [vmem:[#allocation5 + $0x8] sm:$0xff]
      %v1219 = vld [vmem:[#allocation5 + $0x10] sm:$0xff]
      %v1220 = vld [vmem:[#allocation5 + $0x18] sm:$0xff]
      %v1221 = vld [vmem:[#allocation5 + $0x20] sm:$0xff]
      %v1222 = vld [vmem:[#allocation5 + $0x28] sm:$0xff]
      %v1223 = vld [vmem:[#allocation5 + $0x30] sm:$0xff]
      %v1224 = vld [vmem:[#allocation5 + $0x38] sm:$0xff]
      %v1225 = vld [vmem:[#allocation5 + $0x40] sm:$0xff]
      %v1226 = vld [vmem:[#allocation5 + $0x48] sm:$0xff]
      %v1227 = vld [vmem:[#allocation5 + $0x50] sm:$0xff]
      %v1228 = vld [vmem:[#allocation5 + $0x58] sm:$0xff]
      %v1229 = vld [vmem:[#allocation5 + $0x60] sm:$0xff]
      %v1230 = vld [vmem:[#allocation5 + $0x68] sm:$0xff]
      %v1231 = vld [vmem:[#allocation5 + $0x70] sm:$0xff]
      %v1232 = vld [vmem:[#allocation5 + $0x78] sm:$0xff]
      %v1233 = vld [vmem:[#allocation5 + $0x80] sm:$0xff]
      %v1234 = vld [vmem:[#allocation5 + $0x88] sm:$0xff]
      %v1235 = vpack.c.bf16 %v1226, %v1217
      %v1236 = vpack.c.bf16 %v1227, %v1218
      %v1237 = vpack.c.bf16 %v1228, %v1219
      %v1238 = vpack.c.bf16 %v1229, %v1220
      %v1239 = vpack.c.bf16 %v1230, %v1221
      %v1240 = vpack.c.bf16 %v1231, %v1222
      %v1241 = vpack.c.bf16 %v1232, %v1223
      %v1242 = vpack.c.bf16 %v1233, %v1224
      %v1243 = vpack.c.bf16 %v1234, %v1225
      %v1244 = vld [vmem:[%s5] sm:$0xff]
      %v1245 = vld [vmem:[%s5 + $0x8] sm:$0xff]
      %v1246 = vld [vmem:[%s5 + $0x10] sm:$0xff]
      %v1247 = vld [vmem:[%s5 + $0x18] sm:$0xff]
      %v1248 = vld [vmem:[%s5 + $0x20] sm:$0xff]
      %v1249 = vld [vmem:[%s5 + $0x28] sm:$0xff]
      %v1250 = vld [vmem:[%s5 + $0x30] sm:$0xff]
      %v1251 = vld [vmem:[%s5 + $0x38] sm:$0xff]
      %v1252 = vld [vmem:[%s5 + $0x40] sm:$0xff]
      %v1253 = vld [vmem:[%s5 + $0x48] sm:$0xff]
      %v1254 = vld [vmem:[%s5 + $0x50] sm:$0xff]
      %v1255 = vld [vmem:[%s5 + $0x58] sm:$0xff]
      %v1256 = vld [vmem:[%s5 + $0x60] sm:$0xff]
      %v1257 = vld [vmem:[%s5 + $0x68] sm:$0xff]
      %v1258 = vld [vmem:[%s5 + $0x70] sm:$0xff]
      %v1259 = vld [vmem:[%s5 + $0x78] sm:$0xff]
      %v1260 = vld [vmem:[%s5 + $0x80] sm:$0xff]
      %v1261 = vld [vmem:[%s5 + $0x88] sm:$0xff]
      %v1262 = vld [vmem:[%s5 + $0x90] sm:$0xff]
      %v1263 = vld [vmem:[%s5 + $0x98] sm:$0xff]
      %v1264 = vld [vmem:[%s5 + $0xa0] sm:$0xff]
      %v1265 = vld [vmem:[%s5 + $0xa8] sm:$0xff]
      %v1266 = vld [vmem:[%s5 + $0xb0] sm:$0xff]
      %v1267 = vld [vmem:[%s5 + $0xb8] sm:$0xff]
      %v1268 = vld [vmem:[%s5 + $0xc0] sm:$0xff]
      %v1269 = vld [vmem:[%s5 + $0xc8] sm:$0xff]
      %v1270 = vld [vmem:[%s5 + $0xd0] sm:$0xff]
      %v1271 = vld [vmem:[%s5 + $0xd8] sm:$0xff]
      %v1272 = vld [vmem:[%s5 + $0xe0] sm:$0xff]
      %v1273 = vld [vmem:[%s5 + $0xe8] sm:$0xff]
      %v1274 = vld [vmem:[%s5 + $0xf0] sm:$0xff]
      %v1275 = vld [vmem:[%s5 + $0xf8] sm:$0xff]
      %v1276 = vld [vmem:[%s5 + $0x100] sm:$0xff]
      %v1277 = vld [vmem:[%s5 + $0x108] sm:$0xff]
      %v1278 = vld [vmem:[%s5 + $0x110] sm:$0xff]
      %v1279 = vld [vmem:[%s5 + $0x118] sm:$0xff]
      %v1280 = vld [vmem:[%s5 + $0x120] sm:$0xff]
      %v1281 = vld [vmem:[%s5 + $0x128] sm:$0xff]
      %v1282 = vld [vmem:[%s5 + $0x130] sm:$0xff]
      %v1283 = vld [vmem:[%s5 + $0x138] sm:$0xff]
      %v1284 = vld [vmem:[%s5 + $0x140] sm:$0xff]
      %v1285 = vld [vmem:[%s5 + $0x148] sm:$0xff]
      %v1286 = vld [vmem:[%s5 + $0x150] sm:$0xff]
      %v1287 = vld [vmem:[%s5 + $0x158] sm:$0xff]
      %v1288 = vld [vmem:[%s5 + $0x160] sm:$0xff]
      %v1289 = vld [vmem:[%s5 + $0x168] sm:$0xff]
      %v1290 = vld [vmem:[%s5 + $0x170] sm:$0xff]
      %v1291 = vld [vmem:[%s5 + $0x178] sm:$0xff]
      %v1292 = vld [vmem:[%s5 + $0x180] sm:$0xff]
      %v1293 = vld [vmem:[%s5 + $0x188] sm:$0xff]
      %v1294 = vld [vmem:[%s5 + $0x190] sm:$0xff]
      %v1295 = vld [vmem:[%s5 + $0x198] sm:$0xff]
      %v1296 = vld [vmem:[%s5 + $0x1a0] sm:$0xff]
      %v1297 = vld [vmem:[%s5 + $0x1a8] sm:$0xff]
      %v1298 = vld [vmem:[%s5 + $0x1b0] sm:$0xff]
      %v1299 = vld [vmem:[%s5 + $0x1b8] sm:$0xff]
      %v1300 = vld [vmem:[%s5 + $0x1c0] sm:$0xff]
      %v1301 = vld [vmem:[%s5 + $0x1c8] sm:$0xff]
      %v1302 = vld [vmem:[%s5 + $0x1d0] sm:$0xff]
      %v1303 = vld [vmem:[%s5 + $0x1d8] sm:$0xff]
      %v1304 = vld [vmem:[%s5 + $0x1e0] sm:$0xff]
      %v1305 = vld [vmem:[%s5 + $0x1e8] sm:$0xff]
      %v1306 = vld [vmem:[%s5 + $0x1f0] sm:$0xff]
      %v1307 = vld [vmem:[%s5 + $0x1f8] sm:$0xff]
      %v1308 = vld [vmem:[%s5 + $0x200] sm:$0xff]
      %v1309 = vld [vmem:[%s5 + $0x208] sm:$0xff]
      %v1310 = vld [vmem:[%s5 + $0x210] sm:$0xff]
      %v1311 = vld [vmem:[%s5 + $0x218] sm:$0xff]
      %v1312 = vld [vmem:[%s5 + $0x220] sm:$0xff]
      %v1313 = vld [vmem:[%s5 + $0x228] sm:$0xff]
      %v1314 = vld [vmem:[%s5 + $0x230] sm:$0xff]
      %v1315 = vld [vmem:[%s5 + $0x238] sm:$0xff]
      %v1316 = vld [vmem:[%s5 + $0x240] sm:$0xff]
      %v1317 = vld [vmem:[%s5 + $0x248] sm:$0xff]
      %v1318 = vld [vmem:[%s5 + $0x250] sm:$0xff]
      %v1319 = vld [vmem:[%s5 + $0x258] sm:$0xff]
      %v1320 = vld [vmem:[%s5 + $0x260] sm:$0xff]
      %v1321 = vld [vmem:[%s5 + $0x268] sm:$0xff]
      %v1322 = vld [vmem:[%s5 + $0x270] sm:$0xff]
      %v1323 = vld [vmem:[%s5 + $0x278] sm:$0xff]
      %v1324 = vld [vmem:[%s5 + $0x280] sm:$0xff]
      %v1325 = vld [vmem:[%s5 + $0x288] sm:$0xff]
      %v1326 = vld [vmem:[%s5 + $0x290] sm:$0xff]
      %v1327 = vld [vmem:[%s5 + $0x298] sm:$0xff]
      %v1328 = vld [vmem:[%s5 + $0x2a0] sm:$0xff]
      %v1329 = vld [vmem:[%s5 + $0x2a8] sm:$0xff]
      %v1330 = vld [vmem:[%s5 + $0x2b0] sm:$0xff]
      %v1331 = vld [vmem:[%s5 + $0x2b8] sm:$0xff]
      %v1332 = vld [vmem:[%s5 + $0x2c0] sm:$0xff]
      %v1333 = vld [vmem:[%s5 + $0x2c8] sm:$0xff]
      %v1334 = vld [vmem:[%s5 + $0x2d0] sm:$0xff]
      %v1335 = vld [vmem:[%s5 + $0x2d8] sm:$0xff]
      %v1336 = vld [vmem:[%s5 + $0x2e0] sm:$0xff]
      %v1337 = vld [vmem:[%s5 + $0x2e8] sm:$0xff]
      %v1338 = vld [vmem:[%s5 + $0x2f0] sm:$0xff]
      %v1339 = vld [vmem:[%s5 + $0x2f8] sm:$0xff]
      %v1340 = vld [vmem:[%s5 + $0x300] sm:$0xff]
      %v1341 = vld [vmem:[%s5 + $0x308] sm:$0xff]
      %v1342 = vld [vmem:[%s5 + $0x310] sm:$0xff]
      %v1343 = vld [vmem:[%s5 + $0x318] sm:$0xff]
      %v1344 = vld [vmem:[%s5 + $0x320] sm:$0xff]
      %v1345 = vld [vmem:[%s5 + $0x328] sm:$0xff]
      %v1346 = vld [vmem:[%s5 + $0x330] sm:$0xff]
      %v1347 = vld [vmem:[%s5 + $0x338] sm:$0xff]
      %v1348 = vld [vmem:[%s5 + $0x340] sm:$0xff]
      %v1349 = vld [vmem:[%s5 + $0x348] sm:$0xff]
      %v1350 = vld [vmem:[%s5 + $0x350] sm:$0xff]
      %v1351 = vld [vmem:[%s5 + $0x358] sm:$0xff]
      %v1352 = vld [vmem:[%s5 + $0x360] sm:$0xff]
      %v1353 = vld [vmem:[%s5 + $0x368] sm:$0xff]
      %v1354 = vld [vmem:[%s5 + $0x370] sm:$0xff]
      %v1355 = vld [vmem:[%s5 + $0x378] sm:$0xff]
      %v1356 = vld [vmem:[%s5 + $0x380] sm:$0xff]
      %v1357 = vld [vmem:[%s5 + $0x388] sm:$0xff]
      %v1358 = vld [vmem:[%s5 + $0x390] sm:$0xff]
      %v1359 = vld [vmem:[%s5 + $0x398] sm:$0xff]
      %v1360 = vld [vmem:[%s5 + $0x3a0] sm:$0xff]
      %v1361 = vld [vmem:[%s5 + $0x3a8] sm:$0xff]
      %v1362 = vld [vmem:[%s5 + $0x3b0] sm:$0xff]
      %v1363 = vld [vmem:[%s5 + $0x3b8] sm:$0xff]
      %v1364 = vld [vmem:[%s5 + $0x3c0] sm:$0xff]
      %v1365 = vld [vmem:[%s5 + $0x3c8] sm:$0xff]
      %v1366 = vld [vmem:[%s5 + $0x3d0] sm:$0xff]
      %v1367 = vld [vmem:[%s5 + $0x3d8] sm:$0xff]
      %v1368 = vld [vmem:[%s5 + $0x3e0] sm:$0xff]
      %v1369 = vld [vmem:[%s5 + $0x3e8] sm:$0xff]
      %v1370 = vld [vmem:[%s5 + $0x3f0] sm:$0xff]
      %v1371 = vld [vmem:[%s5 + $0x3f8] sm:$0xff]
      %v1372 = vld [vmem:[%s5 + $0x400] sm:$0xff]
      %v1373 = vld [vmem:[%s5 + $0x408] sm:$0xff]
      %v1374 = vld [vmem:[%s5 + $0x410] sm:$0xff]
      %v1375 = vld [vmem:[%s5 + $0x418] sm:$0xff]
      %v1376 = vld [vmem:[%s5 + $0x420] sm:$0xff]
      %v1377 = vld [vmem:[%s5 + $0x428] sm:$0xff]
      %v1378 = vld [vmem:[%s5 + $0x430] sm:$0xff]
      %v1379 = vld [vmem:[%s5 + $0x438] sm:$0xff]
      %v1380 = vld [vmem:[%s5 + $0x440] sm:$0xff]
      %v1381 = vld [vmem:[%s5 + $0x448] sm:$0xff]
      %v1382 = vld [vmem:[%s5 + $0x450] sm:$0xff]
      %v1383 = vld [vmem:[%s5 + $0x458] sm:$0xff]
      %v1384 = vld [vmem:[%s5 + $0x460] sm:$0xff]
      %v1385 = vld [vmem:[%s5 + $0x468] sm:$0xff]
      %v1386 = vld [vmem:[%s5 + $0x470] sm:$0xff]
      %v1387 = vld [vmem:[%s5 + $0x478] sm:$0xff]
      %v1388 = vld [vmem:[%s6] sm:$0x3]
      %v1390 = vlaneseq
      %v1391 = vshrl.u32 %v1390, 7
      %v1392 = vsub.s32 0, %v1391
      %v1393 = vrot.slane %v1388, %v1392
      %v1394 = vlaneseq
      %v1395 = vshrl.u32 %v1394, 7
      %v1396 = vsub.s32 1, %v1395
      %v1397 = vrot.slane %v1388, %v1396
      %v1544 = vunpack.c.l.b16 %v1244
      %v1545 = vunpack.c.h.b16 %v1244
      %v1546 = vunpack.c.l.b16 %v1245
      %v1547 = vunpack.c.h.b16 %v1245
      %v1548 = vunpack.c.l.b16 %v1246
      %v1549 = vunpack.c.h.b16 %v1246
      %v1550 = vunpack.c.l.b16 %v1247
      %v1551 = vunpack.c.h.b16 %v1247
      %v1552 = vunpack.c.l.b16 %v1248
      %v1553 = vunpack.c.h.b16 %v1248
      %v1554 = vunpack.c.l.b16 %v1249
      %v1555 = vunpack.c.h.b16 %v1249
      %v1556 = vunpack.c.l.b16 %v1250
      %v1557 = vunpack.c.h.b16 %v1250
      %v1558 = vunpack.c.l.b16 %v1251
      %v1559 = vunpack.c.h.b16 %v1251
      %v1560 = vunpack.c.l.b16 %v1252
      %v1561 = vunpack.c.h.b16 %v1252
      %v1562 = vunpack.c.l.b16 %v1253
      %v1563 = vunpack.c.h.b16 %v1253
      %v1564 = vunpack.c.l.b16 %v1254
      %v1565 = vunpack.c.h.b16 %v1254
      %v1566 = vunpack.c.l.b16 %v1255
      %v1567 = vunpack.c.h.b16 %v1255
      %v1568 = vunpack.c.l.b16 %v1256
      %v1569 = vunpack.c.h.b16 %v1256
      %v1570 = vunpack.c.l.b16 %v1257
      %v1571 = vunpack.c.h.b16 %v1257
      %v1572 = vunpack.c.l.b16 %v1258
      %v1573 = vunpack.c.h.b16 %v1258
      %v1574 = vunpack.c.l.b16 %v1259
      %v1575 = vunpack.c.h.b16 %v1259
      %v1576 = vunpack.c.l.b16 %v1260
      %v1577 = vunpack.c.h.b16 %v1260
      %v1578 = vunpack.c.l.b16 %v1261
      %v1579 = vunpack.c.h.b16 %v1261
      %v1580 = vunpack.c.l.b16 %v1262
      %v1581 = vunpack.c.h.b16 %v1262
      %v1582 = vunpack.c.l.b16 %v1263
      %v1583 = vunpack.c.h.b16 %v1263
      %v1584 = vunpack.c.l.b16 %v1264
      %v1585 = vunpack.c.h.b16 %v1264
      %v1586 = vunpack.c.l.b16 %v1265
      %v1587 = vunpack.c.h.b16 %v1265
      %v1588 = vunpack.c.l.b16 %v1266
      %v1589 = vunpack.c.h.b16 %v1266
      %v1590 = vunpack.c.l.b16 %v1267
      %v1591 = vunpack.c.h.b16 %v1267
      %v1592 = vunpack.c.l.b16 %v1268
      %v1593 = vunpack.c.h.b16 %v1268
      %v1594 = vunpack.c.l.b16 %v1269
      %v1595 = vunpack.c.h.b16 %v1269
      %v1596 = vunpack.c.l.b16 %v1270
      %v1597 = vunpack.c.h.b16 %v1270
      %v1598 = vunpack.c.l.b16 %v1271
      %v1599 = vunpack.c.h.b16 %v1271
      %v1600 = vunpack.c.l.b16 %v1272
      %v1601 = vunpack.c.h.b16 %v1272
      %v1602 = vunpack.c.l.b16 %v1273
      %v1603 = vunpack.c.h.b16 %v1273
      %v1604 = vunpack.c.l.b16 %v1274
      %v1605 = vunpack.c.h.b16 %v1274
      %v1606 = vunpack.c.l.b16 %v1275
      %v1607 = vunpack.c.h.b16 %v1275
      %v1608 = vunpack.c.l.b16 %v1276
      %v1609 = vunpack.c.h.b16 %v1276
      %v1610 = vunpack.c.l.b16 %v1277
      %v1611 = vunpack.c.h.b16 %v1277
      %v1612 = vunpack.c.l.b16 %v1278
      %v1613 = vunpack.c.h.b16 %v1278
      %v1614 = vunpack.c.l.b16 %v1279
      %v1615 = vunpack.c.h.b16 %v1279
      %v1616 = vunpack.c.l.b16 %v1280
      %v1617 = vunpack.c.h.b16 %v1280
      %v1618 = vunpack.c.l.b16 %v1281
      %v1619 = vunpack.c.h.b16 %v1281
      %v1620 = vunpack.c.l.b16 %v1282
      %v1621 = vunpack.c.h.b16 %v1282
      %v1622 = vunpack.c.l.b16 %v1283
      %v1623 = vunpack.c.h.b16 %v1283
      %v1624 = vunpack.c.l.b16 %v1284
      %v1625 = vunpack.c.h.b16 %v1284
      %v1626 = vunpack.c.l.b16 %v1285
      %v1627 = vunpack.c.h.b16 %v1285
      %v1628 = vunpack.c.l.b16 %v1286
      %v1629 = vunpack.c.h.b16 %v1286
      %v1630 = vunpack.c.l.b16 %v1287
      %v1631 = vunpack.c.h.b16 %v1287
      %v1632 = vunpack.c.l.b16 %v1288
      %v1633 = vunpack.c.h.b16 %v1288
      %v1634 = vunpack.c.l.b16 %v1289
      %v1635 = vunpack.c.h.b16 %v1289
      %v1636 = vunpack.c.l.b16 %v1290
      %v1637 = vunpack.c.h.b16 %v1290
      %v1638 = vunpack.c.l.b16 %v1291
      %v1639 = vunpack.c.h.b16 %v1291
      %v1640 = vunpack.c.l.b16 %v1292
      %v1641 = vunpack.c.h.b16 %v1292
      %v1642 = vunpack.c.l.b16 %v1293
      %v1643 = vunpack.c.h.b16 %v1293
      %v1644 = vunpack.c.l.b16 %v1294
      %v1645 = vunpack.c.h.b16 %v1294
      %v1646 = vunpack.c.l.b16 %v1295
      %v1647 = vunpack.c.h.b16 %v1295
      %v1648 = vunpack.c.l.b16 %v1296
      %v1649 = vunpack.c.h.b16 %v1296
      %v1650 = vunpack.c.l.b16 %v1297
      %v1651 = vunpack.c.h.b16 %v1297
      %v1652 = vunpack.c.l.b16 %v1298
      %v1653 = vunpack.c.h.b16 %v1298
      %v1654 = vunpack.c.l.b16 %v1299
      %v1655 = vunpack.c.h.b16 %v1299
      %v1656 = vunpack.c.l.b16 %v1300
      %v1657 = vunpack.c.h.b16 %v1300
      %v1658 = vunpack.c.l.b16 %v1301
      %v1659 = vunpack.c.h.b16 %v1301
      %v1660 = vunpack.c.l.b16 %v1302
      %v1661 = vunpack.c.h.b16 %v1302
      %v1662 = vunpack.c.l.b16 %v1303
      %v1663 = vunpack.c.h.b16 %v1303
      %v1664 = vunpack.c.l.b16 %v1304
      %v1665 = vunpack.c.h.b16 %v1304
      %v1666 = vunpack.c.l.b16 %v1305
      %v1667 = vunpack.c.h.b16 %v1305
      %v1668 = vunpack.c.l.b16 %v1306
      %v1669 = vunpack.c.h.b16 %v1306
      %v1670 = vunpack.c.l.b16 %v1307
      %v1671 = vunpack.c.h.b16 %v1307
      %v1672 = vunpack.c.l.b16 %v1308
      %v1673 = vunpack.c.h.b16 %v1308
      %v1674 = vunpack.c.l.b16 %v1309
      %v1675 = vunpack.c.h.b16 %v1309
      %v1676 = vunpack.c.l.b16 %v1310
      %v1677 = vunpack.c.h.b16 %v1310
      %v1678 = vunpack.c.l.b16 %v1311
      %v1679 = vunpack.c.h.b16 %v1311
      %v1680 = vunpack.c.l.b16 %v1312
      %v1681 = vunpack.c.h.b16 %v1312
      %v1682 = vunpack.c.l.b16 %v1313
      %v1683 = vunpack.c.h.b16 %v1313
      %v1684 = vunpack.c.l.b16 %v1314
      %v1685 = vunpack.c.h.b16 %v1314
      %v1686 = vunpack.c.l.b16 %v1315
      %v1687 = vunpack.c.h.b16 %v1315
      %v1688 = vunpack.c.l.b16 %v1316
      %v1689 = vunpack.c.h.b16 %v1316
      %v1690 = vunpack.c.l.b16 %v1317
      %v1691 = vunpack.c.h.b16 %v1317
      %v1692 = vunpack.c.l.b16 %v1318
      %v1693 = vunpack.c.h.b16 %v1318
      %v1694 = vunpack.c.l.b16 %v1319
      %v1695 = vunpack.c.h.b16 %v1319
      %v1696 = vunpack.c.l.b16 %v1320
      %v1697 = vunpack.c.h.b16 %v1320
      %v1698 = vunpack.c.l.b16 %v1321
      %v1699 = vunpack.c.h.b16 %v1321
      %v1700 = vunpack.c.l.b16 %v1322
      %v1701 = vunpack.c.h.b16 %v1322
      %v1702 = vunpack.c.l.b16 %v1323
      %v1703 = vunpack.c.h.b16 %v1323
      %v1704 = vunpack.c.l.b16 %v1324
      %v1705 = vunpack.c.h.b16 %v1324
      %v1706 = vunpack.c.l.b16 %v1325
      %v1707 = vunpack.c.h.b16 %v1325
      %v1708 = vunpack.c.l.b16 %v1326
      %v1709 = vunpack.c.h.b16 %v1326
      %v1710 = vunpack.c.l.b16 %v1327
      %v1711 = vunpack.c.h.b16 %v1327
      %v1712 = vunpack.c.l.b16 %v1328
      %v1713 = vunpack.c.h.b16 %v1328
      %v1714 = vunpack.c.l.b16 %v1329
      %v1715 = vunpack.c.h.b16 %v1329
      %v1716 = vunpack.c.l.b16 %v1330
      %v1717 = vunpack.c.h.b16 %v1330
      %v1718 = vunpack.c.l.b16 %v1331
      %v1719 = vunpack.c.h.b16 %v1331
      %v1720 = vunpack.c.l.b16 %v1332
      %v1721 = vunpack.c.h.b16 %v1332
      %v1722 = vunpack.c.l.b16 %v1333
      %v1723 = vunpack.c.h.b16 %v1333
      %v1724 = vunpack.c.l.b16 %v1334
      %v1725 = vunpack.c.h.b16 %v1334
      %v1726 = vunpack.c.l.b16 %v1335
      %v1727 = vunpack.c.h.b16 %v1335
      %v1728 = vunpack.c.l.b16 %v1336
      %v1729 = vunpack.c.h.b16 %v1336
      %v1730 = vunpack.c.l.b16 %v1337
      %v1731 = vunpack.c.h.b16 %v1337
      %v1732 = vunpack.c.l.b16 %v1338
      %v1733 = vunpack.c.h.b16 %v1338
      %v1734 = vunpack.c.l.b16 %v1339
      %v1735 = vunpack.c.h.b16 %v1339
      %v1736 = vunpack.c.l.b16 %v1340
      %v1737 = vunpack.c.h.b16 %v1340
      %v1738 = vunpack.c.l.b16 %v1341
      %v1739 = vunpack.c.h.b16 %v1341
      %v1740 = vunpack.c.l.b16 %v1342
      %v1741 = vunpack.c.h.b16 %v1342
      %v1742 = vunpack.c.l.b16 %v1343
      %v1743 = vunpack.c.h.b16 %v1343
      %v1744 = vunpack.c.l.b16 %v1344
      %v1745 = vunpack.c.h.b16 %v1344
      %v1746 = vunpack.c.l.b16 %v1345
      %v1747 = vunpack.c.h.b16 %v1345
      %v1748 = vunpack.c.l.b16 %v1346
      %v1749 = vunpack.c.h.b16 %v1346
      %v1750 = vunpack.c.l.b16 %v1347
      %v1751 = vunpack.c.h.b16 %v1347
      %v1752 = vunpack.c.l.b16 %v1348
      %v1753 = vunpack.c.h.b16 %v1348
      %v1754 = vunpack.c.l.b16 %v1349
      %v1755 = vunpack.c.h.b16 %v1349
      %v1756 = vunpack.c.l.b16 %v1350
      %v1757 = vunpack.c.h.b16 %v1350
      %v1758 = vunpack.c.l.b16 %v1351
      %v1759 = vunpack.c.h.b16 %v1351
      %v1760 = vunpack.c.l.b16 %v1352
      %v1761 = vunpack.c.h.b16 %v1352
      %v1762 = vunpack.c.l.b16 %v1353
      %v1763 = vunpack.c.h.b16 %v1353
      %v1764 = vunpack.c.l.b16 %v1354
      %v1765 = vunpack.c.h.b16 %v1354
      %v1766 = vunpack.c.l.b16 %v1355
      %v1767 = vunpack.c.h.b16 %v1355
      %v1768 = vunpack.c.l.b16 %v1356
      %v1769 = vunpack.c.h.b16 %v1356
      %v1770 = vunpack.c.l.b16 %v1357
      %v1771 = vunpack.c.h.b16 %v1357
      %v1772 = vunpack.c.l.b16 %v1358
      %v1773 = vunpack.c.h.b16 %v1358
      %v1774 = vunpack.c.l.b16 %v1359
      %v1775 = vunpack.c.h.b16 %v1359
      %v1776 = vunpack.c.l.b16 %v1360
      %v1777 = vunpack.c.h.b16 %v1360
      %v1778 = vunpack.c.l.b16 %v1361
      %v1779 = vunpack.c.h.b16 %v1361
      %v1780 = vunpack.c.l.b16 %v1362
      %v1781 = vunpack.c.h.b16 %v1362
      %v1782 = vunpack.c.l.b16 %v1363
      %v1783 = vunpack.c.h.b16 %v1363
      %v1784 = vunpack.c.l.b16 %v1364
      %v1785 = vunpack.c.h.b16 %v1364
      %v1786 = vunpack.c.l.b16 %v1365
      %v1787 = vunpack.c.h.b16 %v1365
      %v1788 = vunpack.c.l.b16 %v1366
      %v1789 = vunpack.c.h.b16 %v1366
      %v1790 = vunpack.c.l.b16 %v1367
      %v1791 = vunpack.c.h.b16 %v1367
      %v1792 = vunpack.c.l.b16 %v1368
      %v1793 = vunpack.c.h.b16 %v1368
      %v1794 = vunpack.c.l.b16 %v1369
      %v1795 = vunpack.c.h.b16 %v1369
      %v1796 = vunpack.c.l.b16 %v1370
      %v1797 = vunpack.c.h.b16 %v1370
      %v1798 = vunpack.c.l.b16 %v1371
      %v1799 = vunpack.c.h.b16 %v1371
      %v1800 = vunpack.c.l.b16 %v1372
      %v1801 = vunpack.c.h.b16 %v1372
      %v1802 = vunpack.c.l.b16 %v1373
      %v1803 = vunpack.c.h.b16 %v1373
      %v1804 = vunpack.c.l.b16 %v1374
      %v1805 = vunpack.c.h.b16 %v1374
      %v1806 = vunpack.c.l.b16 %v1375
      %v1807 = vunpack.c.h.b16 %v1375
      %v1808 = vunpack.c.l.b16 %v1376
      %v1809 = vunpack.c.h.b16 %v1376
      %v1810 = vunpack.c.l.b16 %v1377
      %v1811 = vunpack.c.h.b16 %v1377
      %v1812 = vunpack.c.l.b16 %v1378
      %v1813 = vunpack.c.h.b16 %v1378
      %v1814 = vunpack.c.l.b16 %v1379
      %v1815 = vunpack.c.h.b16 %v1379
      %v1816 = vunpack.c.l.b16 %v1380
      %v1817 = vunpack.c.h.b16 %v1380
      %v1818 = vunpack.c.l.b16 %v1381
      %v1819 = vunpack.c.h.b16 %v1381
      %v1820 = vunpack.c.l.b16 %v1382
      %v1821 = vunpack.c.h.b16 %v1382
      %v1822 = vunpack.c.l.b16 %v1383
      %v1823 = vunpack.c.h.b16 %v1383
      %v1824 = vunpack.c.l.b16 %v1384
      %v1825 = vunpack.c.h.b16 %v1384
      %v1826 = vunpack.c.l.b16 %v1385
      %v1827 = vunpack.c.h.b16 %v1385
      %v1828 = vunpack.c.l.b16 %v1386
      %v1829 = vunpack.c.h.b16 %v1386
      %v1830 = vunpack.c.l.b16 %v1387
      %v1831 = vunpack.c.h.b16 %v1387
      %v1832 = vpack.c.b16 %v1546, %v1544
      %v1833 = vpack.c.b16 %v1547, %v1545
      %v1834 = vpack.c.b16 %v1550, %v1548
      %v1835 = vpack.c.b16 %v1551, %v1549
      %v1836 = vpack.c.b16 %v1554, %v1552
      %v1837 = vpack.c.b16 %v1555, %v1553
      %v1838 = vpack.c.b16 %v1558, %v1556
      %v1839 = vpack.c.b16 %v1559, %v1557
      %v1840 = vpack.c.b16 %v1562, %v1560
      %v1841 = vpack.c.b16 %v1563, %v1561
      %v1842 = vpack.c.b16 %v1566, %v1564
      %v1843 = vpack.c.b16 %v1567, %v1565
      %v1844 = vpack.c.b16 %v1570, %v1568
      %v1845 = vpack.c.b16 %v1571, %v1569
      %v1846 = vpack.c.b16 %v1574, %v1572
      %v1847 = vpack.c.b16 %v1575, %v1573
      %v1848 = vpack.c.b16 %v1578, %v1576
      %v1849 = vpack.c.b16 %v1579, %v1577
      %v1850 = vpack.c.b16 %v1582, %v1580
      %v1851 = vpack.c.b16 %v1583, %v1581
      %v1852 = vpack.c.b16 %v1586, %v1584
      %v1853 = vpack.c.b16 %v1587, %v1585
      %v1854 = vpack.c.b16 %v1590, %v1588
      %v1855 = vpack.c.b16 %v1591, %v1589
      %v1856 = vpack.c.b16 %v1594, %v1592
      %v1857 = vpack.c.b16 %v1595, %v1593
      %v1858 = vpack.c.b16 %v1598, %v1596
      %v1859 = vpack.c.b16 %v1599, %v1597
      %v1860 = vpack.c.b16 %v1602, %v1600
      %v1861 = vpack.c.b16 %v1603, %v1601
      %v1862 = vpack.c.b16 %v1606, %v1604
      %v1863 = vpack.c.b16 %v1607, %v1605
      %v1864 = vpack.c.b16 %v1610, %v1608
      %v1865 = vpack.c.b16 %v1611, %v1609
      %v1866 = vpack.c.b16 %v1614, %v1612
      %v1867 = vpack.c.b16 %v1615, %v1613
      %v1868 = vpack.c.b16 %v1618, %v1616
      %v1869 = vpack.c.b16 %v1619, %v1617
      %v1870 = vpack.c.b16 %v1622, %v1620
      %v1871 = vpack.c.b16 %v1623, %v1621
      %v1872 = vpack.c.b16 %v1626, %v1624
      %v1873 = vpack.c.b16 %v1627, %v1625
      %v1874 = vpack.c.b16 %v1630, %v1628
      %v1875 = vpack.c.b16 %v1631, %v1629
      %v1876 = vpack.c.b16 %v1634, %v1632
      %v1877 = vpack.c.b16 %v1635, %v1633
      %v1878 = vpack.c.b16 %v1638, %v1636
      %v1879 = vpack.c.b16 %v1639, %v1637
      %v1880 = vpack.c.b16 %v1642, %v1640
      %v1881 = vpack.c.b16 %v1643, %v1641
      %v1882 = vpack.c.b16 %v1646, %v1644
      %v1883 = vpack.c.b16 %v1647, %v1645
      %v1884 = vpack.c.b16 %v1650, %v1648
      %v1885 = vpack.c.b16 %v1651, %v1649
      %v1886 = vpack.c.b16 %v1654, %v1652
      %v1887 = vpack.c.b16 %v1655, %v1653
      %v1888 = vpack.c.b16 %v1658, %v1656
      %v1889 = vpack.c.b16 %v1659, %v1657
      %v1890 = vpack.c.b16 %v1662, %v1660
      %v1891 = vpack.c.b16 %v1663, %v1661
      %v1892 = vpack.c.b16 %v1666, %v1664
      %v1893 = vpack.c.b16 %v1667, %v1665
      %v1894 = vpack.c.b16 %v1670, %v1668
      %v1895 = vpack.c.b16 %v1671, %v1669
      %v1896 = vpack.c.b16 %v1674, %v1672
      %v1897 = vpack.c.b16 %v1675, %v1673
      %v1898 = vpack.c.b16 %v1678, %v1676
      %v1899 = vpack.c.b16 %v1679, %v1677
      %v1900 = vpack.c.b16 %v1682, %v1680
      %v1901 = vpack.c.b16 %v1683, %v1681
      %v1902 = vpack.c.b16 %v1686, %v1684
      %v1903 = vpack.c.b16 %v1687, %v1685
      %v1904 = vpack.c.b16 %v1690, %v1688
      %v1905 = vpack.c.b16 %v1691, %v1689
      %v1906 = vpack.c.b16 %v1694, %v1692
      %v1907 = vpack.c.b16 %v1695, %v1693
      %v1908 = vpack.c.b16 %v1698, %v1696
      %v1909 = vpack.c.b16 %v1699, %v1697
      %v1910 = vpack.c.b16 %v1702, %v1700
      %v1911 = vpack.c.b16 %v1703, %v1701
      %v1912 = vpack.c.b16 %v1706, %v1704
      %v1913 = vpack.c.b16 %v1707, %v1705
      %v1914 = vpack.c.b16 %v1710, %v1708
      %v1915 = vpack.c.b16 %v1711, %v1709
      %v1916 = vpack.c.b16 %v1714, %v1712
      %v1917 = vpack.c.b16 %v1715, %v1713
      %v1918 = vpack.c.b16 %v1718, %v1716
      %v1919 = vpack.c.b16 %v1719, %v1717
      %v1920 = vpack.c.b16 %v1722, %v1720
      %v1921 = vpack.c.b16 %v1723, %v1721
      %v1922 = vpack.c.b16 %v1726, %v1724
      %v1923 = vpack.c.b16 %v1727, %v1725
      %v1924 = vpack.c.b16 %v1730, %v1728
      %v1925 = vpack.c.b16 %v1731, %v1729
      %v1926 = vpack.c.b16 %v1734, %v1732
      %v1927 = vpack.c.b16 %v1735, %v1733
      %v1928 = vpack.c.b16 %v1738, %v1736
      %v1929 = vpack.c.b16 %v1739, %v1737
      %v1930 = vpack.c.b16 %v1742, %v1740
      %v1931 = vpack.c.b16 %v1743, %v1741
      %v1932 = vpack.c.b16 %v1746, %v1744
      %v1933 = vpack.c.b16 %v1747, %v1745
      %v1934 = vpack.c.b16 %v1750, %v1748
      %v1935 = vpack.c.b16 %v1751, %v1749
      %v1936 = vpack.c.b16 %v1754, %v1752
      %v1937 = vpack.c.b16 %v1755, %v1753
      %v1938 = vpack.c.b16 %v1758, %v1756
      %v1939 = vpack.c.b16 %v1759, %v1757
      %v1940 = vpack.c.b16 %v1762, %v1760
      %v1941 = vpack.c.b16 %v1763, %v1761
      %v1942 = vpack.c.b16 %v1766, %v1764
      %v1943 = vpack.c.b16 %v1767, %v1765
      %v1944 = vpack.c.b16 %v1770, %v1768
      %v1945 = vpack.c.b16 %v1771, %v1769
      %v1946 = vpack.c.b16 %v1774, %v1772
      %v1947 = vpack.c.b16 %v1775, %v1773
      %v1948 = vpack.c.b16 %v1778, %v1776
      %v1949 = vpack.c.b16 %v1779, %v1777
      %v1950 = vpack.c.b16 %v1782, %v1780
      %v1951 = vpack.c.b16 %v1783, %v1781
      %v1952 = vpack.c.b16 %v1786, %v1784
      %v1953 = vpack.c.b16 %v1787, %v1785
      %v1954 = vpack.c.b16 %v1790, %v1788
      %v1955 = vpack.c.b16 %v1791, %v1789
      %v1956 = vpack.c.b16 %v1794, %v1792
      %v1957 = vpack.c.b16 %v1795, %v1793
      %v1958 = vpack.c.b16 %v1798, %v1796
      %v1959 = vpack.c.b16 %v1799, %v1797
      %v1960 = vpack.c.b16 %v1802, %v1800
      %v1961 = vpack.c.b16 %v1803, %v1801
      %v1962 = vpack.c.b16 %v1806, %v1804
      %v1963 = vpack.c.b16 %v1807, %v1805
      %v1964 = vpack.c.b16 %v1810, %v1808
      %v1965 = vpack.c.b16 %v1811, %v1809
      %v1966 = vpack.c.b16 %v1814, %v1812
      %v1967 = vpack.c.b16 %v1815, %v1813
      %v1968 = vpack.c.b16 %v1818, %v1816
      %v1969 = vpack.c.b16 %v1819, %v1817
      %v1970 = vpack.c.b16 %v1822, %v1820
      %v1971 = vpack.c.b16 %v1823, %v1821
      %v1972 = vpack.c.b16 %v1826, %v1824
      %v1973 = vpack.c.b16 %v1827, %v1825
      %v1974 = vpack.c.b16 %v1830, %v1828
      %v1975 = vpack.c.b16 %v1831, %v1829
      %2120 = vmatprep.subr.bf16.mxu0 %v1847
      %2121 = vmatpush1.bf16.msra.mxu0 %v1846
      %2122 = vmatprep.subr.bf16.mxu0 %v1845
      %2123 = vmatpush1.bf16.msra.mxu0 %v1844
      %2124 = vmatprep.subr.bf16.mxu0 %v1843
      %2125 = vmatpush1.bf16.msra.mxu0 %v1842
      %2126 = vmatprep.subr.bf16.mxu0 %v1841
      %2127 = vmatpush1.bf16.msra.mxu0 %v1840
      %2128 = vmatprep.subr.bf16.mxu0 %v1839
      %2129 = vmatpush1.bf16.msra.mxu0 %v1838
      %2130 = vmatprep.subr.bf16.mxu0 %v1837
      %2131 = vmatpush1.bf16.msra.mxu0 %v1836
      %2132 = vmatprep.subr.bf16.mxu0 %v1835
      %2133 = vmatpush1.bf16.msra.mxu0 %v1834
      %2134 = vmatprep.subr.bf16.mxu0 %v1833
      %2135 = vmatpush1.bf16.msra.mxu0 %v1832
      %2136 = vmatprep.subr.bf16.mxu0 %v1863
      %2137 = vmatpush2.bf16.msra.mxu0 %v1862
      %2138 = vmatprep.subr.bf16.mxu0 %v1861
      %2139 = vmatpush2.bf16.msra.mxu0 %v1860
      %2140 = vmatprep.subr.bf16.mxu0 %v1859
      %2141 = vmatpush2.bf16.msra.mxu0 %v1858
      %2142 = vmatprep.subr.bf16.mxu0 %v1857
      %2143 = vmatpush2.bf16.msra.mxu0 %v1856
      %2144 = vmatprep.subr.bf16.mxu0 %v1855
      %2145 = vmatpush2.bf16.msra.mxu0 %v1854
      %2146 = vmatprep.subr.bf16.mxu0 %v1853
      %2147 = vmatpush2.bf16.msra.mxu0 %v1852
      %2148 = vmatprep.subr.bf16.mxu0 %v1851
      %2149 = vmatpush2.bf16.msra.mxu0 %v1850
      %2150 = vmatprep.subr.bf16.mxu0 %v1849
      %2151 = vmatpush2.bf16.msra.mxu0 %v1848
      %2152 = vmatprep.mubr.bf16.mxu0 %v1236
      %2153 = vmatmul.mubr.bf16.gmra.mxu0 %v1235
      %v2154 = vpop.f32.mrf.mxu0
      %v2155 = vadd.f32 %v1393, %v2154
      %v2156 = vpop.f32.mrf.mxu0
      %v2157 = vadd.f32 %v1397, %v2156
      %v2158 = vpop.f32.mrf.mxu0
      %v2159 = vadd.f32 %v1393, %v2158
      %v2160 = vpop.f32.mrf.mxu0
      %v2161 = vadd.f32 %v1397, %v2160
      %2162 = vdwg.mxu0
      %2163 = vmatprep.subr.bf16.mxu0 %v1879
      %2164 = vmatpush1.bf16.msra.mxu0 %v1878
      %2165 = vmatprep.subr.bf16.mxu0 %v1877
      %2166 = vmatpush1.bf16.msra.mxu0 %v1876
      %2167 = vmatprep.subr.bf16.mxu0 %v1875
      %2168 = vmatpush1.bf16.msra.mxu0 %v1874
      %2169 = vmatprep.subr.bf16.mxu0 %v1873
      %2170 = vmatpush1.bf16.msra.mxu0 %v1872
      %2171 = vmatprep.subr.bf16.mxu0 %v1871
      %2172 = vmatpush1.bf16.msra.mxu0 %v1870
      %2173 = vmatprep.subr.bf16.mxu0 %v1869
      %2174 = vmatpush1.bf16.msra.mxu0 %v1868
      %2175 = vmatprep.subr.bf16.mxu0 %v1867
      %2176 = vmatpush1.bf16.msra.mxu0 %v1866
      %2177 = vmatprep.subr.bf16.mxu0 %v1865
      %2178 = vmatpush1.bf16.msra.mxu0 %v1864
      %2179 = vmatprep.subr.bf16.mxu0 %v1895
      %2180 = vmatpush2.bf16.msra.mxu0 %v1894
      %2181 = vmatprep.subr.bf16.mxu0 %v1893
      %2182 = vmatpush2.bf16.msra.mxu0 %v1892
      %2183 = vmatprep.subr.bf16.mxu0 %v1891
      %2184 = vmatpush2.bf16.msra.mxu0 %v1890
      %2185 = vmatprep.subr.bf16.mxu0 %v1889
      %2186 = vmatpush2.bf16.msra.mxu0 %v1888
      %2187 = vmatprep.subr.bf16.mxu0 %v1887
      %2188 = vmatpush2.bf16.msra.mxu0 %v1886
      %2189 = vmatprep.subr.bf16.mxu0 %v1885
      %2190 = vmatpush2.bf16.msra.mxu0 %v1884
      %2191 = vmatprep.subr.bf16.mxu0 %v1883
      %2192 = vmatpush2.bf16.msra.mxu0 %v1882
      %2193 = vmatprep.subr.bf16.mxu0 %v1881
      %2194 = vmatpush2.bf16.msra.mxu0 %v1880
      %2195 = vmatprep.mubr.bf16.mxu0 %v1238
      %2196 = vmatmul.mubr.bf16.gmra.mxu0 %v1237
      %v2197 = vpop.f32.mrf.mxu0
      %v2198 = vadd.f32 %v2155, %v2197
      %v2199 = vpop.f32.mrf.mxu0
      %v2200 = vadd.f32 %v2157, %v2199
      %v2201 = vpop.f32.mrf.mxu0
      %v2202 = vadd.f32 %v2159, %v2201
      %v2203 = vpop.f32.mrf.mxu0
      %v2204 = vadd.f32 %v2161, %v2203
      %2205 = vdwg.mxu0
      %2206 = vmatprep.subr.bf16.mxu0 %v1911
      %2207 = vmatpush1.bf16.msra.mxu0 %v1910
      %2208 = vmatprep.subr.bf16.mxu0 %v1909
      %2209 = vmatpush1.bf16.msra.mxu0 %v1908
      %2210 = vmatprep.subr.bf16.mxu0 %v1907
      %2211 = vmatpush1.bf16.msra.mxu0 %v1906
      %2212 = vmatprep.subr.bf16.mxu0 %v1905
      %2213 = vmatpush1.bf16.msra.mxu0 %v1904
      %2214 = vmatprep.subr.bf16.mxu0 %v1903
      %2215 = vmatpush1.bf16.msra.mxu0 %v1902
      %2216 = vmatprep.subr.bf16.mxu0 %v1901
      %2217 = vmatpush1.bf16.msra.mxu0 %v1900
      %2218 = vmatprep.subr.bf16.mxu0 %v1899
      %2219 = vmatpush1.bf16.msra.mxu0 %v1898
      %2220 = vmatprep.subr.bf16.mxu0 %v1897
      %2221 = vmatpush1.bf16.msra.mxu0 %v1896
      %2222 = vmatprep.subr.bf16.mxu0 %v1927
      %2223 = vmatpush2.bf16.msra.mxu0 %v1926
      %2224 = vmatprep.subr.bf16.mxu0 %v1925
      %2225 = vmatpush2.bf16.msra.mxu0 %v1924
      %2226 = vmatprep.subr.bf16.mxu0 %v1923
      %2227 = vmatpush2.bf16.msra.mxu0 %v1922
      %2228 = vmatprep.subr.bf16.mxu0 %v1921
      %2229 = vmatpush2.bf16.msra.mxu0 %v1920
      %2230 = vmatprep.subr.bf16.mxu0 %v1919
      %2231 = vmatpush2.bf16.msra.mxu0 %v1918
      %2232 = vmatprep.subr.bf16.mxu0 %v1917
      %2233 = vmatpush2.bf16.msra.mxu0 %v1916
      %2234 = vmatprep.subr.bf16.mxu0 %v1915
      %2235 = vmatpush2.bf16.msra.mxu0 %v1914
      %2236 = vmatprep.subr.bf16.mxu0 %v1913
      %2237 = vmatpush2.bf16.msra.mxu0 %v1912
      %2238 = vmatprep.mubr.bf16.mxu0 %v1240
      %2239 = vmatmul.mubr.bf16.gmra.mxu0 %v1239
      %v2240 = vpop.f32.mrf.mxu0
      %v2241 = vadd.f32 %v2198, %v2240
      %v2242 = vpop.f32.mrf.mxu0
      %v2243 = vadd.f32 %v2200, %v2242
      %v2244 = vpop.f32.mrf.mxu0
      %v2245 = vadd.f32 %v2202, %v2244
      %v2246 = vpop.f32.mrf.mxu0
      %v2247 = vadd.f32 %v2204, %v2246
      %2248 = vdwg.mxu0
      %2249 = vmatprep.subr.bf16.mxu0 %v1943
      %2250 = vmatpush1.bf16.msra.mxu0 %v1942
      %2251 = vmatprep.subr.bf16.mxu0 %v1941
      %2252 = vmatpush1.bf16.msra.mxu0 %v1940
      %2253 = vmatprep.subr.bf16.mxu0 %v1939
      %2254 = vmatpush1.bf16.msra.mxu0 %v1938
      %2255 = vmatprep.subr.bf16.mxu0 %v1937
      %2256 = vmatpush1.bf16.msra.mxu0 %v1936
      %2257 = vmatprep.subr.bf16.mxu0 %v1935
      %2258 = vmatpush1.bf16.msra.mxu0 %v1934
      %2259 = vmatprep.subr.bf16.mxu0 %v1933
      %2260 = vmatpush1.bf16.msra.mxu0 %v1932
      %2261 = vmatprep.subr.bf16.mxu0 %v1931
      %2262 = vmatpush1.bf16.msra.mxu0 %v1930
      %2263 = vmatprep.subr.bf16.mxu0 %v1929
      %2264 = vmatpush1.bf16.msra.mxu0 %v1928
      %2265 = vmatprep.subr.bf16.mxu0 %v1959
      %2266 = vmatpush2.bf16.msra.mxu0 %v1958
      %2267 = vmatprep.subr.bf16.mxu0 %v1957
      %2268 = vmatpush2.bf16.msra.mxu0 %v1956
      %2269 = vmatprep.subr.bf16.mxu0 %v1955
      %2270 = vmatpush2.bf16.msra.mxu0 %v1954
      %2271 = vmatprep.subr.bf16.mxu0 %v1953
      %2272 = vmatpush2.bf16.msra.mxu0 %v1952
      %2273 = vmatprep.subr.bf16.mxu0 %v1951
      %2274 = vmatpush2.bf16.msra.mxu0 %v1950
      %2275 = vmatprep.subr.bf16.mxu0 %v1949
      %2276 = vmatpush2.bf16.msra.mxu0 %v1948
      %2277 = vmatprep.subr.bf16.mxu0 %v1947
      %2278 = vmatpush2.bf16.msra.mxu0 %v1946
      %2279 = vmatprep.subr.bf16.mxu0 %v1945
      %2280 = vmatpush2.bf16.msra.mxu0 %v1944
      %2281 = vmatprep.mubr.bf16.mxu0 %v1242
      %2282 = vmatmul.mubr.bf16.gmra.mxu0 %v1241
      %v2283 = vpop.f32.mrf.mxu0
      %v2284 = vadd.f32 %v2241, %v2283
      %v2285 = vpop.f32.mrf.mxu0
      %v2286 = vadd.f32 %v2243, %v2285
      %v2287 = vpop.f32.mrf.mxu0
      %v2288 = vadd.f32 %v2245, %v2287
      %v2289 = vpop.f32.mrf.mxu0
      %v2290 = vadd.f32 %v2247, %v2289
      %2291 = vdwg.mxu0
      %2292 = vmatprep.subr.bf16.mxu0 %v1975
      %2293 = vmatpush1.bf16.msra.mxu0 %v1974
      %2294 = vmatprep.subr.bf16.mxu0 %v1973
      %2295 = vmatpush1.bf16.msra.mxu0 %v1972
      %2296 = vmatprep.subr.bf16.mxu0 %v1971
      %2297 = vmatpush1.bf16.msra.mxu0 %v1970
      %2298 = vmatprep.subr.bf16.mxu0 %v1969
      %2299 = vmatpush1.bf16.msra.mxu0 %v1968
      %2300 = vmatprep.subr.bf16.mxu0 %v1967
      %2301 = vmatpush1.bf16.msra.mxu0 %v1966
      %2302 = vmatprep.subr.bf16.mxu0 %v1965
      %2303 = vmatpush1.bf16.msra.mxu0 %v1964
      %2304 = vmatprep.subr.bf16.mxu0 %v1963
      %2305 = vmatpush1.bf16.msra.mxu0 %v1962
      %2306 = vmatprep.subr.bf16.mxu0 %v1961
      %2307 = vmatpush1.bf16.msra.mxu0 %v1960
      %2308 = vmatprep.subr.bf16.mxu0 0
      %2309 = vmatpush2.bf16.msra.mxu0 0
      %2310 = vmatprep.subr.bf16.mxu0 0
      %2311 = vmatpush2.bf16.msra.mxu0 0
      %2312 = vmatprep.subr.bf16.mxu0 0
      %2313 = vmatpush2.bf16.msra.mxu0 0
      %2314 = vmatprep.subr.bf16.mxu0 0
      %2315 = vmatpush2.bf16.msra.mxu0 0
      %2316 = vmatprep.subr.bf16.mxu0 0
      %2317 = vmatpush2.bf16.msra.mxu0 0
      %2318 = vmatprep.subr.bf16.mxu0 0
      %2319 = vmatpush2.bf16.msra.mxu0 0
      %2320 = vmatprep.subr.bf16.mxu0 0
      %2321 = vmatpush2.bf16.msra.mxu0 0
      %2322 = vmatprep.subr.bf16.mxu0 0
      %2323 = vmatpush2.bf16.msra.mxu0 0
      %2324 = vmatprep.mubr.bf16.mxu0 0
      %2325 = vmatmul.mubr.bf16.gmra.mxu0 %v1243
      %v2326 = vpop.f32.mrf.mxu0
      %v2327 = vadd.f32 %v2284, %v2326
      %v2328 = vpop.f32.mrf.mxu0
      %v2329 = vadd.f32 %v2286, %v2328
      %v2330 = vpop.f32.mrf.mxu0
      %v2331 = vadd.f32 %v2288, %v2330
      %v2332 = vpop.f32.mrf.mxu0
      %v2333 = vadd.f32 %v2290, %v2332
      %2334 = vdwg.mxu0
      %vm2335 = vcmp.ge.f32.partialorder %v2327, 0.0
      %vm2336 = vcmp.ge.f32.partialorder %v2329, 0.0
      %vm2337 = vcmp.ge.f32.partialorder %v2331, 0.0
      %vm2338 = vcmp.ge.f32.partialorder %v2333, 0.0
      %v2339 = vmul.f32 %v2327, 0.01
      %v2340 = vmul.f32 %v2329, 0.01
      %v2341 = vmul.f32 %v2331, 0.01
      %v2342 = vmul.f32 %v2333, 0.01
      %v2343 = vsel %vm2335, %v2327, %v2339
      %v2344 = vsel %vm2336, %v2329, %v2340
      %v2345 = vsel %vm2337, %v2331, %v2341
      %v2346 = vsel %vm2338, %v2333, %v2342
      %2347 = vst [vmem:[#allocation6] sm:$0xff] %v2343
      %2348 = vst [vmem:[#allocation6 + $0x8] sm:$0xff] %v2344
      %2349 = vst [vmem:[#allocation6 + $0x10] sm:$0xff] %v2345
      %2350 = vst [vmem:[#allocation6 + $0x18] sm:$0xff] %v2346
      %v2351 = vld [vmem:[#allocation6] sm:$0xf]
      %vm2352 = vcmask 519168
      %2353 = vst.msk [vmem:[#allocation7] sm:$0xf] %vm2352, %v2351
      %v2354 = vld [vmem:[#allocation6] sm:$0xf0]
      %2355 = vst.msk [vmem:[#allocation7 + $0xc] sm:$0xf0] %vm566, %v2354
      %v2356 = vld [vmem:[#allocation6 + $0x10] sm:$0xf]
      %2357 = vst.msk [vmem:[#allocation7 + $0x20] sm:$0xf] %vm2352, %v2356
      %v2358 = vld [vmem:[#allocation6 + $0x10] sm:$0xf0]
      %2359 = vst.msk [vmem:[#allocation7 + $0x2c] sm:$0xf0] %vm566, %v2358
      %v2360 = vld [vmem:[#allocation6] sm:$0xf]
      %2362 = vrot.lane.b32.xlu0 %v2360, 64
      %v2363 = vpop.permute.xlu0 %2362
      %2365 = vst.msk [vmem:[#allocation7 + $0x4] sm:$0xf] %vm2352, %v2363
      %v2366 = vld [vmem:[#allocation6] sm:$0xf0]
      %2368 = vrot.lane.b32.xlu0 %v2366, 64
      %v2369 = vpop.permute.xlu0 %2368
      %2371 = vst.msk [vmem:[#allocation7 + $0x10] sm:$0xf0] %vm566, %v2369
      %v2372 = vld [vmem:[#allocation6 + $0x10] sm:$0xf]
      %2374 = vrot.lane.b32.xlu0 %v2372, 64
      %v2375 = vpop.permute.xlu0 %2374
      %2377 = vst.msk [vmem:[#allocation7 + $0x24] sm:$0xf] %vm2352, %v2375
      %v2378 = vld [vmem:[#allocation6 + $0x10] sm:$0xf0]
      %2380 = vrot.lane.b32.xlu0 %v2378, 64
      %v2381 = vpop.permute.xlu0 %2380
      %2383 = vst.msk [vmem:[#allocation7 + $0x30] sm:$0xf0] %vm566, %v2381
      %v2384 = vld [vmem:[#allocation6 + $0x8] sm:$0xf]
      %2385 = vst.msk [vmem:[#allocation7 + $0x8] sm:$0xf] %vm2352, %v2384
      %v2386 = vld [vmem:[#allocation6 + $0x8] sm:$0xf0]
      %2387 = vst.msk [vmem:[#allocation7 + $0x14] sm:$0xf0] %vm566, %v2386
      %v2388 = vld [vmem:[#allocation6 + $0x18] sm:$0xf]
      %2389 = vst.msk [vmem:[#allocation7 + $0x28] sm:$0xf] %vm2352, %v2388
      %v2390 = vld [vmem:[#allocation6 + $0x18] sm:$0xf0]
      %2391 = vst.msk [vmem:[#allocation7 + $0x34] sm:$0xf0] %vm566, %v2390
      %v2392 = vld [vmem:[#allocation6 + $0x8] sm:$0xf]
      %2394 = vrot.lane.b32.xlu0 %v2392, 64
      %v2395 = vpop.permute.xlu0 %2394
      %2397 = vst.msk [vmem:[#allocation7 + $0xc] sm:$0xf] %vm2352, %v2395
      %v2398 = vld [vmem:[#allocation6 + $0x8] sm:$0xf0]
      %2400 = vrot.lane.b32.xlu0 %v2398, 64
      %v2401 = vpop.permute.xlu0 %2400
      %2403 = vst.msk [vmem:[#allocation7 + $0x18] sm:$0xf0] %vm566, %v2401
      %v2404 = vld [vmem:[#allocation6 + $0x18] sm:$0xf]
      %2406 = vrot.lane.b32.xlu0 %v2404, 64
      %v2407 = vpop.permute.xlu0 %2406
      %2409 = vst.msk [vmem:[#allocation7 + $0x2c] sm:$0xf] %vm2352, %v2407
      %v2410 = vld [vmem:[#allocation6 + $0x18] sm:$0xf0]
      %2412 = vrot.lane.b32.xlu0 %v2410, 64
      %v2413 = vpop.permute.xlu0 %2412
      %2415 = vst.msk [vmem:[#allocation7 + $0x38] sm:$0xf0] %vm566, %v2413
      %2416 = vst [vmem:[#allocation8] sm:$0xff] 0.0
      %2417 = vst [vmem:[#allocation8 + $0x8] sm:$0xff] 0.0
      %2418 = vst [vmem:[#allocation8 + $0x10] sm:$0xff] 0.0
      %2419 = vst [vmem:[#allocation8 + $0x18] sm:$0xff] 0.0
      %2420 = vst.msk [vmem:[#allocation8 + $0x20] sm:$0xff] %vm503, 0.0
      %2421 = vst [vmem:[#allocation8 + $0x28] sm:$0xff] 0.0
      %2422 = vst [vmem:[#allocation8 + $0x30] sm:$0xff] 0.0
      %2423 = vst [vmem:[#allocation8 + $0x38] sm:$0xff] 0.0
      %2424 = vst [vmem:[#allocation8 + $0x40] sm:$0xff] 0.0
      %2425 = vst.msk [vmem:[#allocation8 + $0x48] sm:$0xff] %vm503, 0.0
      %2426 = vst [vmem:[#allocation8 + $0x50] sm:$0xff] 0.0
      %2427 = vst [vmem:[#allocation8 + $0x58] sm:$0xff] 0.0
      %2428 = vst [vmem:[#allocation8 + $0x60] sm:$0xff] 0.0
      %2429 = vst [vmem:[#allocation8 + $0x68] sm:$0xff] 0.0
      %2430 = vst.msk [vmem:[#allocation8 + $0x70] sm:$0xff] %vm503, 0.0
      %2431 = vst [vmem:[#allocation8 + $0x78] sm:$0xff] 0.0
      %2432 = vst [vmem:[#allocation8 + $0x80] sm:$0xff] 0.0
      %2433 = vst [vmem:[#allocation8 + $0x88] sm:$0xff] 0.0
      %2434 = vst [vmem:[#allocation8 + $0x90] sm:$0xff] 0.0
      %2435 = vst.msk [vmem:[#allocation8 + $0x98] sm:$0xff] %vm503, 0.0
      %2436 = vst [vmem:[#allocation8 + $0xa0] sm:$0xff] 0.0
      %2437 = vst [vmem:[#allocation8 + $0xa8] sm:$0xff] 0.0
      %2438 = vst [vmem:[#allocation8 + $0xb0] sm:$0xff] 0.0
      %2439 = vst [vmem:[#allocation8 + $0xb8] sm:$0xff] 0.0
      %2440 = vst.msk [vmem:[#allocation8 + $0xc0] sm:$0xff] %vm503, 0.0
      %2441 = vst [vmem:[#allocation8 + $0xc8] sm:$0xff] 0.0
      %2442 = vst [vmem:[#allocation8 + $0xd0] sm:$0xff] 0.0
      %2443 = vst [vmem:[#allocation8 + $0xd8] sm:$0xff] 0.0
      %2444 = vst [vmem:[#allocation8 + $0xe0] sm:$0xff] 0.0
      %2445 = vst.msk [vmem:[#allocation8 + $0xe8] sm:$0xff] %vm503, 0.0
      %2446 = vst [vmem:[#allocation8 + $0xf0] sm:$0xff] 0.0
      %2447 = vst [vmem:[#allocation8 + $0xf8] sm:$0xff] 0.0
      %2448 = vst [vmem:[#allocation8 + $0x100] sm:$0xff] 0.0
      %2449 = vst [vmem:[#allocation8 + $0x108] sm:$0xff] 0.0
      %2450 = vst.msk [vmem:[#allocation8 + $0x110] sm:$0xff] %vm503, 0.0
      %2451 = vst [vmem:[#allocation8 + $0x118] sm:$0xff] 0.0
      %2452 = vst [vmem:[#allocation8 + $0x120] sm:$0xff] 0.0
      %2453 = vst [vmem:[#allocation8 + $0x128] sm:$0xff] 0.0
      %2454 = vst [vmem:[#allocation8 + $0x130] sm:$0xff] 0.0
      %2455 = vst.msk [vmem:[#allocation8 + $0x138] sm:$0xff] %vm503, 0.0
      %v2456 = vld [vmem:[#allocation7 + $0x4] sm:$0x7]
      %v2458 = vrot.slane %v2456, 7
      %2460 = vst.msk [vmem:[#allocation8 + $0x28] sm:$0xe] %vm532, %v2458
      %v2461 = vld [vmem:[#allocation7] sm:$0xf]
      %v2463 = vrot.slane %v2461, 4
      %2465 = vst.msk [vmem:[#allocation8 + $0x28] sm:$0xf0] %vm566, %v2463
      %v2466 = vld [vmem:[#allocation7 + $0xc] sm:$0x7]
      %v2468 = vrot.slane %v2466, 7
      %2470 = vst.msk [vmem:[#allocation8 + $0x50] sm:$0xe] %vm532, %v2468
      %v2471 = vld [vmem:[#allocation7 + $0x8] sm:$0xf]
      %v2473 = vrot.slane %v2471, 4
      %2475 = vst.msk [vmem:[#allocation8 + $0x50] sm:$0xf0] %vm566, %v2473
      %v2476 = vld [vmem:[#allocation7 + $0x14] sm:$0x7]
      %v2478 = vrot.slane %v2476, 7
      %2480 = vst.msk [vmem:[#allocation8 + $0x78] sm:$0xe] %vm532, %v2478
      %v2481 = vld [vmem:[#allocation7 + $0x10] sm:$0xf]
      %v2483 = vrot.slane %v2481, 4
      %2485 = vst.msk [vmem:[#allocation8 + $0x78] sm:$0xf0] %vm566, %v2483
      %v2486 = vld [vmem:[#allocation7 + $0x1c] sm:$0x7]
      %v2488 = vrot.slane %v2486, 7
      %2490 = vst.msk [vmem:[#allocation8 + $0xa0] sm:$0xe] %vm532, %v2488
      %v2491 = vld [vmem:[#allocation7 + $0x18] sm:$0xf]
      %v2493 = vrot.slane %v2491, 4
      %2495 = vst.msk [vmem:[#allocation8 + $0xa0] sm:$0xf0] %vm566, %v2493
      %v2496 = vld [vmem:[#allocation7 + $0x24] sm:$0x7]
      %v2498 = vrot.slane %v2496, 7
      %2500 = vst.msk [vmem:[#allocation8 + $0xc8] sm:$0xe] %vm532, %v2498
      %v2501 = vld [vmem:[#allocation7 + $0x20] sm:$0xf]
      %v2503 = vrot.slane %v2501, 4
      %2505 = vst.msk [vmem:[#allocation8 + $0xc8] sm:$0xf0] %vm566, %v2503
      %v2506 = vld [vmem:[#allocation7 + $0x2c] sm:$0x7]
      %v2508 = vrot.slane %v2506, 7
      %2510 = vst.msk [vmem:[#allocation8 + $0xf0] sm:$0xe] %vm532, %v2508
      %v2511 = vld [vmem:[#allocation7 + $0x28] sm:$0xf]
      %v2513 = vrot.slane %v2511, 4
      %2515 = vst.msk [vmem:[#allocation8 + $0xf0] sm:$0xf0] %vm566, %v2513
      %v2516 = vld [vmem:[#allocation7 + $0x34] sm:$0x7]
      %v2518 = vrot.slane %v2516, 7
      %2520 = vst.msk [vmem:[#allocation8 + $0x118] sm:$0xe] %vm532, %v2518
      %v2521 = vld [vmem:[#allocation7 + $0x30] sm:$0xf]
      %v2523 = vrot.slane %v2521, 4
      %2525 = vst.msk [vmem:[#allocation8 + $0x118] sm:$0xf0] %vm566, %v2523
      %v2526 = vld [vmem:[#allocation7] sm:$0xff]
      %v2527 = vld [vmem:[#allocation7 + $0x8] sm:$0xff]
      %v2528 = vld [vmem:[#allocation7 + $0x10] sm:$0xff]
      %v2529 = vld [vmem:[#allocation7 + $0x18] sm:$0xff]
      %v2530 = vld [vmem:[#allocation7 + $0x20] sm:$0xff]
      %v2531 = vld [vmem:[#allocation7 + $0x28] sm:$0xff]
      %v2532 = vld [vmem:[#allocation7 + $0x30] sm:$0xff]
      %2540 = vrot.lane.b32.xlu0 %v2526, 64
      %v2541 = vpop.permute.xlu0 %2540
      %2542 = vrot.lane.b32.xlu0 %v2527, 64
      %v2543 = vpop.permute.xlu0 %2542
      %2544 = vrot.lane.b32.xlu0 %v2528, 64
      %v2545 = vpop.permute.xlu0 %2544
      %2546 = vrot.lane.b32.xlu0 %v2529, 64
      %v2547 = vpop.permute.xlu0 %2546
      %2548 = vrot.lane.b32.xlu0 %v2530, 64
      %v2549 = vpop.permute.xlu0 %2548
      %2550 = vrot.lane.b32.xlu0 %v2531, 64
      %v2551 = vpop.permute.xlu0 %2550
      %2552 = vrot.lane.b32.xlu0 %v2532, 64
      %v2553 = vpop.permute.xlu0 %2552
      %2561 = vst.msk [vmem:[#allocation8 + $0x28] sm:$0xff] %vm555, %v2541
      %2562 = vst.msk [vmem:[#allocation8 + $0x50] sm:$0xff] %vm555, %v2543
      %2563 = vst.msk [vmem:[#allocation8 + $0x78] sm:$0xff] %vm555, %v2545
      %2564 = vst.msk [vmem:[#allocation8 + $0xa0] sm:$0xff] %vm555, %v2547
      %2565 = vst.msk [vmem:[#allocation8 + $0xc8] sm:$0xff] %vm555, %v2549
      %2566 = vst.msk [vmem:[#allocation8 + $0xf0] sm:$0xff] %vm555, %v2551
      %2567 = vst.msk [vmem:[#allocation8 + $0x118] sm:$0xff] %vm555, %v2553
      %v2568 = vld [vmem:[#allocation7 + $0x4] sm:$0xf]
      %2569 = vst.msk [vmem:[#allocation8 + $0x30] sm:$0xf] %vm2352, %v2568
      %v2570 = vld [vmem:[#allocation7 + $0x1] sm:$0x7]
      %v2572 = vrot.slane %v2570, 4
      %vm2574 = vcmask 522244
      %2575 = vst.msk [vmem:[#allocation8 + $0x30] sm:$0x70] %vm2574, %v2572
      %v2576 = vld [vmem:[#allocation7 + $0xc] sm:$0xf]
      %2577 = vst.msk [vmem:[#allocation8 + $0x58] sm:$0xf] %vm2352, %v2576
      %v2578 = vld [vmem:[#allocation7 + $0x9] sm:$0x7]
      %v2580 = vrot.slane %v2578, 4
      %2582 = vst.msk [vmem:[#allocation8 + $0x58] sm:$0x70] %vm2574, %v2580
      %v2583 = vld [vmem:[#allocation7 + $0x14] sm:$0xf]
      %2584 = vst.msk [vmem:[#allocation8 + $0x80] sm:$0xf] %vm2352, %v2583
      %v2585 = vld [vmem:[#allocation7 + $0x11] sm:$0x7]
      %v2587 = vrot.slane %v2585, 4
      %2589 = vst.msk [vmem:[#allocation8 + $0x80] sm:$0x70] %vm2574, %v2587
      %v2590 = vld [vmem:[#allocation7 + $0x1c] sm:$0xf]
      %2591 = vst.msk [vmem:[#allocation8 + $0xa8] sm:$0xf] %vm2352, %v2590
      %v2592 = vld [vmem:[#allocation7 + $0x19] sm:$0x7]
      %v2594 = vrot.slane %v2592, 4
      %2596 = vst.msk [vmem:[#allocation8 + $0xa8] sm:$0x70] %vm2574, %v2594
      %v2597 = vld [vmem:[#allocation7 + $0x24] sm:$0xf]
      %2598 = vst.msk [vmem:[#allocation8 + $0xd0] sm:$0xf] %vm2352, %v2597
      %v2599 = vld [vmem:[#allocation7 + $0x21] sm:$0x7]
      %v2601 = vrot.slane %v2599, 4
      %2603 = vst.msk [vmem:[#allocation8 + $0xd0] sm:$0x70] %vm2574, %v2601
      %v2604 = vld [vmem:[#allocation7 + $0x2c] sm:$0xf]
      %2605 = vst.msk [vmem:[#allocation8 + $0xf8] sm:$0xf] %vm2352, %v2604
      %v2606 = vld [vmem:[#allocation7 + $0x29] sm:$0x7]
      %v2608 = vrot.slane %v2606, 4
      %2610 = vst.msk [vmem:[#allocation8 + $0xf8] sm:$0x70] %vm2574, %v2608
      %v2611 = vld [vmem:[#allocation7 + $0x34] sm:$0xf]
      %2612 = vst.msk [vmem:[#allocation8 + $0x120] sm:$0xf] %vm2352, %v2611
      %v2613 = vld [vmem:[#allocation7 + $0x31] sm:$0x7]
      %v2615 = vrot.slane %v2613, 4
      %2617 = vst.msk [vmem:[#allocation8 + $0x120] sm:$0x70] %vm2574, %v2615
      %v2618 = vld [vmem:[#allocation7 + $0x4] sm:$0x7]
      %v2620 = vrot.slane %v2618, 7
      %2621 = vrot.lane.b32.xlu0 %v2620, 64
      %v2622 = vpop.permute.xlu0 %2621
      %2624 = vst.msk [vmem:[#allocation8 + $0x8] sm:$0xe] %vm575, %v2622
      %v2625 = vld [vmem:[#allocation7] sm:$0xf]
      %v2627 = vrot.slane %v2625, 4
      %2628 = vrot.lane.b32.xlu0 %v2627, 64
      %v2629 = vpop.permute.xlu0 %2628
      %2631 = vst.msk [vmem:[#allocation8 + $0x8] sm:$0xf0] %vm553, %v2629
      %v2632 = vld [vmem:[#allocation7 + $0xc] sm:$0x7]
      %v2634 = vrot.slane %v2632, 7
      %2635 = vrot.lane.b32.xlu0 %v2634, 64
      %v2636 = vpop.permute.xlu0 %2635
      %2638 = vst.msk [vmem:[#allocation8 + $0x30] sm:$0xe] %vm575, %v2636
      %v2639 = vld [vmem:[#allocation7 + $0x8] sm:$0xf]
      %v2641 = vrot.slane %v2639, 4
      %2642 = vrot.lane.b32.xlu0 %v2641, 64
      %v2643 = vpop.permute.xlu0 %2642
      %2645 = vst.msk [vmem:[#allocation8 + $0x30] sm:$0xf0] %vm553, %v2643
      %v2646 = vld [vmem:[#allocation7 + $0x14] sm:$0x7]
      %v2648 = vrot.slane %v2646, 7
      %2649 = vrot.lane.b32.xlu0 %v2648, 64
      %v2650 = vpop.permute.xlu0 %2649
      %2652 = vst.msk [vmem:[#allocation8 + $0x58] sm:$0xe] %vm575, %v2650
      %v2653 = vld [vmem:[#allocation7 + $0x10] sm:$0xf]
      %v2655 = vrot.slane %v2653, 4
      %2656 = vrot.lane.b32.xlu0 %v2655, 64
      %v2657 = vpop.permute.xlu0 %2656
      %2659 = vst.msk [vmem:[#allocation8 + $0x58] sm:$0xf0] %vm553, %v2657
      %v2660 = vld [vmem:[#allocation7 + $0x1c] sm:$0x7]
      %v2662 = vrot.slane %v2660, 7
      %2663 = vrot.lane.b32.xlu0 %v2662, 64
      %v2664 = vpop.permute.xlu0 %2663
      %2666 = vst.msk [vmem:[#allocation8 + $0x80] sm:$0xe] %vm575, %v2664
      %v2667 = vld [vmem:[#allocation7 + $0x18] sm:$0xf]
      %v2669 = vrot.slane %v2667, 4
      %2670 = vrot.lane.b32.xlu0 %v2669, 64
      %v2671 = vpop.permute.xlu0 %2670
      %2673 = vst.msk [vmem:[#allocation8 + $0x80] sm:$0xf0] %vm553, %v2671
      %v2674 = vld [vmem:[#allocation7 + $0x24] sm:$0x7]
      %v2676 = vrot.slane %v2674, 7
      %2677 = vrot.lane.b32.xlu0 %v2676, 64
      %v2678 = vpop.permute.xlu0 %2677
      %2680 = vst.msk [vmem:[#allocation8 + $0xa8] sm:$0xe] %vm575, %v2678
      %v2681 = vld [vmem:[#allocation7 + $0x20] sm:$0xf]
      %v2683 = vrot.slane %v2681, 4
      %2684 = vrot.lane.b32.xlu0 %v2683, 64
      %v2685 = vpop.permute.xlu0 %2684
      %2687 = vst.msk [vmem:[#allocation8 + $0xa8] sm:$0xf0] %vm553, %v2685
      %v2688 = vld [vmem:[#allocation7 + $0x2c] sm:$0x7]
      %v2690 = vrot.slane %v2688, 7
      %2691 = vrot.lane.b32.xlu0 %v2690, 64
      %v2692 = vpop.permute.xlu0 %2691
      %2694 = vst.msk [vmem:[#allocation8 + $0xd0] sm:$0xe] %vm575, %v2692
      %v2695 = vld [vmem:[#allocation7 + $0x28] sm:$0xf]
      %v2697 = vrot.slane %v2695, 4
      %2698 = vrot.lane.b32.xlu0 %v2697, 64
      %v2699 = vpop.permute.xlu0 %2698
      %2701 = vst.msk [vmem:[#allocation8 + $0xd0] sm:$0xf0] %vm553, %v2699
      %v2702 = vld [vmem:[#allocation7 + $0x34] sm:$0x7]
      %v2704 = vrot.slane %v2702, 7
      %2705 = vrot.lane.b32.xlu0 %v2704, 64
      %v2706 = vpop.permute.xlu0 %2705
      %2708 = vst.msk [vmem:[#allocation8 + $0xf8] sm:$0xe] %vm575, %v2706
      %v2709 = vld [vmem:[#allocation7 + $0x30] sm:$0xf]
      %v2711 = vrot.slane %v2709, 4
      %2712 = vrot.lane.b32.xlu0 %v2711, 64
      %v2713 = vpop.permute.xlu0 %2712
      %2715 = vst.msk [vmem:[#allocation8 + $0xf8] sm:$0xf0] %vm553, %v2713
      %v2716 = vld [vmem:[#allocation7 + $0x3c] sm:$0x7]
      %v2718 = vrot.slane %v2716, 7
      %2719 = vrot.lane.b32.xlu0 %v2718, 64
      %v2720 = vpop.permute.xlu0 %2719
      %2722 = vst.msk [vmem:[#allocation8 + $0x120] sm:$0xe] %vm575, %v2720
      %v2723 = vld [vmem:[#allocation7 + $0x38] sm:$0xf]
      %v2725 = vrot.slane %v2723, 4
      %2726 = vrot.lane.b32.xlu0 %v2725, 64
      %v2727 = vpop.permute.xlu0 %2726
      %2729 = vst.msk [vmem:[#allocation8 + $0x120] sm:$0xf0] %vm553, %v2727
      %v2730 = vld [vmem:[#allocation7] sm:$0xff]
      %v2731 = vld [vmem:[#allocation7 + $0x8] sm:$0xff]
      %v2732 = vld [vmem:[#allocation7 + $0x10] sm:$0xff]
      %v2733 = vld [vmem:[#allocation7 + $0x18] sm:$0xff]
      %v2734 = vld [vmem:[#allocation7 + $0x20] sm:$0xff]
      %v2735 = vld [vmem:[#allocation7 + $0x28] sm:$0xff]
      %v2736 = vld [vmem:[#allocation7 + $0x30] sm:$0xff]
      %v2737 = vld [vmem:[#allocation7 + $0x38] sm:$0xff]
      %2738 = vst.msk [vmem:[#allocation8 + $0x10] sm:$0xff] %vm503, %v2730
      %2739 = vst.msk [vmem:[#allocation8 + $0x38] sm:$0xff] %vm503, %v2731
      %2740 = vst.msk [vmem:[#allocation8 + $0x60] sm:$0xff] %vm503, %v2732
      %2741 = vst.msk [vmem:[#allocation8 + $0x88] sm:$0xff] %vm503, %v2733
      %2742 = vst.msk [vmem:[#allocation8 + $0xb0] sm:$0xff] %vm503, %v2734
      %2743 = vst.msk [vmem:[#allocation8 + $0xd8] sm:$0xff] %vm503, %v2735
      %2744 = vst.msk [vmem:[#allocation8 + $0x100] sm:$0xff] %vm503, %v2736
      %2745 = vst.msk [vmem:[#allocation8 + $0x128] sm:$0xff] %vm503, %v2737
      %v2746 = vld [vmem:[#allocation7 + $0x4] sm:$0xf]
      %2748 = vrot.lane.b32.xlu0 %v2746, 64
      %v2749 = vpop.permute.xlu0 %2748
      %vm2751 = vcmask 1043968
      %2752 = vst.msk [vmem:[#allocation8 + $0x10] sm:$0xf] %vm2751, %v2749
      %v2753 = vld [vmem:[#allocation7 + $0x1] sm:$0x7]
      %v2755 = vrot.slane %v2753, 4
      %2756 = vrot.lane.b32.xlu0 %v2755, 64
      %v2757 = vpop.permute.xlu0 %2756
      %vm2759 = vcmask 1047044
      %2760 = vst.msk [vmem:[#allocation8 + $0x10] sm:$0x70] %vm2759, %v2757
      %v2761 = vld [vmem:[#allocation7 + $0xc] sm:$0xf]
      %2763 = vrot.lane.b32.xlu0 %v2761, 64
      %v2764 = vpop.permute.xlu0 %2763
      %2766 = vst.msk [vmem:[#allocation8 + $0x38] sm:$0xf] %vm2751, %v2764
      %v2767 = vld [vmem:[#allocation7 + $0x9] sm:$0x7]
      %v2769 = vrot.slane %v2767, 4
      %2770 = vrot.lane.b32.xlu0 %v2769, 64
      %v2771 = vpop.permute.xlu0 %2770
      %2773 = vst.msk [vmem:[#allocation8 + $0x38] sm:$0x70] %vm2759, %v2771
      %v2774 = vld [vmem:[#allocation7 + $0x14] sm:$0xf]
      %2776 = vrot.lane.b32.xlu0 %v2774, 64
      %v2777 = vpop.permute.xlu0 %2776
      %2779 = vst.msk [vmem:[#allocation8 + $0x60] sm:$0xf] %vm2751, %v2777
      %v2780 = vld [vmem:[#allocation7 + $0x11] sm:$0x7]
      %v2782 = vrot.slane %v2780, 4
      %2783 = vrot.lane.b32.xlu0 %v2782, 64
      %v2784 = vpop.permute.xlu0 %2783
      %2786 = vst.msk [vmem:[#allocation8 + $0x60] sm:$0x70] %vm2759, %v2784
      %v2787 = vld [vmem:[#allocation7 + $0x1c] sm:$0xf]
      %2789 = vrot.lane.b32.xlu0 %v2787, 64
      %v2790 = vpop.permute.xlu0 %2789
      %2792 = vst.msk [vmem:[#allocation8 + $0x88] sm:$0xf] %vm2751, %v2790
      %v2793 = vld [vmem:[#allocation7 + $0x19] sm:$0x7]
      %v2795 = vrot.slane %v2793, 4
      %2796 = vrot.lane.b32.xlu0 %v2795, 64
      %v2797 = vpop.permute.xlu0 %2796
      %2799 = vst.msk [vmem:[#allocation8 + $0x88] sm:$0x70] %vm2759, %v2797
      %v2800 = vld [vmem:[#allocation7 + $0x24] sm:$0xf]
      %2802 = vrot.lane.b32.xlu0 %v2800, 64
      %v2803 = vpop.permute.xlu0 %2802
      %2805 = vst.msk [vmem:[#allocation8 + $0xb0] sm:$0xf] %vm2751, %v2803
      %v2806 = vld [vmem:[#allocation7 + $0x21] sm:$0x7]
      %v2808 = vrot.slane %v2806, 4
      %2809 = vrot.lane.b32.xlu0 %v2808, 64
      %v2810 = vpop.permute.xlu0 %2809
      %2812 = vst.msk [vmem:[#allocation8 + $0xb0] sm:$0x70] %vm2759, %v2810
      %v2813 = vld [vmem:[#allocation7 + $0x2c] sm:$0xf]
      %2815 = vrot.lane.b32.xlu0 %v2813, 64
      %v2816 = vpop.permute.xlu0 %2815
      %2818 = vst.msk [vmem:[#allocation8 + $0xd8] sm:$0xf] %vm2751, %v2816
      %v2819 = vld [vmem:[#allocation7 + $0x29] sm:$0x7]
      %v2821 = vrot.slane %v2819, 4
      %2822 = vrot.lane.b32.xlu0 %v2821, 64
      %v2823 = vpop.permute.xlu0 %2822
      %2825 = vst.msk [vmem:[#allocation8 + $0xd8] sm:$0x70] %vm2759, %v2823
      %v2826 = vld [vmem:[#allocation7 + $0x34] sm:$0xf]
      %2828 = vrot.lane.b32.xlu0 %v2826, 64
      %v2829 = vpop.permute.xlu0 %2828
      %2831 = vst.msk [vmem:[#allocation8 + $0x100] sm:$0xf] %vm2751, %v2829
      %v2832 = vld [vmem:[#allocation7 + $0x31] sm:$0x7]
      %v2834 = vrot.slane %v2832, 4
      %2835 = vrot.lane.b32.xlu0 %v2834, 64
      %v2836 = vpop.permute.xlu0 %2835
      %2838 = vst.msk [vmem:[#allocation8 + $0x100] sm:$0x70] %vm2759, %v2836
      %v2839 = vld [vmem:[#allocation7 + $0x3c] sm:$0xf]
      %2841 = vrot.lane.b32.xlu0 %v2839, 64
      %v2842 = vpop.permute.xlu0 %2841
      %2844 = vst.msk [vmem:[#allocation8 + $0x128] sm:$0xf] %vm2751, %v2842
      %v2845 = vld [vmem:[#allocation7 + $0x39] sm:$0x7]
      %v2847 = vrot.slane %v2845, 4
      %2848 = vrot.lane.b32.xlu0 %v2847, 64
      %v2849 = vpop.permute.xlu0 %2848
      %2851 = vst.msk [vmem:[#allocation8 + $0x128] sm:$0x70] %vm2759, %v2849
      %v2852 = vld [vmem:[#allocation7 + $0xc] sm:$0x7]
      %v2854 = vrot.slane %v2852, 7
      %2856 = vst.msk [vmem:[#allocation8 + $0x18] sm:$0xe] %vm532, %v2854
      %v2857 = vld [vmem:[#allocation7 + $0x8] sm:$0xf]
      %v2859 = vrot.slane %v2857, 4
      %2861 = vst.msk [vmem:[#allocation8 + $0x18] sm:$0xf0] %vm566, %v2859
      %v2862 = vld [vmem:[#allocation7 + $0x14] sm:$0x7]
      %v2864 = vrot.slane %v2862, 7
      %2866 = vst.msk [vmem:[#allocation8 + $0x40] sm:$0xe] %vm532, %v2864
      %v2867 = vld [vmem:[#allocation7 + $0x10] sm:$0xf]
      %v2869 = vrot.slane %v2867, 4
      %2871 = vst.msk [vmem:[#allocation8 + $0x40] sm:$0xf0] %vm566, %v2869
      %v2872 = vld [vmem:[#allocation7 + $0x1c] sm:$0x7]
      %v2874 = vrot.slane %v2872, 7
      %2876 = vst.msk [vmem:[#allocation8 + $0x68] sm:$0xe] %vm532, %v2874
      %v2877 = vld [vmem:[#allocation7 + $0x18] sm:$0xf]
      %v2879 = vrot.slane %v2877, 4
      %2881 = vst.msk [vmem:[#allocation8 + $0x68] sm:$0xf0] %vm566, %v2879
      %v2882 = vld [vmem:[#allocation7 + $0x24] sm:$0x7]
      %v2884 = vrot.slane %v2882, 7
      %2886 = vst.msk [vmem:[#allocation8 + $0x90] sm:$0xe] %vm532, %v2884
      %v2887 = vld [vmem:[#allocation7 + $0x20] sm:$0xf]
      %v2889 = vrot.slane %v2887, 4
      %2891 = vst.msk [vmem:[#allocation8 + $0x90] sm:$0xf0] %vm566, %v2889
      %v2892 = vld [vmem:[#allocation7 + $0x2c] sm:$0x7]
      %v2894 = vrot.slane %v2892, 7
      %2896 = vst.msk [vmem:[#allocation8 + $0xb8] sm:$0xe] %vm532, %v2894
      %v2897 = vld [vmem:[#allocation7 + $0x28] sm:$0xf]
      %v2899 = vrot.slane %v2897, 4
      %2901 = vst.msk [vmem:[#allocation8 + $0xb8] sm:$0xf0] %vm566, %v2899
      %v2902 = vld [vmem:[#allocation7 + $0x34] sm:$0x7]
      %v2904 = vrot.slane %v2902, 7
      %2906 = vst.msk [vmem:[#allocation8 + $0xe0] sm:$0xe] %vm532, %v2904
      %v2907 = vld [vmem:[#allocation7 + $0x30] sm:$0xf]
      %v2909 = vrot.slane %v2907, 4
      %2911 = vst.msk [vmem:[#allocation8 + $0xe0] sm:$0xf0] %vm566, %v2909
      %v2912 = vld [vmem:[#allocation7 + $0x3c] sm:$0x7]
      %v2914 = vrot.slane %v2912, 7
      %2916 = vst.msk [vmem:[#allocation8 + $0x108] sm:$0xe] %vm532, %v2914
      %v2917 = vld [vmem:[#allocation7 + $0x38] sm:$0xf]
      %v2919 = vrot.slane %v2917, 4
      %2921 = vst.msk [vmem:[#allocation8 + $0x108] sm:$0xf0] %vm566, %v2919
      %v2922 = vld [vmem:[#allocation7 + $0x8] sm:$0xff]
      %v2923 = vld [vmem:[#allocation7 + $0x10] sm:$0xff]
      %v2924 = vld [vmem:[#allocation7 + $0x18] sm:$0xff]
      %v2925 = vld [vmem:[#allocation7 + $0x20] sm:$0xff]
      %v2926 = vld [vmem:[#allocation7 + $0x28] sm:$0xff]
      %v2927 = vld [vmem:[#allocation7 + $0x30] sm:$0xff]
      %v2928 = vld [vmem:[#allocation7 + $0x38] sm:$0xff]
      %2936 = vrot.lane.b32.xlu0 %v2922, 64
      %v2937 = vpop.permute.xlu0 %2936
      %2938 = vrot.lane.b32.xlu0 %v2923, 64
      %v2939 = vpop.permute.xlu0 %2938
      %2940 = vrot.lane.b32.xlu0 %v2924, 64
      %v2941 = vpop.permute.xlu0 %2940
      %2942 = vrot.lane.b32.xlu0 %v2925, 64
      %v2943 = vpop.permute.xlu0 %2942
      %2944 = vrot.lane.b32.xlu0 %v2926, 64
      %v2945 = vpop.permute.xlu0 %2944
      %2946 = vrot.lane.b32.xlu0 %v2927, 64
      %v2947 = vpop.permute.xlu0 %2946
      %2948 = vrot.lane.b32.xlu0 %v2928, 64
      %v2949 = vpop.permute.xlu0 %2948
      %2957 = vst.msk [vmem:[#allocation8 + $0x18] sm:$0xff] %vm555, %v2937
      %2958 = vst.msk [vmem:[#allocation8 + $0x40] sm:$0xff] %vm555, %v2939
      %2959 = vst.msk [vmem:[#allocation8 + $0x68] sm:$0xff] %vm555, %v2941
      %2960 = vst.msk [vmem:[#allocation8 + $0x90] sm:$0xff] %vm555, %v2943
      %2961 = vst.msk [vmem:[#allocation8 + $0xb8] sm:$0xff] %vm555, %v2945
      %2962 = vst.msk [vmem:[#allocation8 + $0xe0] sm:$0xff] %vm555, %v2947
      %2963 = vst.msk [vmem:[#allocation8 + $0x108] sm:$0xff] %vm555, %v2949
      %v2964 = vld [vmem:[#allocation7 + $0xc] sm:$0xf]
      %2965 = vst.msk [vmem:[#allocation8 + $0x20] sm:$0xf] %vm2352, %v2964
      %v2966 = vld [vmem:[#allocation7 + $0x9] sm:$0x7]
      %v2968 = vrot.slane %v2966, 4
      %2970 = vst.msk [vmem:[#allocation8 + $0x20] sm:$0x70] %vm2574, %v2968
      %v2971 = vld [vmem:[#allocation7 + $0x14] sm:$0xf]
      %2972 = vst.msk [vmem:[#allocation8 + $0x48] sm:$0xf] %vm2352, %v2971
      %v2973 = vld [vmem:[#allocation7 + $0x11] sm:$0x7]
      %v2975 = vrot.slane %v2973, 4
      %2977 = vst.msk [vmem:[#allocation8 + $0x48] sm:$0x70] %vm2574, %v2975
      %v2978 = vld [vmem:[#allocation7 + $0x1c] sm:$0xf]
      %2979 = vst.msk [vmem:[#allocation8 + $0x70] sm:$0xf] %vm2352, %v2978
      %v2980 = vld [vmem:[#allocation7 + $0x19] sm:$0x7]
      %v2982 = vrot.slane %v2980, 4
      %2984 = vst.msk [vmem:[#allocation8 + $0x70] sm:$0x70] %vm2574, %v2982
      %v2985 = vld [vmem:[#allocation7 + $0x24] sm:$0xf]
      %2986 = vst.msk [vmem:[#allocation8 + $0x98] sm:$0xf] %vm2352, %v2985
      %v2987 = vld [vmem:[#allocation7 + $0x21] sm:$0x7]
      %v2989 = vrot.slane %v2987, 4
      %2991 = vst.msk [vmem:[#allocation8 + $0x98] sm:$0x70] %vm2574, %v2989
      %v2992 = vld [vmem:[#allocation7 + $0x2c] sm:$0xf]
      %2993 = vst.msk [vmem:[#allocation8 + $0xc0] sm:$0xf] %vm2352, %v2992
      %v2994 = vld [vmem:[#allocation7 + $0x29] sm:$0x7]
      %v2996 = vrot.slane %v2994, 4
      %2998 = vst.msk [vmem:[#allocation8 + $0xc0] sm:$0x70] %vm2574, %v2996
      %v2999 = vld [vmem:[#allocation7 + $0x34] sm:$0xf]
      %3000 = vst.msk [vmem:[#allocation8 + $0xe8] sm:$0xf] %vm2352, %v2999
      %v3001 = vld [vmem:[#allocation7 + $0x31] sm:$0x7]
      %v3003 = vrot.slane %v3001, 4
      %3005 = vst.msk [vmem:[#allocation8 + $0xe8] sm:$0x70] %vm2574, %v3003
      %v3006 = vld [vmem:[#allocation7 + $0x3c] sm:$0xf]
      %3007 = vst.msk [vmem:[#allocation8 + $0x110] sm:$0xf] %vm2352, %v3006
      %v3008 = vld [vmem:[#allocation7 + $0x39] sm:$0x7]
      %v3010 = vrot.slane %v3008, 4
      %3012 = vst.msk [vmem:[#allocation8 + $0x110] sm:$0x70] %vm2574, %v3010
      %v3013 = vld [vmem:[#allocation8] sm:$0xff]
      %v3014 = vld [vmem:[#allocation8 + $0x8] sm:$0xff]
      %v3015 = vld [vmem:[#allocation8 + $0x10] sm:$0xff]
      %v3016 = vld [vmem:[#allocation8 + $0x18] sm:$0xff]
      %v3017 = vld [vmem:[#allocation8 + $0x20] sm:$0xff]
      %v3018 = vld [vmem:[#allocation8 + $0x28] sm:$0xff]
      %v3019 = vld [vmem:[#allocation8 + $0x30] sm:$0xff]
      %v3020 = vld [vmem:[#allocation8 + $0x38] sm:$0xff]
      %v3021 = vld [vmem:[#allocation8 + $0x40] sm:$0xff]
      %v3022 = vld [vmem:[#allocation8 + $0x48] sm:$0xff]
      %v3023 = vld [vmem:[#allocation8 + $0x50] sm:$0xff]
      %v3024 = vld [vmem:[#allocation8 + $0x58] sm:$0xff]
      %v3025 = vld [vmem:[#allocation8 + $0x60] sm:$0xff]
      %v3026 = vld [vmem:[#allocation8 + $0x68] sm:$0xff]
      %v3027 = vld [vmem:[#allocation8 + $0x70] sm:$0xff]
      %v3028 = vld [vmem:[#allocation8 + $0x78] sm:$0xff]
      %v3029 = vld [vmem:[#allocation8 + $0x80] sm:$0xff]
      %v3030 = vld [vmem:[#allocation8 + $0x88] sm:$0xff]
      %v3031 = vld [vmem:[#allocation8 + $0x90] sm:$0xff]
      %v3032 = vld [vmem:[#allocation8 + $0x98] sm:$0xff]
      %v3033 = vld [vmem:[#allocation8 + $0xa0] sm:$0xff]
      %v3034 = vld [vmem:[#allocation8 + $0xa8] sm:$0xff]
      %v3035 = vld [vmem:[#allocation8 + $0xb0] sm:$0xff]
      %v3036 = vld [vmem:[#allocation8 + $0xb8] sm:$0xff]
      %v3037 = vld [vmem:[#allocation8 + $0xc0] sm:$0xff]
      %v3038 = vld [vmem:[#allocation8 + $0xc8] sm:$0xff]
      %v3039 = vld [vmem:[#allocation8 + $0xd0] sm:$0xff]
      %v3040 = vld [vmem:[#allocation8 + $0xd8] sm:$0xff]
      %v3041 = vld [vmem:[#allocation8 + $0xe0] sm:$0xff]
      %v3042 = vld [vmem:[#allocation8 + $0xe8] sm:$0xff]
      %v3043 = vld [vmem:[#allocation8 + $0xf0] sm:$0xff]
      %v3044 = vld [vmem:[#allocation8 + $0xf8] sm:$0xff]
      %v3045 = vld [vmem:[#allocation8 + $0x100] sm:$0xff]
      %v3046 = vld [vmem:[#allocation8 + $0x108] sm:$0xff]
      %v3047 = vld [vmem:[#allocation8 + $0x110] sm:$0xff]
      %v3048 = vld [vmem:[#allocation8 + $0x118] sm:$0xff]
      %v3049 = vld [vmem:[#allocation8 + $0x120] sm:$0xff]
      %v3050 = vld [vmem:[#allocation8 + $0x128] sm:$0xff]
      %v3051 = vld [vmem:[#allocation8 + $0x130] sm:$0xff]
      %v3052 = vld [vmem:[#allocation8 + $0x138] sm:$0xff]
      %v3053 = vpack.c.bf16 %v3018, %v3013
      %v3054 = vpack.c.bf16 %v3019, %v3014
      %v3055 = vpack.c.bf16 %v3020, %v3015
      %v3056 = vpack.c.bf16 %v3021, %v3016
      %v3057 = vpack.c.bf16 %v3022, %v3017
      %v3058 = vpack.c.bf16 %v3028, %v3023
      %v3059 = vpack.c.bf16 %v3029, %v3024
      %v3060 = vpack.c.bf16 %v3030, %v3025
      %v3061 = vpack.c.bf16 %v3031, %v3026
      %v3062 = vpack.c.bf16 %v3032, %v3027
      %v3063 = vpack.c.bf16 %v3038, %v3033
      %v3064 = vpack.c.bf16 %v3039, %v3034
      %v3065 = vpack.c.bf16 %v3040, %v3035
      %v3066 = vpack.c.bf16 %v3041, %v3036
      %v3067 = vpack.c.bf16 %v3042, %v3037
      %v3068 = vpack.c.bf16 %v3048, %v3043
      %v3069 = vpack.c.bf16 %v3049, %v3044
      %v3070 = vpack.c.bf16 %v3050, %v3045
      %v3071 = vpack.c.bf16 %v3051, %v3046
      %v3072 = vpack.c.bf16 %v3052, %v3047
      %v3073 = vld [vmem:[%s7] sm:$0xf]
      %v3074 = vld [vmem:[%s7 + $0x4] sm:$0xf]
      %v3075 = vld [vmem:[%s7 + $0x8] sm:$0xf]
      %v3076 = vld [vmem:[%s7 + $0xc] sm:$0xf]
      %v3077 = vld [vmem:[%s7 + $0x10] sm:$0xf]
      %v3078 = vld [vmem:[%s7 + $0x14] sm:$0xf]
      %v3079 = vld [vmem:[%s7 + $0x18] sm:$0xf]
      %v3080 = vld [vmem:[%s7 + $0x1c] sm:$0xf]
      %v3081 = vld [vmem:[%s7 + $0x20] sm:$0xf]
      %v3082 = vld [vmem:[%s7 + $0x24] sm:$0xf]
      %v3083 = vld [vmem:[%s7 + $0x28] sm:$0xf]
      %v3084 = vld [vmem:[%s7 + $0x2c] sm:$0xf]
      %v3085 = vld [vmem:[%s7 + $0x30] sm:$0xf]
      %v3086 = vld [vmem:[%s7 + $0x34] sm:$0xf]
      %v3087 = vld [vmem:[%s7 + $0x38] sm:$0xf]
      %v3088 = vld [vmem:[%s7 + $0x3c] sm:$0xf]
      %v3089 = vld [vmem:[%s7 + $0x40] sm:$0xf]
      %v3090 = vld [vmem:[%s7 + $0x44] sm:$0xf]
      %v3091 = vld [vmem:[%s7 + $0x48] sm:$0xf]
      %v3092 = vld [vmem:[%s7 + $0x4c] sm:$0xf]
      %v3093 = vld [vmem:[%s7 + $0x50] sm:$0xf]
      %v3094 = vld [vmem:[%s7 + $0x54] sm:$0xf]
      %v3095 = vld [vmem:[%s7 + $0x58] sm:$0xf]
      %v3096 = vld [vmem:[%s7 + $0x5c] sm:$0xf]
      %v3097 = vld [vmem:[%s7 + $0x60] sm:$0xf]
      %v3098 = vld [vmem:[%s7 + $0x64] sm:$0xf]
      %v3099 = vld [vmem:[%s7 + $0x68] sm:$0xf]
      %v3100 = vld [vmem:[%s7 + $0x6c] sm:$0xf]
      %v3101 = vld [vmem:[%s7 + $0x70] sm:$0xf]
      %v3102 = vld [vmem:[%s7 + $0x74] sm:$0xf]
      %v3103 = vld [vmem:[%s7 + $0x78] sm:$0xf]
      %v3104 = vld [vmem:[%s7 + $0x7c] sm:$0xf]
      %v3105 = vld [vmem:[%s7 + $0x80] sm:$0xf]
      %v3106 = vld [vmem:[%s7 + $0x84] sm:$0xf]
      %v3107 = vld [vmem:[%s7 + $0x88] sm:$0xf]
      %v3108 = vld [vmem:[%s7 + $0x8c] sm:$0xf]
      %v3109 = vld [vmem:[%s7 + $0x90] sm:$0xf]
      %v3110 = vld [vmem:[%s7 + $0x94] sm:$0xf]
      %v3111 = vld [vmem:[%s7 + $0x98] sm:$0xf]
      %v3112 = vld [vmem:[%s7 + $0x9c] sm:$0xf]
      %v3113 = vld [vmem:[%s7 + $0xa0] sm:$0xf]
      %v3114 = vld [vmem:[%s7 + $0xa4] sm:$0xf]
      %v3115 = vld [vmem:[%s7 + $0xa8] sm:$0xf]
      %v3116 = vld [vmem:[%s7 + $0xac] sm:$0xf]
      %v3117 = vld [vmem:[%s7 + $0xb0] sm:$0xf]
      %v3118 = vld [vmem:[%s7 + $0xb4] sm:$0xf]
      %v3119 = vld [vmem:[%s7 + $0xb8] sm:$0xf]
      %v3120 = vld [vmem:[%s7 + $0xbc] sm:$0xf]
      %v3121 = vld [vmem:[%s7 + $0xc0] sm:$0xf]
      %v3122 = vld [vmem:[%s7 + $0xc4] sm:$0xf]
      %v3123 = vld [vmem:[%s7 + $0xc8] sm:$0xf]
      %v3124 = vld [vmem:[%s7 + $0xcc] sm:$0xf]
      %v3125 = vld [vmem:[%s7 + $0xd0] sm:$0xf]
      %v3126 = vld [vmem:[%s7 + $0xd4] sm:$0xf]
      %v3127 = vld [vmem:[%s7 + $0xd8] sm:$0xf]
      %v3128 = vld [vmem:[%s7 + $0xdc] sm:$0xf]
      %v3129 = vld [vmem:[%s7 + $0xe0] sm:$0xf]
      %v3130 = vld [vmem:[%s7 + $0xe4] sm:$0xf]
      %v3131 = vld [vmem:[%s7 + $0xe8] sm:$0xf]
      %v3132 = vld [vmem:[%s7 + $0xec] sm:$0xf]
      %v3133 = vld [vmem:[%s7 + $0xf0] sm:$0xf]
      %v3134 = vld [vmem:[%s7 + $0xf4] sm:$0xf]
      %v3135 = vld [vmem:[%s7 + $0xf8] sm:$0xf]
      %v3136 = vld [vmem:[%s7 + $0xfc] sm:$0xf]
      %v3137 = vld [vmem:[%s7 + $0x100] sm:$0xf]
      %v3138 = vld [vmem:[%s7 + $0x104] sm:$0xf]
      %v3139 = vld [vmem:[%s7 + $0x108] sm:$0xf]
      %v3140 = vld [vmem:[%s7 + $0x10c] sm:$0xf]
      %v3141 = vld [vmem:[%s7 + $0x110] sm:$0xf]
      %v3142 = vld [vmem:[%s7 + $0x114] sm:$0xf]
      %v3143 = vld [vmem:[%s7 + $0x118] sm:$0xf]
      %v3144 = vld [vmem:[%s7 + $0x11c] sm:$0xf]
      %v3145 = vld [vmem:[%s8] sm:$0x1]
      %v3147 = vlaneseq
      %v3148 = vshrl.u32 %v3147, 7
      %v3149 = vsub.s32 0, %v3148
      %v3150 = vrot.slane %v3145, %v3149
      %v3224 = vunpack.c.l.b16 %v3073
      %v3225 = vunpack.c.l.b16 %v3074
      %v3226 = vunpack.c.l.b16 %v3075
      %v3227 = vunpack.c.l.b16 %v3076
      %v3228 = vunpack.c.l.b16 %v3077
      %v3229 = vunpack.c.l.b16 %v3078
      %v3230 = vunpack.c.l.b16 %v3079
      %v3231 = vunpack.c.l.b16 %v3080
      %v3232 = vunpack.c.l.b16 %v3081
      %v3233 = vunpack.c.l.b16 %v3082
      %v3234 = vunpack.c.l.b16 %v3083
      %v3235 = vunpack.c.l.b16 %v3084
      %v3236 = vunpack.c.l.b16 %v3085
      %v3237 = vunpack.c.l.b16 %v3086
      %v3238 = vunpack.c.l.b16 %v3087
      %v3239 = vunpack.c.l.b16 %v3088
      %v3240 = vunpack.c.l.b16 %v3089
      %v3241 = vunpack.c.l.b16 %v3090
      %v3242 = vunpack.c.l.b16 %v3091
      %v3243 = vunpack.c.l.b16 %v3092
      %v3244 = vunpack.c.l.b16 %v3093
      %v3245 = vunpack.c.l.b16 %v3094
      %v3246 = vunpack.c.l.b16 %v3095
      %v3247 = vunpack.c.l.b16 %v3096
      %v3248 = vunpack.c.l.b16 %v3097
      %v3249 = vunpack.c.l.b16 %v3098
      %v3250 = vunpack.c.l.b16 %v3099
      %v3251 = vunpack.c.l.b16 %v3100
      %v3252 = vunpack.c.l.b16 %v3101
      %v3253 = vunpack.c.l.b16 %v3102
      %v3254 = vunpack.c.l.b16 %v3103
      %v3255 = vunpack.c.l.b16 %v3104
      %v3256 = vunpack.c.l.b16 %v3105
      %v3257 = vunpack.c.l.b16 %v3106
      %v3258 = vunpack.c.l.b16 %v3107
      %v3259 = vunpack.c.l.b16 %v3108
      %v3260 = vunpack.c.l.b16 %v3109
      %v3261 = vunpack.c.l.b16 %v3110
      %v3262 = vunpack.c.l.b16 %v3111
      %v3263 = vunpack.c.l.b16 %v3112
      %v3264 = vunpack.c.l.b16 %v3113
      %v3265 = vunpack.c.l.b16 %v3114
      %v3266 = vunpack.c.l.b16 %v3115
      %v3267 = vunpack.c.l.b16 %v3116
      %v3268 = vunpack.c.l.b16 %v3117
      %v3269 = vunpack.c.l.b16 %v3118
      %v3270 = vunpack.c.l.b16 %v3119
      %v3271 = vunpack.c.l.b16 %v3120
      %v3272 = vunpack.c.l.b16 %v3121
      %v3273 = vunpack.c.l.b16 %v3122
      %v3274 = vunpack.c.l.b16 %v3123
      %v3275 = vunpack.c.l.b16 %v3124
      %v3276 = vunpack.c.l.b16 %v3125
      %v3277 = vunpack.c.l.b16 %v3126
      %v3278 = vunpack.c.l.b16 %v3127
      %v3279 = vunpack.c.l.b16 %v3128
      %v3280 = vunpack.c.l.b16 %v3129
      %v3281 = vunpack.c.l.b16 %v3130
      %v3282 = vunpack.c.l.b16 %v3131
      %v3283 = vunpack.c.l.b16 %v3132
      %v3284 = vunpack.c.l.b16 %v3133
      %v3285 = vunpack.c.l.b16 %v3134
      %v3286 = vunpack.c.l.b16 %v3135
      %v3287 = vunpack.c.l.b16 %v3136
      %v3288 = vunpack.c.l.b16 %v3137
      %v3289 = vunpack.c.l.b16 %v3138
      %v3290 = vunpack.c.l.b16 %v3139
      %v3291 = vunpack.c.l.b16 %v3140
      %v3292 = vunpack.c.l.b16 %v3141
      %v3293 = vunpack.c.l.b16 %v3142
      %v3294 = vunpack.c.l.b16 %v3143
      %v3295 = vunpack.c.l.b16 %v3144
      %v3296 = vpack.c.b16 %v3225, %v3224
      %v3297 = vpack.c.b16 %v3227, %v3226
      %v3298 = vpack.c.b16 %v3229, %v3228
      %v3299 = vpack.c.b16 %v3231, %v3230
      %v3300 = vpack.c.b16 %v3233, %v3232
      %v3301 = vpack.c.b16 %v3235, %v3234
      %v3302 = vpack.c.b16 %v3237, %v3236
      %v3303 = vpack.c.b16 %v3239, %v3238
      %v3304 = vpack.c.b16 %v3241, %v3240
      %v3305 = vpack.c.b16 %v3243, %v3242
      %v3306 = vpack.c.b16 %v3245, %v3244
      %v3307 = vpack.c.b16 %v3247, %v3246
      %v3308 = vpack.c.b16 %v3249, %v3248
      %v3309 = vpack.c.b16 %v3251, %v3250
      %v3310 = vpack.c.b16 %v3253, %v3252
      %v3311 = vpack.c.b16 %v3255, %v3254
      %v3312 = vpack.c.b16 %v3257, %v3256
      %v3313 = vpack.c.b16 %v3259, %v3258
      %v3314 = vpack.c.b16 %v3261, %v3260
      %v3315 = vpack.c.b16 %v3263, %v3262
      %v3316 = vpack.c.b16 %v3265, %v3264
      %v3317 = vpack.c.b16 %v3267, %v3266
      %v3318 = vpack.c.b16 %v3269, %v3268
      %v3319 = vpack.c.b16 %v3271, %v3270
      %v3320 = vpack.c.b16 %v3273, %v3272
      %v3321 = vpack.c.b16 %v3275, %v3274
      %v3322 = vpack.c.b16 %v3277, %v3276
      %v3323 = vpack.c.b16 %v3279, %v3278
      %v3324 = vpack.c.b16 %v3281, %v3280
      %v3325 = vpack.c.b16 %v3283, %v3282
      %v3326 = vpack.c.b16 %v3285, %v3284
      %v3327 = vpack.c.b16 %v3287, %v3286
      %v3328 = vpack.c.b16 %v3289, %v3288
      %v3329 = vpack.c.b16 %v3291, %v3290
      %v3330 = vpack.c.b16 %v3293, %v3292
      %v3331 = vpack.c.b16 %v3295, %v3294
      %v3369 = vsel %vm503, %v3057, 0
      %v3372 = vsel %vm503, %v3062, 0
      %v3375 = vsel %vm503, %v3067, 0
      %v3378 = vsel %vm503, %v3072, 0
      %3380 = vmatprep.subr.bf16.mxu0 0
      %3381 = vmatpush1.bf16.msra.mxu0 %v3303
      %3382 = vmatprep.subr.bf16.mxu0 0
      %3383 = vmatpush1.bf16.msra.mxu0 %v3302
      %3384 = vmatprep.subr.bf16.mxu0 0
      %3385 = vmatpush1.bf16.msra.mxu0 %v3301
      %3386 = vmatprep.subr.bf16.mxu0 0
      %3387 = vmatpush1.bf16.msra.mxu0 %v3300
      %3388 = vmatprep.subr.bf16.mxu0 0
      %3389 = vmatpush1.bf16.msra.mxu0 %v3299
      %3390 = vmatprep.subr.bf16.mxu0 0
      %3391 = vmatpush1.bf16.msra.mxu0 %v3298
      %3392 = vmatprep.subr.bf16.mxu0 0
      %3393 = vmatpush1.bf16.msra.mxu0 %v3297
      %3394 = vmatprep.subr.bf16.mxu0 0
      %3395 = vmatpush1.bf16.msra.mxu0 %v3296
      %3396 = vmatprep.subr.bf16.mxu0 0
      %3397 = vmatpush2.bf16.msra.mxu0 %v3311
      %3398 = vmatprep.subr.bf16.mxu0 0
      %3399 = vmatpush2.bf16.msra.mxu0 %v3310
      %3400 = vmatprep.subr.bf16.mxu0 0
      %3401 = vmatpush2.bf16.msra.mxu0 %v3309
      %3402 = vmatprep.subr.bf16.mxu0 0
      %3403 = vmatpush2.bf16.msra.mxu0 %v3308
      %3404 = vmatprep.subr.bf16.mxu0 0
      %3405 = vmatpush2.bf16.msra.mxu0 %v3307
      %3406 = vmatprep.subr.bf16.mxu0 0
      %3407 = vmatpush2.bf16.msra.mxu0 %v3306
      %3408 = vmatprep.subr.bf16.mxu0 0
      %3409 = vmatpush2.bf16.msra.mxu0 %v3305
      %3410 = vmatprep.subr.bf16.mxu0 0
      %3411 = vmatpush2.bf16.msra.mxu0 %v3304
      %3412 = vmatprep.mubr.bf16.mxu0 %v3054
      %3413 = vmatmul.mubr.bf16.gmra.mxu0 %v3053
      %v3414 = vpop.f32.mrf.mxu0
      %v3415 = vadd.f32 %v3150, %v3414
      %v3416 = vpop.f32.mrf.mxu0
      %v3417 = vpop.f32.mrf.mxu0
      %v3418 = vadd.f32 %v3150, %v3417
      %v3419 = vpop.f32.mrf.mxu0
      %3420 = vmatprep.mubr.bf16.mxu0 %v3059
      %3421 = vmatmul.mubr.bf16.gmra.mxu0 %v3058
      %v3422 = vpop.f32.mrf.mxu0
      %v3423 = vadd.f32 %v3150, %v3422
      %v3424 = vpop.f32.mrf.mxu0
      %v3425 = vpop.f32.mrf.mxu0
      %v3426 = vadd.f32 %v3150, %v3425
      %v3427 = vpop.f32.mrf.mxu0
      %3428 = vmatprep.mubr.bf16.mxu0 %v3064
      %3429 = vmatmul.mubr.bf16.gmra.mxu0 %v3063
      %v3430 = vpop.f32.mrf.mxu0
      %v3431 = vadd.f32 %v3150, %v3430
      %v3432 = vpop.f32.mrf.mxu0
      %v3433 = vpop.f32.mrf.mxu0
      %v3434 = vadd.f32 %v3150, %v3433
      %v3435 = vpop.f32.mrf.mxu0
      %3436 = vmatprep.mubr.bf16.mxu0 %v3069
      %3437 = vmatmul.mubr.bf16.gmra.mxu0 %v3068
      %v3438 = vpop.f32.mrf.mxu0
      %v3439 = vadd.f32 %v3150, %v3438
      %v3440 = vpop.f32.mrf.mxu0
      %v3441 = vpop.f32.mrf.mxu0
      %v3442 = vadd.f32 %v3150, %v3441
      %v3443 = vpop.f32.mrf.mxu0
      %3444 = vdwg.mxu0
      %3445 = vmatprep.subr.bf16.mxu0 0
      %3446 = vmatpush1.bf16.msra.mxu0 %v3319
      %3447 = vmatprep.subr.bf16.mxu0 0
      %3448 = vmatpush1.bf16.msra.mxu0 %v3318
      %3449 = vmatprep.subr.bf16.mxu0 0
      %3450 = vmatpush1.bf16.msra.mxu0 %v3317
      %3451 = vmatprep.subr.bf16.mxu0 0
      %3452 = vmatpush1.bf16.msra.mxu0 %v3316
      %3453 = vmatprep.subr.bf16.mxu0 0
      %3454 = vmatpush1.bf16.msra.mxu0 %v3315
      %3455 = vmatprep.subr.bf16.mxu0 0
      %3456 = vmatpush1.bf16.msra.mxu0 %v3314
      %3457 = vmatprep.subr.bf16.mxu0 0
      %3458 = vmatpush1.bf16.msra.mxu0 %v3313
      %3459 = vmatprep.subr.bf16.mxu0 0
      %3460 = vmatpush1.bf16.msra.mxu0 %v3312
      %3461 = vmatprep.subr.bf16.mxu0 0
      %3462 = vmatpush2.bf16.msra.mxu0 %v3327
      %3463 = vmatprep.subr.bf16.mxu0 0
      %3464 = vmatpush2.bf16.msra.mxu0 %v3326
      %3465 = vmatprep.subr.bf16.mxu0 0
      %3466 = vmatpush2.bf16.msra.mxu0 %v3325
      %3467 = vmatprep.subr.bf16.mxu0 0
      %3468 = vmatpush2.bf16.msra.mxu0 %v3324
      %3469 = vmatprep.subr.bf16.mxu0 0
      %3470 = vmatpush2.bf16.msra.mxu0 %v3323
      %3471 = vmatprep.subr.bf16.mxu0 0
      %3472 = vmatpush2.bf16.msra.mxu0 %v3322
      %3473 = vmatprep.subr.bf16.mxu0 0
      %3474 = vmatpush2.bf16.msra.mxu0 %v3321
      %3475 = vmatprep.subr.bf16.mxu0 0
      %3476 = vmatpush2.bf16.msra.mxu0 %v3320
      %3477 = vmatprep.mubr.bf16.mxu0 %v3056
      %3478 = vmatmul.mubr.bf16.gmra.mxu0 %v3055
      %v3479 = vpop.f32.mrf.mxu0
      %v3480 = vadd.f32 %v3415, %v3479
      %v3481 = vpop.f32.mrf.mxu0
      %v3482 = vpop.f32.mrf.mxu0
      %v3483 = vadd.f32 %v3418, %v3482
      %v3484 = vpop.f32.mrf.mxu0
      %3485 = vmatprep.mubr.bf16.mxu0 %v3061
      %3486 = vmatmul.mubr.bf16.gmra.mxu0 %v3060
      %v3487 = vpop.f32.mrf.mxu0
      %v3488 = vadd.f32 %v3423, %v3487
      %v3489 = vpop.f32.mrf.mxu0
      %v3490 = vpop.f32.mrf.mxu0
      %v3491 = vadd.f32 %v3426, %v3490
      %v3492 = vpop.f32.mrf.mxu0
      %3493 = vmatprep.mubr.bf16.mxu0 %v3066
      %3494 = vmatmul.mubr.bf16.gmra.mxu0 %v3065
      %v3495 = vpop.f32.mrf.mxu0
      %v3496 = vadd.f32 %v3431, %v3495
      %v3497 = vpop.f32.mrf.mxu0
      %v3498 = vpop.f32.mrf.mxu0
      %v3499 = vadd.f32 %v3434, %v3498
      %v3500 = vpop.f32.mrf.mxu0
      %3501 = vmatprep.mubr.bf16.mxu0 %v3071
      %3502 = vmatmul.mubr.bf16.gmra.mxu0 %v3070
      %v3503 = vpop.f32.mrf.mxu0
      %v3504 = vadd.f32 %v3439, %v3503
      %v3505 = vpop.f32.mrf.mxu0
      %v3506 = vpop.f32.mrf.mxu0
      %v3507 = vadd.f32 %v3442, %v3506
      %v3508 = vpop.f32.mrf.mxu0
      %3509 = vdwg.mxu0
      %3510 = vmatprep.subr.bf16.mxu0 0
      %3511 = vmatpush1.bf16.msra.mxu0 0
      %3512 = vmatprep.subr.bf16.mxu0 0
      %3513 = vmatpush1.bf16.msra.mxu0 0
      %3514 = vmatprep.subr.bf16.mxu0 0
      %3515 = vmatpush1.bf16.msra.mxu0 0
      %3516 = vmatprep.subr.bf16.mxu0 0
      %3517 = vmatpush1.bf16.msra.mxu0 0
      %3518 = vmatprep.subr.bf16.mxu0 0
      %3519 = vmatpush1.bf16.msra.mxu0 %v3331
      %3520 = vmatprep.subr.bf16.mxu0 0
      %3521 = vmatpush1.bf16.msra.mxu0 %v3330
      %3522 = vmatprep.subr.bf16.mxu0 0
      %3523 = vmatpush1.bf16.msra.mxu0 %v3329
      %3524 = vmatprep.subr.bf16.mxu0 0
      %3525 = vmatpush1.bf16.msra.mxu0 %v3328
      %3526 = vmatprep.subr.bf16.mxu0 0
      %3527 = vmatpush2.bf16.msra.mxu0 0
      %3528 = vmatprep.subr.bf16.mxu0 0
      %3529 = vmatpush2.bf16.msra.mxu0 0
      %3530 = vmatprep.subr.bf16.mxu0 0
      %3531 = vmatpush2.bf16.msra.mxu0 0
      %3532 = vmatprep.subr.bf16.mxu0 0
      %3533 = vmatpush2.bf16.msra.mxu0 0
      %3534 = vmatprep.subr.bf16.mxu0 0
      %3535 = vmatpush2.bf16.msra.mxu0 0
      %3536 = vmatprep.subr.bf16.mxu0 0
      %3537 = vmatpush2.bf16.msra.mxu0 0
      %3538 = vmatprep.subr.bf16.mxu0 0
      %3539 = vmatpush2.bf16.msra.mxu0 0
      %3540 = vmatprep.subr.bf16.mxu0 0
      %3541 = vmatpush2.bf16.msra.mxu0 0
      %3542 = vmatprep.mubr.bf16.mxu0 0
      %3543 = vmatmul.mubr.bf16.gmra.mxu0 %v3369
      %v3544 = vpop.f32.mrf.mxu0
      %v3545 = vadd.f32 %v3480, %v3544
      %v3546 = vpop.f32.mrf.mxu0
      %v3547 = vpop.f32.mrf.mxu0
      %v3548 = vadd.f32 %v3483, %v3547
      %v3549 = vpop.f32.mrf.mxu0
      %3550 = vmatprep.mubr.bf16.mxu0 0
      %3551 = vmatmul.mubr.bf16.gmra.mxu0 %v3372
      %v3552 = vpop.f32.mrf.mxu0
      %v3553 = vadd.f32 %v3488, %v3552
      %v3554 = vpop.f32.mrf.mxu0
      %v3555 = vpop.f32.mrf.mxu0
      %v3556 = vadd.f32 %v3491, %v3555
      %v3557 = vpop.f32.mrf.mxu0
      %3558 = vmatprep.mubr.bf16.mxu0 0
      %3559 = vmatmul.mubr.bf16.gmra.mxu0 %v3375
      %v3560 = vpop.f32.mrf.mxu0
      %v3561 = vadd.f32 %v3496, %v3560
      %v3562 = vpop.f32.mrf.mxu0
      %v3563 = vpop.f32.mrf.mxu0
      %v3564 = vadd.f32 %v3499, %v3563
      %v3565 = vpop.f32.mrf.mxu0
      %3566 = vmatprep.mubr.bf16.mxu0 0
      %3567 = vmatmul.mubr.bf16.gmra.mxu0 %v3378
      %v3568 = vpop.f32.mrf.mxu0
      %v3569 = vadd.f32 %v3504, %v3568
      %v3570 = vpop.f32.mrf.mxu0
      %v3571 = vpop.f32.mrf.mxu0
      %v3572 = vadd.f32 %v3507, %v3571
      %v3573 = vpop.f32.mrf.mxu0
      %3574 = vdwg.mxu0
      %vm3575 = vcmask 130048
      %3576 = vst.msk [vmem:[%s332] sm:$0xff] %vm3575, %v3545
      %3577 = vst.msk [vmem:[%s332 + $0x8] sm:$0xff] %vm3575, %v3548
      %3578 = vst.msk [vmem:[%s332 + $0x10] sm:$0xff] %vm3575, %v3553
      %3579 = vst.msk [vmem:[%s332 + $0x18] sm:$0xff] %vm3575, %v3556
      %3580 = vst.msk [vmem:[%s332 + $0x20] sm:$0xff] %vm3575, %v3561
      %3581 = vst.msk [vmem:[%s332 + $0x28] sm:$0xff] %vm3575, %v3564
      %3582 = vst.msk [vmem:[%s332 + $0x30] sm:$0xff] %vm3575, %v3569
      %3583 = vst.msk [vmem:[%s332 + $0x38] sm:$0xff] %vm3575, %v3572
      %p3584 = scmp.lt.s32.totalorder %s20, 1
      %s3585 = scalar_select %p3584, %s20, 1
      %s3586 = smul.addr %s3585, 8
      %s3587 = smul.addr %s3586, 8
      %s3588 = scalar_lea.vmem %s9, %s3587
      // Predicated region
      $region57: #{center_speed_dense_forward.1} parent=55 // pred_check
        %p3589 = pneg %p232
      $region58: #{center_speed_dense_forward.1} parent=55 // pred_check_branch
        %3591 = sbr.rel (%p3589) target = $region60
      $region59: #{center_speed_dense_forward.1} parent=55 // pred_region
        _
      $region60: #{center_speed_dense_forward.1} parent=55 // pred_fallthru
        _
    $region56: #{center_speed_dense_forward.1} parent=5 // pred_fallthru
      _
    %p3592 = scmp.le.s32.totalorder 2, %s15
    // Predicated region
    $region61: #{center_speed_dense_forward.1} parent=5 // pred_check
      %p3593 = pneg %p3592
    $region62: #{center_speed_dense_forward.1} parent=5 // pred_check_branch
      %3595 = sbr.rel (%p3593) target = $region64
    $region63: #{center_speed_dense_forward.1} parent=5 // pred_region
      %s3596 = ssub.s32 %s15, 2
      // Predicated region
      $region65: #{center_speed_dense_forward.1} parent=63 // pred_check
        %p3597 = pneg %p238
      $region66: #{center_speed_dense_forward.1} parent=63 // pred_check_branch
        %3599 = sbr.rel (%p3597) target = $region68
      $region67: #{center_speed_dense_forward.1} parent=63 // pred_region
        %p3600 = scmp.lt.s32.totalorder %s21, 1
        %s3601 = scalar_select %p3600, %s21, 1
        %s3602 = smul.addr %s3601, 8
        %s3603 = smul.addr %s3602, 8
        %s3604 = scalar_lea.vmem %s9, %s3603
      $region68: #{center_speed_dense_forward.1} parent=63 // pred_fallthru
        _
    $region64: #{center_speed_dense_forward.1} parent=5 // pred_fallthru
      _
  $region6: #{center_speed_dense_forward.1} parent=0 // loop_footer
    %s19 = sadd.s32 1, %s15
  $region7: #{center_speed_dense_forward.1} parent=0 // loop_footer_branch
    %14 = sbr.rel target = $region3
  $region8: #{center_speed_dense_forward.1} parent=0 // loop_exit
    _

</llo_original>
